<compile_context>
chip_gen: v6e
topology: v6e:2x2x1
jax: 0.10.0
libtpu: 0.0.40
codegen_flags: <defaults>
</compile_context>

<pallas_src>
import functools
import math
from typing import NamedTuple

import numpy as np

import jax
import jax.numpy as jnp
from jax.experimental import pallas as pl
from jax.experimental.pallas import tpu as pltpu


class HamidaConfig(NamedTuple):
    input_channels: int
    n_classes: int
    patch_size: int = 5
    dilation: int = 1


def _depth_dims(cfg):
    """Static depth sizes of every stage (mirrors _get_final_flattened_size)."""
    assert cfg.patch_size in (3, 5), "fused kernel supports patch_size 3 or 5"
    dil = cfg.dilation
    pd1 = 1 if cfg.patch_size == 3 else 0          # conv1 padding (isotropic)
    dx1 = cfg.input_channels + 2 * pd1             # conv1 input depth (padded)
    d1 = dx1 - 2 * dil                             # conv1 out
    d2 = (d1 + 2 - 2 * dil - 1) // 2 + 1           # pool1 out (stride 2, pad 1)
    d3 = d2 + 2 - 2 * dil                          # conv2 out (pad 1)
    d4 = (d3 + 2 - 2 * dil - 1) // 2 + 1           # pool2 out
    d5 = d4 + 2 - 2 * dil                          # conv3 out (pad 1)
    d6 = (d5 + 2 - dil - 1) // 2 + 1               # conv4 out (k=2, stride 2, pad 1)
    assert min(d1, d2, d3, d4, d5, d6) >= 1
    return pd1, dx1, d1, d2, d3, d4, d5, d6, 2 * d6


def init_params(key, cfg):
    """Kaiming-normal weights / zero biases, matching the PyTorch module."""
    *_, feat_size = _depth_dims(cfg)
    conv_shapes = {
        "conv1": (2, 1, 3, 3, 3),
        "pool1": (2, 2, 3, 1, 1),
        "conv2": (2, 2, 3, 3, 3),
        "pool2": (2, 2, 3, 1, 1),
        "conv3": (2, 2, 3, 1, 1),
        "conv4": (2, 2, 2, 1, 1),
    }
    keys = jax.random.split(key, len(conv_shapes) + 1)
    params = {}
    for k, (name, shp) in zip(keys[:-1], conv_shapes.items()):
        fan_in = shp[1] * shp[2] * shp[3] * shp[4]
        params[name] = {
            "w": math.sqrt(2.0 / fan_in)
            * jax.random.normal(k, shp, jnp.float32),
            "b": jnp.zeros((shp[0],), jnp.float32),
        }
    params["fc"] = {
        "w": math.sqrt(2.0 / feat_size)
        * jax.random.normal(keys[-1], (cfg.n_classes, feat_size), jnp.float32),
        "b": jnp.zeros((cfg.n_classes,), jnp.float32),
    }
    return params


@functools.partial(jax.jit, static_argnums=(0,))
def hamida_forward(cfg, params, x):
    """x: (B, 1, input_channels, patch, patch) float32 (PyTorch NCDHW)."""
    B = x.shape[0]
    dil = cfg.dilation
    NC = cfg.n_classes
    pd1, DX1, D1, D2, D3, D4, D5, D6, F = _depth_dims(cfg)
    N1 = 9 * B                                     # conv1 lanes: (ho,wo,b), Ho=Wo=3
    DP1, DP2, DP3, DP4, DP5 = D1 + 2, D2 + 2, D3 + 2, D4 + 2, D5 + 2

    # ---- packed SMEM scalar table: depth-conv weights + all biases ---------
    OFF_B1 = 0
    OFF_WP1 = OFF_B1 + 2
    OFF_BP1 = OFF_WP1 + 12
    OFF_B2 = OFF_BP1 + 2
    OFF_WP2 = OFF_B2 + 2
    OFF_BP2 = OFF_WP2 + 12
    OFF_W3 = OFF_BP2 + 2
    OFF_B3 = OFF_W3 + 12
    OFF_W4 = OFF_B3 + 2
    OFF_B4 = OFF_W4 + 8

    scal = jnp.concatenate([
        params["conv1"]["b"],
        params["pool1"]["w"].reshape(-1), params["pool1"]["b"],
        params["conv2"]["b"],
        params["pool2"]["w"].reshape(-1), params["pool2"]["b"],
        params["conv3"]["w"].reshape(-1), params["conv3"]["b"],
        params["conv4"]["w"].reshape(-1), params["conv4"]["b"],
    ]).astype(jnp.float32)

    # ---- one-time relayout of the network input for conv1 ------------------
    # x1[dd, (j*3+k)*N1 + ((ho*3+wo)*B + b)] = x_pad[b, dd, ho+j, wo+k]
    x0 = x[:, 0].astype(jnp.float32)               # (B, Din, P, P)
    if pd1:
        x0 = jnp.pad(x0, ((0, 0), (pd1, pd1), (pd1, pd1), (pd1, pd1)))
    cols = []
    for j in range(3):
        for k in range(3):
            win = x0[:, :, j:j + 3, k:k + 3]       # (B, DX1, 3, 3)
            cols.append(jnp.transpose(win, (1, 2, 3, 0)).reshape(DX1, N1))
    x1 = jnp.concatenate(cols, axis=1)             # (DX1, 9*N1)

    # ---- kron weight matrices so conv1/conv2 are plain MXU matmuls ---------
    # m1[co, i][jk*N1 + n, n'] = w1[co, 0, i, jk] * delta(n, n')
    w1r = params["conv1"]["w"].reshape(2, 3, 9).astype(jnp.float32)
    m1 = jnp.einsum("oik,nm->oiknm", w1r, jnp.eye(N1, dtype=jnp.float32))
    m1 = m1.reshape(2, 3, 9 * N1, N1)
    # m2[co, ci*3+i][jk*B + b, b'] = w2[co, ci, i, jk] * delta(b, b')
    w2r = params["conv2"]["w"].reshape(2, 2, 3, 9).astype(jnp.float32)
    m2 = jnp.einsum("ocik,bd->ocikbd", w2r, jnp.eye(B, dtype=jnp.float32))
    m2 = m2.reshape(2, 6, 9 * B, B)

    fcw = params["fc"]["w"].astype(jnp.float32)    # (NC, F)
    fcb = params["fc"]["b"].reshape(NC, 1).astype(jnp.float32)
    assert fcw.shape == (NC, F)

    # ------------------------------ fused kernel ----------------------------
    def kernel(scal_ref, x1_ref, m1_ref, m2_ref, fcw_ref, fcb_ref, out_ref,
               buf1, buf2, buf3, buf4, buf5, feat):
        # Zero scratch once so the depth-padding rows read as zeros.
        buf1[...] = jnp.zeros_like(buf1)
        buf2[...] = jnp.zeros_like(buf2)
        buf3[...] = jnp.zeros_like(buf3)
        buf4[...] = jnp.zeros_like(buf4)
        buf5[...] = jnp.zeros_like(buf5)

        # conv1 (3x3x3, stride 1) + ReLU: one MXU dot per (c_out, depth-tap).
        for co in range(2):
            acc = None
            for i in range(3):
                lhs = x1_ref[pl.ds(i * dil, D1), :]
                t = jnp.dot(lhs, m1_ref[co, i],
                            preferred_element_type=jnp.float32)
                acc = t if acc is None else acc + t
            acc = jnp.maximum(acc + scal_ref[OFF_B1 + co], 0.0)
            buf1[pl.ds(co * DP1 + 1, D1), :] = acc

        # pool1 (3,1,1) stride 2 (no ReLU): VPU scalar FMAs on strided reads.
        for co in range(2):
            acc = None
            for ci in range(2):
                for i in range(3):
                    w = scal_ref[OFF_WP1 + co * 6 + ci * 3 + i]
                    v = w * buf1[pl.ds(ci * DP1 + i * dil, D2, stride=2), :]
                    acc = v if acc is None else acc + v
            buf2[pl.ds(co * DP2 + 1, D2), :] = acc + scal_ref[OFF_BP1 + co]

        # conv2 (3x3x3, stride 1) + ReLU: spatial 3x3 -> 1x1 folded into m2.
        for co in range(2):
            acc = None
            for ci in range(2):
                for i in range(3):
                    lhs = buf2[pl.ds(ci * DP2 + i * dil, D3), :]
                    t = jnp.dot(lhs, m2_ref[co, ci * 3 + i],
                                preferred_element_type=jnp.float32)
                    acc = t if acc is None else acc + t
            acc = jnp.maximum(acc + scal_ref[OFF_B2 + co], 0.0)
            buf3[pl.ds(co * DP3 + 1, D3), :] = acc

        # pool2 (3,1,1) stride 2 (no ReLU).
        for co in range(2):
            acc = None
            for ci in range(2):
                for i in range(3):
                    w = scal_ref[OFF_WP2 + co * 6 + ci * 3 + i]
                    v = w * buf3[pl.ds(ci * DP3 + i * dil, D4, stride=2), :]
                    acc = v if acc is None else acc + v
            buf4[pl.ds(co * DP4 + 1, D4), :] = acc + scal_ref[OFF_BP2 + co]

        # conv3 (3,1,1) stride 1 + ReLU.
        for co in range(2):
            acc = None
            for ci in range(2):
                for i in range(3):
                    w = scal_ref[OFF_W3 + co * 6 + ci * 3 + i]
                    v = w * buf4[pl.ds(ci * DP4 + i * dil, D5), :]
                    acc = v if acc is None else acc + v
            acc = jnp.maximum(acc + scal_ref[OFF_B3 + co], 0.0)
            buf5[pl.ds(co * DP5 + 1, D5), :] = acc

        # conv4 (2,1,1) stride 2 + ReLU -> features in PyTorch view order:
        # feat[c*D6 + d, b].
        for co in range(2):
            acc = None
            for ci in range(2):
                for i in range(2):
                    w = scal_ref[OFF_W4 + co * 4 + ci * 2 + i]
                    v = w * buf5[pl.ds(ci * DP5 + i * dil, D6, stride=2), :]
                    acc = v if acc is None else acc + v
            acc = jnp.maximum(acc + scal_ref[OFF_B4 + co], 0.0)
            feat[pl.ds(co * D6, D6), :] = acc

        # FC: logits^T = W_fc @ feat + b   (lane axis = batch).
        out_ref[...] = (jnp.dot(fcw_ref[...], feat[...],
                                preferred_element_type=jnp.float32)
                        + fcb_ref[...])

    out_t = pl.pallas_call(
        kernel,
        grid=(1,),
        out_shape=jax.ShapeDtypeStruct((NC, B), jnp.float32),
        in_specs=[
            pl.BlockSpec(memory_space=pltpu.MemorySpace.SMEM),         # scalars
            pl.BlockSpec((DX1, 9 * N1), lambda i: (0, 0)),             # x1
            pl.BlockSpec((2, 3, 9 * N1, N1), lambda i: (0, 0, 0, 0)),  # m1
            pl.BlockSpec((2, 6, 9 * B, B), lambda i: (0, 0, 0, 0)),    # m2
            pl.BlockSpec((NC, F), lambda i: (0, 0)),                   # fc_w
            pl.BlockSpec((NC, 1), lambda i: (0, 0)),                   # fc_b
        ],
        out_specs=pl.BlockSpec((NC, B), lambda i: (0, 0)),
        scratch_shapes=[
            pltpu.VMEM((2 * DP1, N1), jnp.float32),   # conv1 out (padded depth)
            pltpu.VMEM((2 * DP2, N1), jnp.float32),   # pool1 out
            pltpu.VMEM((2 * DP3, B), jnp.float32),    # conv2 out
            pltpu.VMEM((2 * DP4, B), jnp.float32),    # pool2 out
            pltpu.VMEM((2 * DP5, B), jnp.float32),    # conv3 out
            pltpu.VMEM((F, B), jnp.float32),          # conv4 out / features^T
        ],
        compiler_params=pltpu.CompilerParams(
            dimension_semantics=("arbitrary",)),
    )(scal, x1, m1, m2, fcw, fcb)

    return out_t.T                                    # (B, n_classes)


# --------------------- float64 NumPy reference (for validation) -------------- #
def _np_conv3d(x, w, b, stride, padding, dilation):
    """x: (B,Cin,D,H,W), w: (Cout,Cin,kD,kH,kW). Plain float64 conv3d."""
    B, Ci, D, H, W = x.shape
    Co, _, kD, kH, kW = w.shape
    sD, sH, sW = stride
    pD, pH, pW = padding
    dD, dH, dW = dilation
    xp = np.pad(x, ((0, 0), (0, 0), (pD, pD), (pH, pH), (pW, pW)))
    Do = (D + 2 * pD - dD * (kD - 1) - 1) // sD + 1
    Ho = (H + 2 * pH - dH * (kH - 1) - 1) // sH + 1
    Wo = (W + 2 * pW - dW * (kW - 1) - 1) // sW + 1
    out = np.zeros((B, Co, Do, Ho, Wo), np.float64)
    for od in range(Do):
        for oh in range(Ho):
            for ow in range(Wo):
                patch = xp[:, :,
                           od * sD: od * sD + dD * (kD - 1) + 1: dD,
                           oh * sH: oh * sH + dH * (kH - 1) + 1: dH,
                           ow * sW: ow * sW + dW * (kW - 1) + 1: dW]
                out[:, :, od, oh, ow] = np.einsum("bcxyz,ocxyz->bo", patch, w)
    return out + b.reshape(1, Co, 1, 1, 1)


def _reference_forward(cfg, params, x):
    """Float64 NumPy replica of HamidaEtAl.forward (the PyTorch spec)."""
    f64 = lambda a: np.asarray(a, np.float64)
    dil = (cfg.dilation, 1, 1)
    pad1 = (1, 1, 1) if cfg.patch_size == 3 else (0, 0, 0)
    h = f64(x)
    h = np.maximum(_np_conv3d(h, f64(params["conv1"]["w"]), f64(params["conv1"]["b"]),
                              (1, 1, 1), pad1, dil), 0.0)
    h = _np_conv3d(h, f64(params["pool1"]["w"]), f64(params["pool1"]["b"]),
                   (2, 1, 1), (1, 0, 0), dil)
    h = np.maximum(_np_conv3d(h, f64(params["conv2"]["w"]), f64(params["conv2"]["b"]),
                              (1, 1, 1), (1, 0, 0), dil), 0.0)
    h = _np_conv3d(h, f64(params["pool2"]["w"]), f64(params["pool2"]["b"]),
                   (2, 1, 1), (1, 0, 0), dil)
    h = np.maximum(_np_conv3d(h, f64(params["conv3"]["w"]), f64(params["conv3"]["b"]),
                              (1, 1, 1), (1, 0, 0), dil), 0.0)
    h = np.maximum(_np_conv3d(h, f64(params["conv4"]["w"]), f64(params["conv4"]["b"]),
                              (2, 1, 1), (1, 0, 0), dil), 0.0)
    feat = h.reshape(h.shape[0], -1)
    return feat @ f64(params["fc"]["w"]).T + f64(params["fc"]["b"])


# ----------------------------------- main ----------------------------------- #
if __name__ == "__main__":
    cfg = HamidaConfig(input_channels=16, n_classes=10, patch_size=5, dilation=1)
    batch = 2

    key = jax.random.PRNGKey(0)
    k_param, k_input = jax.random.split(key)
    params = init_params(k_param, cfg)

    x = jax.random.normal(
        k_input, (batch, 1, cfg.input_channels, cfg.patch_size, cfg.patch_size),
        dtype=jnp.float32)

    logits = hamida_forward(cfg, params, x)
    logits = jax.block_until_ready(logits)

    assert logits.shape == (batch, cfg.n_classes), logits.shape
    assert bool(jnp.all(jnp.isfinite(logits)))

    # Numerical validation against the float64 NumPy reference of the module.
    ref = _reference_forward(cfg, params, x)
    got = np.asarray(logits, np.float64)
    assert np.allclose(got, ref, rtol=5e-2, atol=5e-2), (
        f"max abs err = {np.max(np.abs(got - ref))}")

    print("KERNEL_OK")
</pallas_src>

<mosaic_0001>
module attributes {stable_mosaic.version = 11 : i64} {
  func.func @kernel(%arg0: i32, %arg1: memref<56xf32, #tpu.memory_space<smem>>, %arg2: memref<16x162xf32, #tpu.memory_space<vmem>>, %arg3: memref<2x3x162x18xf32, #tpu.memory_space<vmem>>, %arg4: memref<2x6x18x2xf32, #tpu.memory_space<vmem>>, %arg5: memref<10x6xf32, #tpu.memory_space<vmem>>, %arg6: memref<10x1xf32, #tpu.memory_space<vmem>>, %arg7: memref<10x2xf32, #tpu.memory_space<vmem>>, %arg8: memref<32x18xf32, #tpu.memory_space<vmem>>, %arg9: memref<18x18xf32, #tpu.memory_space<vmem>>, %arg10: memref<18x2xf32, #tpu.memory_space<vmem>>, %arg11: memref<12x2xf32, #tpu.memory_space<vmem>>, %arg12: memref<12x2xf32, #tpu.memory_space<vmem>>, %arg13: memref<6x2xf32, #tpu.memory_space<vmem>>) attributes {dimension_semantics = [#tpu.dimension_semantics<arbitrary>], iteration_bounds = array<i64: 1>, scalar_prefetch = 0 : i64, scratch_operands = 6 : i64, tpu.core_type = #tpu.core_type<tc>, window_params = [{transform_indices = @transform_0, window_bounds = array<i64: 56>}, {pipeline_mode = #tpu.pipeline_mode<synchronous>, transform_indices = @transform_1, window_bounds = array<i64: 16, 162>}, {pipeline_mode = #tpu.pipeline_mode<synchronous>, transform_indices = @transform_2, window_bounds = array<i64: 2, 3, 162, 18>}, {pipeline_mode = #tpu.pipeline_mode<synchronous>, transform_indices = @transform_3, window_bounds = array<i64: 2, 6, 18, 2>}, {pipeline_mode = #tpu.pipeline_mode<synchronous>, transform_indices = @transform_4, window_bounds = array<i64: 10, 6>}, {pipeline_mode = #tpu.pipeline_mode<synchronous>, transform_indices = @transform_5, window_bounds = array<i64: 10, 1>}, {pipeline_mode = #tpu.pipeline_mode<synchronous>, transform_indices = @transform_6, window_bounds = array<i64: 10, 2>}]} {
    %cst = arith.constant 0.000000e+00 : f32
    %0 = vector.broadcast %cst : f32 to vector<32x18xf32>
    %c0 = arith.constant 0 : index
    %c0_0 = arith.constant 0 : index
    %1 = vector.load %arg8[%c0, %c0_0] : memref<32x18xf32, #tpu.memory_space<vmem>>, vector<32x18xf32>
    tpu.vector_store %arg8[%c0, %c0_0], %0 {strides = array<i32>} : memref<32x18xf32, #tpu.memory_space<vmem>>, vector<32x18xf32>,
    %cst_1 = arith.constant 0.000000e+00 : f32
    %2 = vector.broadcast %cst_1 : f32 to vector<18x18xf32>
    %c0_2 = arith.constant 0 : index
    %c0_3 = arith.constant 0 : index
    %3 = vector.load %arg9[%c0_2, %c0_3] : memref<18x18xf32, #tpu.memory_space<vmem>>, vector<18x18xf32>
    tpu.vector_store %arg9[%c0_2, %c0_3], %2 {strides = array<i32>} : memref<18x18xf32, #tpu.memory_space<vmem>>, vector<18x18xf32>,
    %cst_4 = arith.constant 0.000000e+00 : f32
    %4 = vector.broadcast %cst_4 : f32 to vector<18x2xf32>
    %c0_5 = arith.constant 0 : index
    %c0_6 = arith.constant 0 : index
    %5 = vector.load %arg10[%c0_5, %c0_6] : memref<18x2xf32, #tpu.memory_space<vmem>>, vector<18x2xf32>
    tpu.vector_store %arg10[%c0_5, %c0_6], %4 {strides = array<i32>} : memref<18x2xf32, #tpu.memory_space<vmem>>, vector<18x2xf32>,
    %cst_7 = arith.constant 0.000000e+00 : f32
    %6 = vector.broadcast %cst_7 : f32 to vector<12x2xf32>
    %c0_8 = arith.constant 0 : index
    %c0_9 = arith.constant 0 : index
    %7 = vector.load %arg11[%c0_8, %c0_9] : memref<12x2xf32, #tpu.memory_space<vmem>>, vector<12x2xf32>
    tpu.vector_store %arg11[%c0_8, %c0_9], %6 {strides = array<i32>} : memref<12x2xf32, #tpu.memory_space<vmem>>, vector<12x2xf32>,
    %cst_10 = arith.constant 0.000000e+00 : f32
    %8 = vector.broadcast %cst_10 : f32 to vector<12x2xf32>
    %c0_11 = arith.constant 0 : index
    %c0_12 = arith.constant 0 : index
    %9 = vector.load %arg12[%c0_11, %c0_12] : memref<12x2xf32, #tpu.memory_space<vmem>>, vector<12x2xf32>
    tpu.vector_store %arg12[%c0_11, %c0_12], %8 {strides = array<i32>} : memref<12x2xf32, #tpu.memory_space<vmem>>, vector<12x2xf32>,
    %c0_13 = arith.constant 0 : index
    %c0_14 = arith.constant 0 : index
    %10 = vector.load %arg2[%c0_13, %c0_14] : memref<16x162xf32, #tpu.memory_space<vmem>>, vector<14x162xf32>
    %c0_15 = arith.constant 0 : index
    %c0_16 = arith.constant 0 : index
    %c0_17 = arith.constant 0 : index
    %c0_18 = arith.constant 0 : index
    %11 = vector.load %arg3[%c0_15, %c0_16, %c0_17, %c0_18] : memref<2x3x162x18xf32, #tpu.memory_space<vmem>>, vector<1x1x162x18xf32>
    %12 = vector.shape_cast %11 : vector<1x1x162x18xf32> to vector<162x18xf32>
    %cst_19 = arith.constant dense<0.000000e+00> : vector<14x18xf32>
    %13 = tpu.matmul %10, %12, %cst_19 {dimension_numbers = #tpu.dot_dimension_numbers<[1], [0], [0], [1], [0, 0, 1, 1], [], []>} : vector<14x162xf32>, vector<162x18xf32>, vector<14x18xf32> -> vector<14x18xf32>
    %c1 = arith.constant 1 : index
    %c0_20 = arith.constant 0 : index
    %14 = vector.load %arg2[%c1, %c0_20] : memref<16x162xf32, #tpu.memory_space<vmem>>, vector<14x162xf32>
    %c0_21 = arith.constant 0 : index
    %c1_22 = arith.constant 1 : index
    %c0_23 = arith.constant 0 : index
    %c0_24 = arith.constant 0 : index
    %15 = vector.load %arg3[%c0_21, %c1_22, %c0_23, %c0_24] : memref<2x3x162x18xf32, #tpu.memory_space<vmem>>, vector<1x1x162x18xf32>
    %16 = vector.shape_cast %15 : vector<1x1x162x18xf32> to vector<162x18xf32>
    %cst_25 = arith.constant dense<0.000000e+00> : vector<14x18xf32>
    %17 = tpu.matmul %14, %16, %cst_25 {dimension_numbers = #tpu.dot_dimension_numbers<[1], [0], [0], [1], [0, 0, 1, 1], [], []>} : vector<14x162xf32>, vector<162x18xf32>, vector<14x18xf32> -> vector<14x18xf32>
    %18 = arith.addf %13, %17 : vector<14x18xf32>
    %c2 = arith.constant 2 : index
    %c0_26 = arith.constant 0 : index
    %19 = vector.load %arg2[%c2, %c0_26] : memref<16x162xf32, #tpu.memory_space<vmem>>, vector<14x162xf32>
    %c0_27 = arith.constant 0 : index
    %c2_28 = arith.constant 2 : index
    %c0_29 = arith.constant 0 : index
    %c0_30 = arith.constant 0 : index
    %20 = vector.load %arg3[%c0_27, %c2_28, %c0_29, %c0_30] : memref<2x3x162x18xf32, #tpu.memory_space<vmem>>, vector<1x1x162x18xf32>
    %21 = vector.shape_cast %20 : vector<1x1x162x18xf32> to vector<162x18xf32>
    %cst_31 = arith.constant dense<0.000000e+00> : vector<14x18xf32>
    %22 = tpu.matmul %19, %21, %cst_31 {dimension_numbers = #tpu.dot_dimension_numbers<[1], [0], [0], [1], [0, 0, 1, 1], [], []>} : vector<14x162xf32>, vector<162x18xf32>, vector<14x18xf32> -> vector<14x18xf32>
    %23 = arith.addf %18, %22 : vector<14x18xf32>
    %c0_32 = arith.constant 0 : index
    %24 = memref.load %arg1[%c0_32] : memref<56xf32, #tpu.memory_space<smem>>
    %25 = vector.broadcast %24 : f32 to vector<14x18xf32>
    %26 = arith.addf %23, %25 : vector<14x18xf32>
    %cst_33 = arith.constant 0.000000e+00 : f32
    %27 = vector.broadcast %cst_33 : f32 to vector<14x18xf32>
    %28 = arith.maximumf %26, %27 : vector<14x18xf32>
    %c1_34 = arith.constant 1 : index
    %c0_35 = arith.constant 0 : index
    %29 = vector.load %arg8[%c1_34, %c0_35] : memref<32x18xf32, #tpu.memory_space<vmem>>, vector<14x18xf32>
    tpu.vector_store %arg8[%c1_34, %c0_35], %28 {strides = array<i32>} : memref<32x18xf32, #tpu.memory_space<vmem>>, vector<14x18xf32>,
    %c0_36 = arith.constant 0 : index
    %c0_37 = arith.constant 0 : index
    %30 = vector.load %arg2[%c0_36, %c0_37] : memref<16x162xf32, #tpu.memory_space<vmem>>, vector<14x162xf32>
    %c1_38 = arith.constant 1 : index
    %c0_39 = arith.constant 0 : index
    %c0_40 = arith.constant 0 : index
    %c0_41 = arith.constant 0 : index
    %31 = vector.load %arg3[%c1_38, %c0_39, %c0_40, %c0_41] : memref<2x3x162x18xf32, #tpu.memory_space<vmem>>, vector<1x1x162x18xf32>
    %32 = vector.shape_cast %31 : vector<1x1x162x18xf32> to vector<162x18xf32>
    %cst_42 = arith.constant dense<0.000000e+00> : vector<14x18xf32>
    %33 = tpu.matmul %30, %32, %cst_42 {dimension_numbers = #tpu.dot_dimension_numbers<[1], [0], [0], [1], [0, 0, 1, 1], [], []>} : vector<14x162xf32>, vector<162x18xf32>, vector<14x18xf32> -> vector<14x18xf32>
    %c1_43 = arith.constant 1 : index
    %c0_44 = arith.constant 0 : index
    %34 = vector.load %arg2[%c1_43, %c0_44] : memref<16x162xf32, #tpu.memory_space<vmem>>, vector<14x162xf32>
    %c1_45 = arith.constant 1 : index
    %c1_46 = arith.constant 1 : index
    %c0_47 = arith.constant 0 : index
    %c0_48 = arith.constant 0 : index
    %35 = vector.load %arg3[%c1_45, %c1_46, %c0_47, %c0_48] : memref<2x3x162x18xf32, #tpu.memory_space<vmem>>, vector<1x1x162x18xf32>
    %36 = vector.shape_cast %35 : vector<1x1x162x18xf32> to vector<162x18xf32>
    %cst_49 = arith.constant dense<0.000000e+00> : vector<14x18xf32>
    %37 = tpu.matmul %34, %36, %cst_49 {dimension_numbers = #tpu.dot_dimension_numbers<[1], [0], [0], [1], [0, 0, 1, 1], [], []>} : vector<14x162xf32>, vector<162x18xf32>, vector<14x18xf32> -> vector<14x18xf32>
    %38 = arith.addf %33, %37 : vector<14x18xf32>
    %c2_50 = arith.constant 2 : index
    %c0_51 = arith.constant 0 : index
    %39 = vector.load %arg2[%c2_50, %c0_51] : memref<16x162xf32, #tpu.memory_space<vmem>>, vector<14x162xf32>
    %c1_52 = arith.constant 1 : index
    %c2_53 = arith.constant 2 : index
    %c0_54 = arith.constant 0 : index
    %c0_55 = arith.constant 0 : index
    %40 = vector.load %arg3[%c1_52, %c2_53, %c0_54, %c0_55] : memref<2x3x162x18xf32, #tpu.memory_space<vmem>>, vector<1x1x162x18xf32>
    %41 = vector.shape_cast %40 : vector<1x1x162x18xf32> to vector<162x18xf32>
    %cst_56 = arith.constant dense<0.000000e+00> : vector<14x18xf32>
    %42 = tpu.matmul %39, %41, %cst_56 {dimension_numbers = #tpu.dot_dimension_numbers<[1], [0], [0], [1], [0, 0, 1, 1], [], []>} : vector<14x162xf32>, vector<162x18xf32>, vector<14x18xf32> -> vector<14x18xf32>
    %43 = arith.addf %38, %42 : vector<14x18xf32>
    %c1_57 = arith.constant 1 : index
    %44 = memref.load %arg1[%c1_57] : memref<56xf32, #tpu.memory_space<smem>>
    %45 = vector.broadcast %44 : f32 to vector<14x18xf32>
    %46 = arith.addf %43, %45 : vector<14x18xf32>
    %cst_58 = arith.constant 0.000000e+00 : f32
    %47 = vector.broadcast %cst_58 : f32 to vector<14x18xf32>
    %48 = arith.maximumf %46, %47 : vector<14x18xf32>
    %c17 = arith.constant 17 : index
    %c0_59 = arith.constant 0 : index
    %49 = vector.load %arg8[%c17, %c0_59] : memref<32x18xf32, #tpu.memory_space<vmem>>, vector<14x18xf32>
    tpu.vector_store %arg8[%c17, %c0_59], %48 {strides = array<i32>} : memref<32x18xf32, #tpu.memory_space<vmem>>, vector<14x18xf32>,
    %c2_60 = arith.constant 2 : index
    %50 = memref.load %arg1[%c2_60] : memref<56xf32, #tpu.memory_space<smem>>
    %c0_61 = arith.constant 0 : index
    %c0_62 = arith.constant 0 : index
    %51 = tpu.strided_load %arg8[%c0_61, %c0_62] {strides = array<i32: 2, 1>} : memref<32x18xf32, #tpu.memory_space<vmem>>, vector<7x18xf32>
    %52 = vector.broadcast %50 : f32 to vector<7x18xf32>
    %53 = arith.mulf %52, %51 : vector<7x18xf32>
    %c3 = arith.constant 3 : index
    %54 = memref.load %arg1[%c3] : memref<56xf32, #tpu.memory_space<smem>>
    %c1_63 = arith.constant 1 : index
    %c0_64 = arith.constant 0 : index
    %55 = tpu.strided_load %arg8[%c1_63, %c0_64] {strides = array<i32: 2, 1>} : memref<32x18xf32, #tpu.memory_space<vmem>>, vector<7x18xf32>
    %56 = vector.broadcast %54 : f32 to vector<7x18xf32>
    %57 = arith.mulf %56, %55 : vector<7x18xf32>
    %58 = arith.addf %53, %57 : vector<7x18xf32>
    %c4 = arith.constant 4 : index
    %59 = memref.load %arg1[%c4] : memref<56xf32, #tpu.memory_space<smem>>
    %c2_65 = arith.constant 2 : index
    %c0_66 = arith.constant 0 : index
    %60 = tpu.strided_load %arg8[%c2_65, %c0_66] {strides = array<i32: 2, 1>} : memref<32x18xf32, #tpu.memory_space<vmem>>, vector<7x18xf32>
    %61 = vector.broadcast %59 : f32 to vector<7x18xf32>
    %62 = arith.mulf %61, %60 : vector<7x18xf32>
    %63 = arith.addf %58, %62 : vector<7x18xf32>
    %c5 = arith.constant 5 : index
    %64 = memref.load %arg1[%c5] : memref<56xf32, #tpu.memory_space<smem>>
    %c16 = arith.constant 16 : index
    %c0_67 = arith.constant 0 : index
    %65 = tpu.strided_load %arg8[%c16, %c0_67] {strides = array<i32: 2, 1>} : memref<32x18xf32, #tpu.memory_space<vmem>>, vector<7x18xf32>
    %66 = vector.broadcast %64 : f32 to vector<7x18xf32>
    %67 = arith.mulf %66, %65 : vector<7x18xf32>
    %68 = arith.addf %63, %67 : vector<7x18xf32>
    %c6 = arith.constant 6 : index
    %69 = memref.load %arg1[%c6] : memref<56xf32, #tpu.memory_space<smem>>
    %c17_68 = arith.constant 17 : index
    %c0_69 = arith.constant 0 : index
    %70 = tpu.strided_load %arg8[%c17_68, %c0_69] {strides = array<i32: 2, 1>} : memref<32x18xf32, #tpu.memory_space<vmem>>, vector<7x18xf32>
    %71 = vector.broadcast %69 : f32 to vector<7x18xf32>
    %72 = arith.mulf %71, %70 : vector<7x18xf32>
    %73 = arith.addf %68, %72 : vector<7x18xf32>
    %c7 = arith.constant 7 : index
    %74 = memref.load %arg1[%c7] : memref<56xf32, #tpu.memory_space<smem>>
    %c18 = arith.constant 18 : index
    %c0_70 = arith.constant 0 : index
    %75 = tpu.strided_load %arg8[%c18, %c0_70] {strides = array<i32: 2, 1>} : memref<32x18xf32, #tpu.memory_space<vmem>>, vector<7x18xf32>
    %76 = vector.broadcast %74 : f32 to vector<7x18xf32>
    %77 = arith.mulf %76, %75 : vector<7x18xf32>
    %78 = arith.addf %73, %77 : vector<7x18xf32>
    %c14 = arith.constant 14 : index
    %79 = memref.load %arg1[%c14] : memref<56xf32, #tpu.memory_space<smem>>
    %80 = vector.broadcast %79 : f32 to vector<7x18xf32>
    %81 = arith.addf %78, %80 : vector<7x18xf32>
    %c1_71 = arith.constant 1 : index
    %c0_72 = arith.constant 0 : index
    %82 = vector.load %arg9[%c1_71, %c0_72] : memref<18x18xf32, #tpu.memory_space<vmem>>, vector<7x18xf32>
    tpu.vector_store %arg9[%c1_71, %c0_72], %81 {strides = array<i32>} : memref<18x18xf32, #tpu.memory_space<vmem>>, vector<7x18xf32>,
    %c8 = arith.constant 8 : index
    %83 = memref.load %arg1[%c8] : memref<56xf32, #tpu.memory_space<smem>>
    %c0_73 = arith.constant 0 : index
    %c0_74 = arith.constant 0 : index
    %84 = tpu.strided_load %arg8[%c0_73, %c0_74] {strides = array<i32: 2, 1>} : memref<32x18xf32, #tpu.memory_space<vmem>>, vector<7x18xf32>
    %85 = vector.broadcast %83 : f32 to vector<7x18xf32>
    %86 = arith.mulf %85, %84 : vector<7x18xf32>
    %c9 = arith.constant 9 : index
    %87 = memref.load %arg1[%c9] : memref<56xf32, #tpu.memory_space<smem>>
    %c1_75 = arith.constant 1 : index
    %c0_76 = arith.constant 0 : index
    %88 = tpu.strided_load %arg8[%c1_75, %c0_76] {strides = array<i32: 2, 1>} : memref<32x18xf32, #tpu.memory_space<vmem>>, vector<7x18xf32>
    %89 = vector.broadcast %87 : f32 to vector<7x18xf32>
    %90 = arith.mulf %89, %88 : vector<7x18xf32>
    %91 = arith.addf %86, %90 : vector<7x18xf32>
    %c10 = arith.constant 10 : index
    %92 = memref.load %arg1[%c10] : memref<56xf32, #tpu.memory_space<smem>>
    %c2_77 = arith.constant 2 : index
    %c0_78 = arith.constant 0 : index
    %93 = tpu.strided_load %arg8[%c2_77, %c0_78] {strides = array<i32: 2, 1>} : memref<32x18xf32, #tpu.memory_space<vmem>>, vector<7x18xf32>
    %94 = vector.broadcast %92 : f32 to vector<7x18xf32>
    %95 = arith.mulf %94, %93 : vector<7x18xf32>
    %96 = arith.addf %91, %95 : vector<7x18xf32>
    %c11 = arith.constant 11 : index
    %97 = memref.load %arg1[%c11] : memref<56xf32, #tpu.memory_space<smem>>
    %c16_79 = arith.constant 16 : index
    %c0_80 = arith.constant 0 : index
    %98 = tpu.strided_load %arg8[%c16_79, %c0_80] {strides = array<i32: 2, 1>} : memref<32x18xf32, #tpu.memory_space<vmem>>, vector<7x18xf32>
    %99 = vector.broadcast %97 : f32 to vector<7x18xf32>
    %100 = arith.mulf %99, %98 : vector<7x18xf32>
    %101 = arith.addf %96, %100 : vector<7x18xf32>
    %c12 = arith.constant 12 : index
    %102 = memref.load %arg1[%c12] : memref<56xf32, #tpu.memory_space<smem>>
    %c17_81 = arith.constant 17 : index
    %c0_82 = arith.constant 0 : index
    %103 = tpu.strided_load %arg8[%c17_81, %c0_82] {strides = array<i32: 2, 1>} : memref<32x18xf32, #tpu.memory_space<vmem>>, vector<7x18xf32>
    %104 = vector.broadcast %102 : f32 to vector<7x18xf32>
    %105 = arith.mulf %104, %103 : vector<7x18xf32>
    %106 = arith.addf %101, %105 : vector<7x18xf32>
    %c13 = arith.constant 13 : index
    %107 = memref.load %arg1[%c13] : memref<56xf32, #tpu.memory_space<smem>>
    %c18_83 = arith.constant 18 : index
    %c0_84 = arith.constant 0 : index
    %108 = tpu.strided_load %arg8[%c18_83, %c0_84] {strides = array<i32: 2, 1>} : memref<32x18xf32, #tpu.memory_space<vmem>>, vector<7x18xf32>
    %109 = vector.broadcast %107 : f32 to vector<7x18xf32>
    %110 = arith.mulf %109, %108 : vector<7x18xf32>
    %111 = arith.addf %106, %110 : vector<7x18xf32>
    %c15 = arith.constant 15 : index
    %112 = memref.load %arg1[%c15] : memref<56xf32, #tpu.memory_space<smem>>
    %113 = vector.broadcast %112 : f32 to vector<7x18xf32>
    %114 = arith.addf %111, %113 : vector<7x18xf32>
    %c10_85 = arith.constant 10 : index
    %c0_86 = arith.constant 0 : index
    %115 = vector.load %arg9[%c10_85, %c0_86] : memref<18x18xf32, #tpu.memory_space<vmem>>, vector<7x18xf32>
    tpu.vector_store %arg9[%c10_85, %c0_86], %114 {strides = array<i32>} : memref<18x18xf32, #tpu.memory_space<vmem>>, vector<7x18xf32>,
    %c0_87 = arith.constant 0 : index
    %c0_88 = arith.constant 0 : index
    %116 = vector.load %arg9[%c0_87, %c0_88] : memref<18x18xf32, #tpu.memory_space<vmem>>, vector<7x18xf32>
    %c0_89 = arith.constant 0 : index
    %c0_90 = arith.constant 0 : index
    %c0_91 = arith.constant 0 : index
    %c0_92 = arith.constant 0 : index
    %117 = vector.load %arg4[%c0_89, %c0_90, %c0_91, %c0_92] : memref<2x6x18x2xf32, #tpu.memory_space<vmem>>, vector<1x1x18x2xf32>
    %118 = vector.shape_cast %117 : vector<1x1x18x2xf32> to vector<18x2xf32>
    %cst_93 = arith.constant dense<0.000000e+00> : vector<7x2xf32>
    %119 = tpu.matmul %116, %118, %cst_93 {dimension_numbers = #tpu.dot_dimension_numbers<[1], [0], [0], [1], [0, 0, 1, 1], [], []>} : vector<7x18xf32>, vector<18x2xf32>, vector<7x2xf32> -> vector<7x2xf32>
    %c1_94 = arith.constant 1 : index
    %c0_95 = arith.constant 0 : index
    %120 = vector.load %arg9[%c1_94, %c0_95] : memref<18x18xf32, #tpu.memory_space<vmem>>, vector<7x18xf32>
    %c0_96 = arith.constant 0 : index
    %c1_97 = arith.constant 1 : index
    %c0_98 = arith.constant 0 : index
    %c0_99 = arith.constant 0 : index
    %121 = vector.load %arg4[%c0_96, %c1_97, %c0_98, %c0_99] : memref<2x6x18x2xf32, #tpu.memory_space<vmem>>, vector<1x1x18x2xf32>
    %122 = vector.shape_cast %121 : vector<1x1x18x2xf32> to vector<18x2xf32>
    %cst_100 = arith.constant dense<0.000000e+00> : vector<7x2xf32>
    %123 = tpu.matmul %120, %122, %cst_100 {dimension_numbers = #tpu.dot_dimension_numbers<[1], [0], [0], [1], [0, 0, 1, 1], [], []>} : vector<7x18xf32>, vector<18x2xf32>, vector<7x2xf32> -> vector<7x2xf32>
    %124 = arith.addf %119, %123 : vector<7x2xf32>
    %c2_101 = arith.constant 2 : index
    %c0_102 = arith.constant 0 : index
    %125 = vector.load %arg9[%c2_101, %c0_102] : memref<18x18xf32, #tpu.memory_space<vmem>>, vector<7x18xf32>
    %c0_103 = arith.constant 0 : index
    %c2_104 = arith.constant 2 : index
    %c0_105 = arith.constant 0 : index
    %c0_106 = arith.constant 0 : index
    %126 = vector.load %arg4[%c0_103, %c2_104, %c0_105, %c0_106] : memref<2x6x18x2xf32, #tpu.memory_space<vmem>>, vector<1x1x18x2xf32>
    %127 = vector.shape_cast %126 : vector<1x1x18x2xf32> to vector<18x2xf32>
    %cst_107 = arith.constant dense<0.000000e+00> : vector<7x2xf32>
    %128 = tpu.matmul %125, %127, %cst_107 {dimension_numbers = #tpu.dot_dimension_numbers<[1], [0], [0], [1], [0, 0, 1, 1], [], []>} : vector<7x18xf32>, vector<18x2xf32>, vector<7x2xf32> -> vector<7x2xf32>
    %129 = arith.addf %124, %128 : vector<7x2xf32>
    %c9_108 = arith.constant 9 : index
    %c0_109 = arith.constant 0 : index
    %130 = vector.load %arg9[%c9_108, %c0_109] : memref<18x18xf32, #tpu.memory_space<vmem>>, vector<7x18xf32>
    %c0_110 = arith.constant 0 : index
    %c3_111 = arith.constant 3 : index
    %c0_112 = arith.constant 0 : index
    %c0_113 = arith.constant 0 : index
    %131 = vector.load %arg4[%c0_110, %c3_111, %c0_112, %c0_113] : memref<2x6x18x2xf32, #tpu.memory_space<vmem>>, vector<1x1x18x2xf32>
    %132 = vector.shape_cast %131 : vector<1x1x18x2xf32> to vector<18x2xf32>
    %cst_114 = arith.constant dense<0.000000e+00> : vector<7x2xf32>
    %133 = tpu.matmul %130, %132, %cst_114 {dimension_numbers = #tpu.dot_dimension_numbers<[1], [0], [0], [1], [0, 0, 1, 1], [], []>} : vector<7x18xf32>, vector<18x2xf32>, vector<7x2xf32> -> vector<7x2xf32>
    %134 = arith.addf %129, %133 : vector<7x2xf32>
    %c10_115 = arith.constant 10 : index
    %c0_116 = arith.constant 0 : index
    %135 = vector.load %arg9[%c10_115, %c0_116] : memref<18x18xf32, #tpu.memory_space<vmem>>, vector<7x18xf32>
    %c0_117 = arith.constant 0 : index
    %c4_118 = arith.constant 4 : index
    %c0_119 = arith.constant 0 : index
    %c0_120 = arith.constant 0 : index
    %136 = vector.load %arg4[%c0_117, %c4_118, %c0_119, %c0_120] : memref<2x6x18x2xf32, #tpu.memory_space<vmem>>, vector<1x1x18x2xf32>
    %137 = vector.shape_cast %136 : vector<1x1x18x2xf32> to vector<18x2xf32>
    %cst_121 = arith.constant dense<0.000000e+00> : vector<7x2xf32>
    %138 = tpu.matmul %135, %137, %cst_121 {dimension_numbers = #tpu.dot_dimension_numbers<[1], [0], [0], [1], [0, 0, 1, 1], [], []>} : vector<7x18xf32>, vector<18x2xf32>, vector<7x2xf32> -> vector<7x2xf32>
    %139 = arith.addf %134, %138 : vector<7x2xf32>
    %c11_122 = arith.constant 11 : index
    %c0_123 = arith.constant 0 : index
    %140 = vector.load %arg9[%c11_122, %c0_123] : memref<18x18xf32, #tpu.memory_space<vmem>>, vector<7x18xf32>
    %c0_124 = arith.constant 0 : index
    %c5_125 = arith.constant 5 : index
    %c0_126 = arith.constant 0 : index
    %c0_127 = arith.constant 0 : index
    %141 = vector.load %arg4[%c0_124, %c5_125, %c0_126, %c0_127] : memref<2x6x18x2xf32, #tpu.memory_space<vmem>>, vector<1x1x18x2xf32>
    %142 = vector.shape_cast %141 : vector<1x1x18x2xf32> to vector<18x2xf32>
    %cst_128 = arith.constant dense<0.000000e+00> : vector<7x2xf32>
    %143 = tpu.matmul %140, %142, %cst_128 {dimension_numbers = #tpu.dot_dimension_numbers<[1], [0], [0], [1], [0, 0, 1, 1], [], []>} : vector<7x18xf32>, vector<18x2xf32>, vector<7x2xf32> -> vector<7x2xf32>
    %144 = arith.addf %139, %143 : vector<7x2xf32>
    %c16_129 = arith.constant 16 : index
    %145 = memref.load %arg1[%c16_129] : memref<56xf32, #tpu.memory_space<smem>>
    %146 = vector.broadcast %145 : f32 to vector<7x2xf32>
    %147 = arith.addf %144, %146 : vector<7x2xf32>
    %cst_130 = arith.constant 0.000000e+00 : f32
    %148 = vector.broadcast %cst_130 : f32 to vector<7x2xf32>
    %149 = arith.maximumf %147, %148 : vector<7x2xf32>
    %c1_131 = arith.constant 1 : index
    %c0_132 = arith.constant 0 : index
    %150 = vector.load %arg10[%c1_131, %c0_132] : memref<18x2xf32, #tpu.memory_space<vmem>>, vector<7x2xf32>
    tpu.vector_store %arg10[%c1_131, %c0_132], %149 {strides = array<i32>} : memref<18x2xf32, #tpu.memory_space<vmem>>, vector<7x2xf32>,
    %c0_133 = arith.constant 0 : index
    %c0_134 = arith.constant 0 : index
    %151 = vector.load %arg9[%c0_133, %c0_134] : memref<18x18xf32, #tpu.memory_space<vmem>>, vector<7x18xf32>
    %c1_135 = arith.constant 1 : index
    %c0_136 = arith.constant 0 : index
    %c0_137 = arith.constant 0 : index
    %c0_138 = arith.constant 0 : index
    %152 = vector.load %arg4[%c1_135, %c0_136, %c0_137, %c0_138] : memref<2x6x18x2xf32, #tpu.memory_space<vmem>>, vector<1x1x18x2xf32>
    %153 = vector.shape_cast %152 : vector<1x1x18x2xf32> to vector<18x2xf32>
    %cst_139 = arith.constant dense<0.000000e+00> : vector<7x2xf32>
    %154 = tpu.matmul %151, %153, %cst_139 {dimension_numbers = #tpu.dot_dimension_numbers<[1], [0], [0], [1], [0, 0, 1, 1], [], []>} : vector<7x18xf32>, vector<18x2xf32>, vector<7x2xf32> -> vector<7x2xf32>
    %c1_140 = arith.constant 1 : index
    %c0_141 = arith.constant 0 : index
    %155 = vector.load %arg9[%c1_140, %c0_141] : memref<18x18xf32, #tpu.memory_space<vmem>>, vector<7x18xf32>
    %c1_142 = arith.constant 1 : index
    %c1_143 = arith.constant 1 : index
    %c0_144 = arith.constant 0 : index
    %c0_145 = arith.constant 0 : index
    %156 = vector.load %arg4[%c1_142, %c1_143, %c0_144, %c0_145] : memref<2x6x18x2xf32, #tpu.memory_space<vmem>>, vector<1x1x18x2xf32>
    %157 = vector.shape_cast %156 : vector<1x1x18x2xf32> to vector<18x2xf32>
    %cst_146 = arith.constant dense<0.000000e+00> : vector<7x2xf32>
    %158 = tpu.matmul %155, %157, %cst_146 {dimension_numbers = #tpu.dot_dimension_numbers<[1], [0], [0], [1], [0, 0, 1, 1], [], []>} : vector<7x18xf32>, vector<18x2xf32>, vector<7x2xf32> -> vector<7x2xf32>
    %159 = arith.addf %154, %158 : vector<7x2xf32>
    %c2_147 = arith.constant 2 : index
    %c0_148 = arith.constant 0 : index
    %160 = vector.load %arg9[%c2_147, %c0_148] : memref<18x18xf32, #tpu.memory_space<vmem>>, vector<7x18xf32>
    %c1_149 = arith.constant 1 : index
    %c2_150 = arith.constant 2 : index
    %c0_151 = arith.constant 0 : index
    %c0_152 = arith.constant 0 : index
    %161 = vector.load %arg4[%c1_149, %c2_150, %c0_151, %c0_152] : memref<2x6x18x2xf32, #tpu.memory_space<vmem>>, vector<1x1x18x2xf32>
    %162 = vector.shape_cast %161 : vector<1x1x18x2xf32> to vector<18x2xf32>
    %cst_153 = arith.constant dense<0.000000e+00> : vector<7x2xf32>
    %163 = tpu.matmul %160, %162, %cst_153 {dimension_numbers = #tpu.dot_dimension_numbers<[1], [0], [0], [1], [0, 0, 1, 1], [], []>} : vector<7x18xf32>, vector<18x2xf32>, vector<7x2xf32> -> vector<7x2xf32>
    %164 = arith.addf %159, %163 : vector<7x2xf32>
    %c9_154 = arith.constant 9 : index
    %c0_155 = arith.constant 0 : index
    %165 = vector.load %arg9[%c9_154, %c0_155] : memref<18x18xf32, #tpu.memory_space<vmem>>, vector<7x18xf32>
    %c1_156 = arith.constant 1 : index
    %c3_157 = arith.constant 3 : index
    %c0_158 = arith.constant 0 : index
    %c0_159 = arith.constant 0 : index
    %166 = vector.load %arg4[%c1_156, %c3_157, %c0_158, %c0_159] : memref<2x6x18x2xf32, #tpu.memory_space<vmem>>, vector<1x1x18x2xf32>
    %167 = vector.shape_cast %166 : vector<1x1x18x2xf32> to vector<18x2xf32>
    %cst_160 = arith.constant dense<0.000000e+00> : vector<7x2xf32>
    %168 = tpu.matmul %165, %167, %cst_160 {dimension_numbers = #tpu.dot_dimension_numbers<[1], [0], [0], [1], [0, 0, 1, 1], [], []>} : vector<7x18xf32>, vector<18x2xf32>, vector<7x2xf32> -> vector<7x2xf32>
    %169 = arith.addf %164, %168 : vector<7x2xf32>
    %c10_161 = arith.constant 10 : index
    %c0_162 = arith.constant 0 : index
    %170 = vector.load %arg9[%c10_161, %c0_162] : memref<18x18xf32, #tpu.memory_space<vmem>>, vector<7x18xf32>
    %c1_163 = arith.constant 1 : index
    %c4_164 = arith.constant 4 : index
    %c0_165 = arith.constant 0 : index
    %c0_166 = arith.constant 0 : index
    %171 = vector.load %arg4[%c1_163, %c4_164, %c0_165, %c0_166] : memref<2x6x18x2xf32, #tpu.memory_space<vmem>>, vector<1x1x18x2xf32>
    %172 = vector.shape_cast %171 : vector<1x1x18x2xf32> to vector<18x2xf32>
    %cst_167 = arith.constant dense<0.000000e+00> : vector<7x2xf32>
    %173 = tpu.matmul %170, %172, %cst_167 {dimension_numbers = #tpu.dot_dimension_numbers<[1], [0], [0], [1], [0, 0, 1, 1], [], []>} : vector<7x18xf32>, vector<18x2xf32>, vector<7x2xf32> -> vector<7x2xf32>
    %174 = arith.addf %169, %173 : vector<7x2xf32>
    %c11_168 = arith.constant 11 : index
    %c0_169 = arith.constant 0 : index
    %175 = vector.load %arg9[%c11_168, %c0_169] : memref<18x18xf32, #tpu.memory_space<vmem>>, vector<7x18xf32>
    %c1_170 = arith.constant 1 : index
    %c5_171 = arith.constant 5 : index
    %c0_172 = arith.constant 0 : index
    %c0_173 = arith.constant 0 : index
    %176 = vector.load %arg4[%c1_170, %c5_171, %c0_172, %c0_173] : memref<2x6x18x2xf32, #tpu.memory_space<vmem>>, vector<1x1x18x2xf32>
    %177 = vector.shape_cast %176 : vector<1x1x18x2xf32> to vector<18x2xf32>
    %cst_174 = arith.constant dense<0.000000e+00> : vector<7x2xf32>
    %178 = tpu.matmul %175, %177, %cst_174 {dimension_numbers = #tpu.dot_dimension_numbers<[1], [0], [0], [1], [0, 0, 1, 1], [], []>} : vector<7x18xf32>, vector<18x2xf32>, vector<7x2xf32> -> vector<7x2xf32>
    %179 = arith.addf %174, %178 : vector<7x2xf32>
    %c17_175 = arith.constant 17 : index
    %180 = memref.load %arg1[%c17_175] : memref<56xf32, #tpu.memory_space<smem>>
    %181 = vector.broadcast %180 : f32 to vector<7x2xf32>
    %182 = arith.addf %179, %181 : vector<7x2xf32>
    %cst_176 = arith.constant 0.000000e+00 : f32
    %183 = vector.broadcast %cst_176 : f32 to vector<7x2xf32>
    %184 = arith.maximumf %182, %183 : vector<7x2xf32>
    %c10_177 = arith.constant 10 : index
    %c0_178 = arith.constant 0 : index
    %185 = vector.load %arg10[%c10_177, %c0_178] : memref<18x2xf32, #tpu.memory_space<vmem>>, vector<7x2xf32>
    tpu.vector_store %arg10[%c10_177, %c0_178], %184 {strides = array<i32>} : memref<18x2xf32, #tpu.memory_space<vmem>>, vector<7x2xf32>,
    %c18_179 = arith.constant 18 : index
    %186 = memref.load %arg1[%c18_179] : memref<56xf32, #tpu.memory_space<smem>>
    %c0_180 = arith.constant 0 : index
    %c0_181 = arith.constant 0 : index
    %187 = tpu.strided_load %arg10[%c0_180, %c0_181] {strides = array<i32: 2, 1>} : memref<18x2xf32, #tpu.memory_space<vmem>>, vector<4x2xf32>
    %188 = vector.broadcast %186 : f32 to vector<4x2xf32>
    %189 = arith.mulf %188, %187 : vector<4x2xf32>
    %c19 = arith.constant 19 : index
    %190 = memref.load %arg1[%c19] : memref<56xf32, #tpu.memory_space<smem>>
    %c1_182 = arith.constant 1 : index
    %c0_183 = arith.constant 0 : index
    %191 = tpu.strided_load %arg10[%c1_182, %c0_183] {strides = array<i32: 2, 1>} : memref<18x2xf32, #tpu.memory_space<vmem>>, vector<4x2xf32>
    %192 = vector.broadcast %190 : f32 to vector<4x2xf32>
    %193 = arith.mulf %192, %191 : vector<4x2xf32>
    %194 = arith.addf %189, %193 : vector<4x2xf32>
    %c20 = arith.constant 20 : index
    %195 = memref.load %arg1[%c20] : memref<56xf32, #tpu.memory_space<smem>>
    %c2_184 = arith.constant 2 : index
    %c0_185 = arith.constant 0 : index
    %196 = tpu.strided_load %arg10[%c2_184, %c0_185] {strides = array<i32: 2, 1>} : memref<18x2xf32, #tpu.memory_space<vmem>>, vector<4x2xf32>
    %197 = vector.broadcast %195 : f32 to vector<4x2xf32>
    %198 = arith.mulf %197, %196 : vector<4x2xf32>
    %199 = arith.addf %194, %198 : vector<4x2xf32>
    %c21 = arith.constant 21 : index
    %200 = memref.load %arg1[%c21] : memref<56xf32, #tpu.memory_space<smem>>
    %c9_186 = arith.constant 9 : index
    %c0_187 = arith.constant 0 : index
    %201 = tpu.strided_load %arg10[%c9_186, %c0_187] {strides = array<i32: 2, 1>} : memref<18x2xf32, #tpu.memory_space<vmem>>, vector<4x2xf32>
    %202 = vector.broadcast %200 : f32 to vector<4x2xf32>
    %203 = arith.mulf %202, %201 : vector<4x2xf32>
    %204 = arith.addf %199, %203 : vector<4x2xf32>
    %c22 = arith.constant 22 : index
    %205 = memref.load %arg1[%c22] : memref<56xf32, #tpu.memory_space<smem>>
    %c10_188 = arith.constant 10 : index
    %c0_189 = arith.constant 0 : index
    %206 = tpu.strided_load %arg10[%c10_188, %c0_189] {strides = array<i32: 2, 1>} : memref<18x2xf32, #tpu.memory_space<vmem>>, vector<4x2xf32>
    %207 = vector.broadcast %205 : f32 to vector<4x2xf32>
    %208 = arith.mulf %207, %206 : vector<4x2xf32>
    %209 = arith.addf %204, %208 : vector<4x2xf32>
    %c23 = arith.constant 23 : index
    %210 = memref.load %arg1[%c23] : memref<56xf32, #tpu.memory_space<smem>>
    %c11_190 = arith.constant 11 : index
    %c0_191 = arith.constant 0 : index
    %211 = tpu.strided_load %arg10[%c11_190, %c0_191] {strides = array<i32: 2, 1>} : memref<18x2xf32, #tpu.memory_space<vmem>>, vector<4x2xf32>
    %212 = vector.broadcast %210 : f32 to vector<4x2xf32>
    %213 = arith.mulf %212, %211 : vector<4x2xf32>
    %214 = arith.addf %209, %213 : vector<4x2xf32>
    %c30 = arith.constant 30 : index
    %215 = memref.load %arg1[%c30] : memref<56xf32, #tpu.memory_space<smem>>
    %216 = vector.broadcast %215 : f32 to vector<4x2xf32>
    %217 = arith.addf %214, %216 : vector<4x2xf32>
    %c1_192 = arith.constant 1 : index
    %c0_193 = arith.constant 0 : index
    %218 = vector.load %arg11[%c1_192, %c0_193] : memref<12x2xf32, #tpu.memory_space<vmem>>, vector<4x2xf32>
    tpu.vector_store %arg11[%c1_192, %c0_193], %217 {strides = array<i32>} : memref<12x2xf32, #tpu.memory_space<vmem>>, vector<4x2xf32>,
    %c24 = arith.constant 24 : index
    %219 = memref.load %arg1[%c24] : memref<56xf32, #tpu.memory_space<smem>>
    %c0_194 = arith.constant 0 : index
    %c0_195 = arith.constant 0 : index
    %220 = tpu.strided_load %arg10[%c0_194, %c0_195] {strides = array<i32: 2, 1>} : memref<18x2xf32, #tpu.memory_space<vmem>>, vector<4x2xf32>
    %221 = vector.broadcast %219 : f32 to vector<4x2xf32>
    %222 = arith.mulf %221, %220 : vector<4x2xf32>
    %c25 = arith.constant 25 : index
    %223 = memref.load %arg1[%c25] : memref<56xf32, #tpu.memory_space<smem>>
    %c1_196 = arith.constant 1 : index
    %c0_197 = arith.constant 0 : index
    %224 = tpu.strided_load %arg10[%c1_196, %c0_197] {strides = array<i32: 2, 1>} : memref<18x2xf32, #tpu.memory_space<vmem>>, vector<4x2xf32>
    %225 = vector.broadcast %223 : f32 to vector<4x2xf32>
    %226 = arith.mulf %225, %224 : vector<4x2xf32>
    %227 = arith.addf %222, %226 : vector<4x2xf32>
    %c26 = arith.constant 26 : index
    %228 = memref.load %arg1[%c26] : memref<56xf32, #tpu.memory_space<smem>>
    %c2_198 = arith.constant 2 : index
    %c0_199 = arith.constant 0 : index
    %229 = tpu.strided_load %arg10[%c2_198, %c0_199] {strides = array<i32: 2, 1>} : memref<18x2xf32, #tpu.memory_space<vmem>>, vector<4x2xf32>
    %230 = vector.broadcast %228 : f32 to vector<4x2xf32>
    %231 = arith.mulf %230, %229 : vector<4x2xf32>
    %232 = arith.addf %227, %231 : vector<4x2xf32>
    %c27 = arith.constant 27 : index
    %233 = memref.load %arg1[%c27] : memref<56xf32, #tpu.memory_space<smem>>
    %c9_200 = arith.constant 9 : index
    %c0_201 = arith.constant 0 : index
    %234 = tpu.strided_load %arg10[%c9_200, %c0_201] {strides = array<i32: 2, 1>} : memref<18x2xf32, #tpu.memory_space<vmem>>, vector<4x2xf32>
    %235 = vector.broadcast %233 : f32 to vector<4x2xf32>
    %236 = arith.mulf %235, %234 : vector<4x2xf32>
    %237 = arith.addf %232, %236 : vector<4x2xf32>
    %c28 = arith.constant 28 : index
    %238 = memref.load %arg1[%c28] : memref<56xf32, #tpu.memory_space<smem>>
    %c10_202 = arith.constant 10 : index
    %c0_203 = arith.constant 0 : index
    %239 = tpu.strided_load %arg10[%c10_202, %c0_203] {strides = array<i32: 2, 1>} : memref<18x2xf32, #tpu.memory_space<vmem>>, vector<4x2xf32>
    %240 = vector.broadcast %238 : f32 to vector<4x2xf32>
    %241 = arith.mulf %240, %239 : vector<4x2xf32>
    %242 = arith.addf %237, %241 : vector<4x2xf32>
    %c29 = arith.constant 29 : index
    %243 = memref.load %arg1[%c29] : memref<56xf32, #tpu.memory_space<smem>>
    %c11_204 = arith.constant 11 : index
    %c0_205 = arith.constant 0 : index
    %244 = tpu.strided_load %arg10[%c11_204, %c0_205] {strides = array<i32: 2, 1>} : memref<18x2xf32, #tpu.memory_space<vmem>>, vector<4x2xf32>
    %245 = vector.broadcast %243 : f32 to vector<4x2xf32>
    %246 = arith.mulf %245, %244 : vector<4x2xf32>
    %247 = arith.addf %242, %246 : vector<4x2xf32>
    %c31 = arith.constant 31 : index
    %248 = memref.load %arg1[%c31] : memref<56xf32, #tpu.memory_space<smem>>
    %249 = vector.broadcast %248 : f32 to vector<4x2xf32>
    %250 = arith.addf %247, %249 : vector<4x2xf32>
    %c7_206 = arith.constant 7 : index
    %c0_207 = arith.constant 0 : index
    %251 = vector.load %arg11[%c7_206, %c0_207] : memref<12x2xf32, #tpu.memory_space<vmem>>, vector<4x2xf32>
    tpu.vector_store %arg11[%c7_206, %c0_207], %250 {strides = array<i32>} : memref<12x2xf32, #tpu.memory_space<vmem>>, vector<4x2xf32>,
    %c32 = arith.constant 32 : index
    %252 = memref.load %arg1[%c32] : memref<56xf32, #tpu.memory_space<smem>>
    %c0_208 = arith.constant 0 : index
    %c0_209 = arith.constant 0 : index
    %253 = vector.load %arg11[%c0_208, %c0_209] : memref<12x2xf32, #tpu.memory_space<vmem>>, vector<4x2xf32>
    %254 = vector.broadcast %252 : f32 to vector<4x2xf32>
    %255 = arith.mulf %254, %253 : vector<4x2xf32>
    %c33 = arith.constant 33 : index
    %256 = memref.load %arg1[%c33] : memref<56xf32, #tpu.memory_space<smem>>
    %c1_210 = arith.constant 1 : index
    %c0_211 = arith.constant 0 : index
    %257 = vector.load %arg11[%c1_210, %c0_211] : memref<12x2xf32, #tpu.memory_space<vmem>>, vector<4x2xf32>
    %258 = vector.broadcast %256 : f32 to vector<4x2xf32>
    %259 = arith.mulf %258, %257 : vector<4x2xf32>
    %260 = arith.addf %255, %259 : vector<4x2xf32>
    %c34 = arith.constant 34 : index
    %261 = memref.load %arg1[%c34] : memref<56xf32, #tpu.memory_space<smem>>
    %c2_212 = arith.constant 2 : index
    %c0_213 = arith.constant 0 : index
    %262 = vector.load %arg11[%c2_212, %c0_213] : memref<12x2xf32, #tpu.memory_space<vmem>>, vector<4x2xf32>
    %263 = vector.broadcast %261 : f32 to vector<4x2xf32>
    %264 = arith.mulf %263, %262 : vector<4x2xf32>
    %265 = arith.addf %260, %264 : vector<4x2xf32>
    %c35 = arith.constant 35 : index
    %266 = memref.load %arg1[%c35] : memref<56xf32, #tpu.memory_space<smem>>
    %c6_214 = arith.constant 6 : index
    %c0_215 = arith.constant 0 : index
    %267 = vector.load %arg11[%c6_214, %c0_215] : memref<12x2xf32, #tpu.memory_space<vmem>>, vector<4x2xf32>
    %268 = vector.broadcast %266 : f32 to vector<4x2xf32>
    %269 = arith.mulf %268, %267 : vector<4x2xf32>
    %270 = arith.addf %265, %269 : vector<4x2xf32>
    %c36 = arith.constant 36 : index
    %271 = memref.load %arg1[%c36] : memref<56xf32, #tpu.memory_space<smem>>
    %c7_216 = arith.constant 7 : index
    %c0_217 = arith.constant 0 : index
    %272 = vector.load %arg11[%c7_216, %c0_217] : memref<12x2xf32, #tpu.memory_space<vmem>>, vector<4x2xf32>
    %273 = vector.broadcast %271 : f32 to vector<4x2xf32>
    %274 = arith.mulf %273, %272 : vector<4x2xf32>
    %275 = arith.addf %270, %274 : vector<4x2xf32>
    %c37 = arith.constant 37 : index
    %276 = memref.load %arg1[%c37] : memref<56xf32, #tpu.memory_space<smem>>
    %c8_218 = arith.constant 8 : index
    %c0_219 = arith.constant 0 : index
    %277 = vector.load %arg11[%c8_218, %c0_219] : memref<12x2xf32, #tpu.memory_space<vmem>>, vector<4x2xf32>
    %278 = vector.broadcast %276 : f32 to vector<4x2xf32>
    %279 = arith.mulf %278, %277 : vector<4x2xf32>
    %280 = arith.addf %275, %279 : vector<4x2xf32>
    %c44 = arith.constant 44 : index
    %281 = memref.load %arg1[%c44] : memref<56xf32, #tpu.memory_space<smem>>
    %282 = vector.broadcast %281 : f32 to vector<4x2xf32>
    %283 = arith.addf %280, %282 : vector<4x2xf32>
    %cst_220 = arith.constant 0.000000e+00 : f32
    %284 = vector.broadcast %cst_220 : f32 to vector<4x2xf32>
    %285 = arith.maximumf %283, %284 : vector<4x2xf32>
    %c1_221 = arith.constant 1 : index
    %c0_222 = arith.constant 0 : index
    %286 = vector.load %arg12[%c1_221, %c0_222] : memref<12x2xf32, #tpu.memory_space<vmem>>, vector<4x2xf32>
    tpu.vector_store %arg12[%c1_221, %c0_222], %285 {strides = array<i32>} : memref<12x2xf32, #tpu.memory_space<vmem>>, vector<4x2xf32>,
    %c38 = arith.constant 38 : index
    %287 = memref.load %arg1[%c38] : memref<56xf32, #tpu.memory_space<smem>>
    %c0_223 = arith.constant 0 : index
    %c0_224 = arith.constant 0 : index
    %288 = vector.load %arg11[%c0_223, %c0_224] : memref<12x2xf32, #tpu.memory_space<vmem>>, vector<4x2xf32>
    %289 = vector.broadcast %287 : f32 to vector<4x2xf32>
    %290 = arith.mulf %289, %288 : vector<4x2xf32>
    %c39 = arith.constant 39 : index
    %291 = memref.load %arg1[%c39] : memref<56xf32, #tpu.memory_space<smem>>
    %c1_225 = arith.constant 1 : index
    %c0_226 = arith.constant 0 : index
    %292 = vector.load %arg11[%c1_225, %c0_226] : memref<12x2xf32, #tpu.memory_space<vmem>>, vector<4x2xf32>
    %293 = vector.broadcast %291 : f32 to vector<4x2xf32>
    %294 = arith.mulf %293, %292 : vector<4x2xf32>
    %295 = arith.addf %290, %294 : vector<4x2xf32>
    %c40 = arith.constant 40 : index
    %296 = memref.load %arg1[%c40] : memref<56xf32, #tpu.memory_space<smem>>
    %c2_227 = arith.constant 2 : index
    %c0_228 = arith.constant 0 : index
    %297 = vector.load %arg11[%c2_227, %c0_228] : memref<12x2xf32, #tpu.memory_space<vmem>>, vector<4x2xf32>
    %298 = vector.broadcast %296 : f32 to vector<4x2xf32>
    %299 = arith.mulf %298, %297 : vector<4x2xf32>
    %300 = arith.addf %295, %299 : vector<4x2xf32>
    %c41 = arith.constant 41 : index
    %301 = memref.load %arg1[%c41] : memref<56xf32, #tpu.memory_space<smem>>
    %c6_229 = arith.constant 6 : index
    %c0_230 = arith.constant 0 : index
    %302 = vector.load %arg11[%c6_229, %c0_230] : memref<12x2xf32, #tpu.memory_space<vmem>>, vector<4x2xf32>
    %303 = vector.broadcast %301 : f32 to vector<4x2xf32>
    %304 = arith.mulf %303, %302 : vector<4x2xf32>
    %305 = arith.addf %300, %304 : vector<4x2xf32>
    %c42 = arith.constant 42 : index
    %306 = memref.load %arg1[%c42] : memref<56xf32, #tpu.memory_space<smem>>
    %c7_231 = arith.constant 7 : index
    %c0_232 = arith.constant 0 : index
    %307 = vector.load %arg11[%c7_231, %c0_232] : memref<12x2xf32, #tpu.memory_space<vmem>>, vector<4x2xf32>
    %308 = vector.broadcast %306 : f32 to vector<4x2xf32>
    %309 = arith.mulf %308, %307 : vector<4x2xf32>
    %310 = arith.addf %305, %309 : vector<4x2xf32>
    %c43 = arith.constant 43 : index
    %311 = memref.load %arg1[%c43] : memref<56xf32, #tpu.memory_space<smem>>
    %c8_233 = arith.constant 8 : index
    %c0_234 = arith.constant 0 : index
    %312 = vector.load %arg11[%c8_233, %c0_234] : memref<12x2xf32, #tpu.memory_space<vmem>>, vector<4x2xf32>
    %313 = vector.broadcast %311 : f32 to vector<4x2xf32>
    %314 = arith.mulf %313, %312 : vector<4x2xf32>
    %315 = arith.addf %310, %314 : vector<4x2xf32>
    %c45 = arith.constant 45 : index
    %316 = memref.load %arg1[%c45] : memref<56xf32, #tpu.memory_space<smem>>
    %317 = vector.broadcast %316 : f32 to vector<4x2xf32>
    %318 = arith.addf %315, %317 : vector<4x2xf32>
    %cst_235 = arith.constant 0.000000e+00 : f32
    %319 = vector.broadcast %cst_235 : f32 to vector<4x2xf32>
    %320 = arith.maximumf %318, %319 : vector<4x2xf32>
    %c7_236 = arith.constant 7 : index
    %c0_237 = arith.constant 0 : index
    %321 = vector.load %arg12[%c7_236, %c0_237] : memref<12x2xf32, #tpu.memory_space<vmem>>, vector<4x2xf32>
    tpu.vector_store %arg12[%c7_236, %c0_237], %320 {strides = array<i32>} : memref<12x2xf32, #tpu.memory_space<vmem>>, vector<4x2xf32>,
    %c46 = arith.constant 46 : index
    %322 = memref.load %arg1[%c46] : memref<56xf32, #tpu.memory_space<smem>>
    %c0_238 = arith.constant 0 : index
    %c0_239 = arith.constant 0 : index
    %323 = tpu.strided_load %arg12[%c0_238, %c0_239] {strides = array<i32: 2, 1>} : memref<12x2xf32, #tpu.memory_space<vmem>>, vector<3x2xf32>
    %324 = vector.broadcast %322 : f32 to vector<3x2xf32>
    %325 = arith.mulf %324, %323 : vector<3x2xf32>
    %c47 = arith.constant 47 : index
    %326 = memref.load %arg1[%c47] : memref<56xf32, #tpu.memory_space<smem>>
    %c1_240 = arith.constant 1 : index
    %c0_241 = arith.constant 0 : index
    %327 = tpu.strided_load %arg12[%c1_240, %c0_241] {strides = array<i32: 2, 1>} : memref<12x2xf32, #tpu.memory_space<vmem>>, vector<3x2xf32>
    %328 = vector.broadcast %326 : f32 to vector<3x2xf32>
    %329 = arith.mulf %328, %327 : vector<3x2xf32>
    %330 = arith.addf %325, %329 : vector<3x2xf32>
    %c48 = arith.constant 48 : index
    %331 = memref.load %arg1[%c48] : memref<56xf32, #tpu.memory_space<smem>>
    %c6_242 = arith.constant 6 : index
    %c0_243 = arith.constant 0 : index
    %332 = tpu.strided_load %arg12[%c6_242, %c0_243] {strides = array<i32: 2, 1>} : memref<12x2xf32, #tpu.memory_space<vmem>>, vector<3x2xf32>
    %333 = vector.broadcast %331 : f32 to vector<3x2xf32>
    %334 = arith.mulf %333, %332 : vector<3x2xf32>
    %335 = arith.addf %330, %334 : vector<3x2xf32>
    %c49 = arith.constant 49 : index
    %336 = memref.load %arg1[%c49] : memref<56xf32, #tpu.memory_space<smem>>
    %c7_244 = arith.constant 7 : index
    %c0_245 = arith.constant 0 : index
    %337 = tpu.strided_load %arg12[%c7_244, %c0_245] {strides = array<i32: 2, 1>} : memref<12x2xf32, #tpu.memory_space<vmem>>, vector<3x2xf32>
    %338 = vector.broadcast %336 : f32 to vector<3x2xf32>
    %339 = arith.mulf %338, %337 : vector<3x2xf32>
    %340 = arith.addf %335, %339 : vector<3x2xf32>
    %c54 = arith.constant 54 : index
    %341 = memref.load %arg1[%c54] : memref<56xf32, #tpu.memory_space<smem>>
    %342 = vector.broadcast %341 : f32 to vector<3x2xf32>
    %343 = arith.addf %340, %342 : vector<3x2xf32>
    %cst_246 = arith.constant 0.000000e+00 : f32
    %344 = vector.broadcast %cst_246 : f32 to vector<3x2xf32>
    %345 = arith.maximumf %343, %344 : vector<3x2xf32>
    %c0_247 = arith.constant 0 : index
    %c0_248 = arith.constant 0 : index
    %346 = vector.load %arg13[%c0_247, %c0_248] : memref<6x2xf32, #tpu.memory_space<vmem>>, vector<3x2xf32>
    tpu.vector_store %arg13[%c0_247, %c0_248], %345 {strides = array<i32>} : memref<6x2xf32, #tpu.memory_space<vmem>>, vector<3x2xf32>,
    %c50 = arith.constant 50 : index
    %347 = memref.load %arg1[%c50] : memref<56xf32, #tpu.memory_space<smem>>
    %c0_249 = arith.constant 0 : index
    %c0_250 = arith.constant 0 : index
    %348 = tpu.strided_load %arg12[%c0_249, %c0_250] {strides = array<i32: 2, 1>} : memref<12x2xf32, #tpu.memory_space<vmem>>, vector<3x2xf32>
    %349 = vector.broadcast %347 : f32 to vector<3x2xf32>
    %350 = arith.mulf %349, %348 : vector<3x2xf32>
    %c51 = arith.constant 51 : index
    %351 = memref.load %arg1[%c51] : memref<56xf32, #tpu.memory_space<smem>>
    %c1_251 = arith.constant 1 : index
    %c0_252 = arith.constant 0 : index
    %352 = tpu.strided_load %arg12[%c1_251, %c0_252] {strides = array<i32: 2, 1>} : memref<12x2xf32, #tpu.memory_space<vmem>>, vector<3x2xf32>
    %353 = vector.broadcast %351 : f32 to vector<3x2xf32>
    %354 = arith.mulf %353, %352 : vector<3x2xf32>
    %355 = arith.addf %350, %354 : vector<3x2xf32>
    %c52 = arith.constant 52 : index
    %356 = memref.load %arg1[%c52] : memref<56xf32, #tpu.memory_space<smem>>
    %c6_253 = arith.constant 6 : index
    %c0_254 = arith.constant 0 : index
    %357 = tpu.strided_load %arg12[%c6_253, %c0_254] {strides = array<i32: 2, 1>} : memref<12x2xf32, #tpu.memory_space<vmem>>, vector<3x2xf32>
    %358 = vector.broadcast %356 : f32 to vector<3x2xf32>
    %359 = arith.mulf %358, %357 : vector<3x2xf32>
    %360 = arith.addf %355, %359 : vector<3x2xf32>
    %c53 = arith.constant 53 : index
    %361 = memref.load %arg1[%c53] : memref<56xf32, #tpu.memory_space<smem>>
    %c7_255 = arith.constant 7 : index
    %c0_256 = arith.constant 0 : index
    %362 = tpu.strided_load %arg12[%c7_255, %c0_256] {strides = array<i32: 2, 1>} : memref<12x2xf32, #tpu.memory_space<vmem>>, vector<3x2xf32>
    %363 = vector.broadcast %361 : f32 to vector<3x2xf32>
    %364 = arith.mulf %363, %362 : vector<3x2xf32>
    %365 = arith.addf %360, %364 : vector<3x2xf32>
    %c55 = arith.constant 55 : index
    %366 = memref.load %arg1[%c55] : memref<56xf32, #tpu.memory_space<smem>>
    %367 = vector.broadcast %366 : f32 to vector<3x2xf32>
    %368 = arith.addf %365, %367 : vector<3x2xf32>
    %cst_257 = arith.constant 0.000000e+00 : f32
    %369 = vector.broadcast %cst_257 : f32 to vector<3x2xf32>
    %370 = arith.maximumf %368, %369 : vector<3x2xf32>
    %c3_258 = arith.constant 3 : index
    %c0_259 = arith.constant 0 : index
    %371 = vector.load %arg13[%c3_258, %c0_259] : memref<6x2xf32, #tpu.memory_space<vmem>>, vector<3x2xf32>
    tpu.vector_store %arg13[%c3_258, %c0_259], %370 {strides = array<i32>} : memref<6x2xf32, #tpu.memory_space<vmem>>, vector<3x2xf32>,
    %c0_260 = arith.constant 0 : index
    %c0_261 = arith.constant 0 : index
    %372 = vector.load %arg5[%c0_260, %c0_261] : memref<10x6xf32, #tpu.memory_space<vmem>>, vector<10x6xf32>
    %c0_262 = arith.constant 0 : index
    %c0_263 = arith.constant 0 : index
    %373 = vector.load %arg13[%c0_262, %c0_263] : memref<6x2xf32, #tpu.memory_space<vmem>>, vector<6x2xf32>
    %cst_264 = arith.constant dense<0.000000e+00> : vector<10x2xf32>
    %374 = tpu.matmul %372, %373, %cst_264 {dimension_numbers = #tpu.dot_dimension_numbers<[1], [0], [0], [1], [0, 0, 1, 1], [], []>} : vector<10x6xf32>, vector<6x2xf32>, vector<10x2xf32> -> vector<10x2xf32>
    %c0_265 = arith.constant 0 : index
    %c0_266 = arith.constant 0 : index
    %375 = vector.load %arg6[%c0_265, %c0_266] : memref<10x1xf32, #tpu.memory_space<vmem>>, vector<10x1xf32>
    %376 = vector.broadcast %375 : vector<10x1xf32> to vector<10x2xf32>
    %377 = arith.addf %374, %376 : vector<10x2xf32>
    %c0_267 = arith.constant 0 : index
    %c0_268 = arith.constant 0 : index
    %378 = vector.load %arg7[%c0_267, %c0_268] : memref<10x2xf32, #tpu.memory_space<vmem>>, vector<10x2xf32>
    tpu.vector_store %arg7[%c0_267, %c0_268], %377 {strides = array<i32>} : memref<10x2xf32, #tpu.memory_space<vmem>>, vector<10x2xf32>,
    return
  }
  func.func @transform_0(%arg0: i32) -> i32 {
    %c0_i32 = arith.constant 0 : i32
    %c0_i32_0 = arith.constant 0 : i32
    return %c0_i32 : i32
  }
  func.func @transform_1(%arg0: i32) -> (i32, i32) {
    %c0_i32 = arith.constant 0 : i32
    %c0_i32_0 = arith.constant 0 : i32
    %c0_i32_1 = arith.constant 0 : i32
    return %c0_i32, %c0_i32_0 : i32, i32
  }
  func.func @transform_2(%arg0: i32) -> (i32, i32, i32, i32) {
    %c0_i32 = arith.constant 0 : i32
    %c0_i32_0 = arith.constant 0 : i32
    %c0_i32_1 = arith.constant 0 : i32
    %c0_i32_2 = arith.constant 0 : i32
    %c0_i32_3 = arith.constant 0 : i32
    return %c0_i32, %c0_i32_0, %c0_i32_1, %c0_i32_2 : i32, i32, i32, i32
  }
  func.func @transform_3(%arg0: i32) -> (i32, i32, i32, i32) {
    %c0_i32 = arith.constant 0 : i32
    %c0_i32_0 = arith.constant 0 : i32
    %c0_i32_1 = arith.constant 0 : i32
    %c0_i32_2 = arith.constant 0 : i32
    %c0_i32_3 = arith.constant 0 : i32
    return %c0_i32, %c0_i32_0, %c0_i32_1, %c0_i32_2 : i32, i32, i32, i32
  }
  func.func @transform_4(%arg0: i32) -> (i32, i32) {
    %c0_i32 = arith.constant 0 : i32
    %c0_i32_0 = arith.constant 0 : i32
    %c0_i32_1 = arith.constant 0 : i32
    return %c0_i32, %c0_i32_0 : i32, i32
  }
  func.func @transform_5(%arg0: i32) -> (i32, i32) {
    %c0_i32 = arith.constant 0 : i32
    %c0_i32_0 = arith.constant 0 : i32
    %c0_i32_1 = arith.constant 0 : i32
    return %c0_i32, %c0_i32_0 : i32, i32
  }
  func.func @transform_6(%arg0: i32) -> (i32, i32) {
    %c0_i32 = arith.constant 0 : i32
    %c0_i32_0 = arith.constant 0 : i32
    %c0_i32_1 = arith.constant 0 : i32
    return %c0_i32, %c0_i32_0 : i32, i32
  }
}

</mosaic_0001>

<llo_original>
// kernel: hamida_forward.1
$region0: #{hamida_forward.1}
  #allocation0 [shape = 'u32[]', space=smem, size = 0x4, offset = 0x4, fixed_abs, tag = 'smem constant byte address 0x4 - core index']
  #allocation1 [shape = 'u32[144,128]{1,0:T(1,128)}', space=vmem, size = 0x12000, scoped, tag = 'internal scratch']
  #allocation2 [shape = 'f32[32,18]{1,0:T(8,128)}', space=vmem, size = 0x4000, scoped, tag = 'scratch operand']
  #allocation3 [shape = 'f32[18,18]{1,0:T(8,128)}', space=vmem, size = 0x3000, scoped, tag = 'scratch operand']
  #allocation4 [shape = 'f32[18,2]{1,0:T(8,128)}', space=vmem, size = 0x3000, scoped, tag = 'scratch operand']
  #allocation5 [shape = 'f32[12,2]{1,0:T(8,128)}', space=vmem, size = 0x2000, scoped, tag = 'scratch operand']
  #allocation6 [shape = 'f32[12,2]{1,0:T(8,128)}', space=vmem, size = 0x2000, scoped, tag = 'scratch operand']
  #allocation7 [shape = 'f32[6,2]{1,0:T(8,128)}', space=vmem, size = 0x1000, scoped, tag = 'scratch operand']
  %s0 = inlined_call_operand.vmem [shape: f32[56], index: 0, kind: input, shape index: {}]
  %s1 = inlined_call_operand.vmem [shape: f32[16,162], index: 1, kind: input, shape index: {}]
  %s2 = inlined_call_operand.vmem [shape: f32[2,3,162,18], index: 2, kind: input, shape index: {}]
  %s3 = inlined_call_operand.vmem [shape: f32[2,6,18,2], index: 3, kind: input, shape index: {}]
  %s4 = inlined_call_operand.vmem [shape: f32[10,6], index: 4, kind: input, shape index: {}]
  %s5 = inlined_call_operand.vmem [shape: f32[10,1], index: 5, kind: input, shape index: {}]
  %s6 = inlined_call_operand.vmem [shape: f32[10,2], index: 6, kind: output, shape index: {}]
  %s7 = sld [smem:[#allocation0]]
  $region38: #{hamida_forward.1} parent=0
    _
  %s9 = ssub.s32 1, %s7
  %s10 = scalar_select 0, %s9, %s7
  $region1: #{hamida_forward.1} parent=0
    #allocation8 [shape = 'u8[512]{0}', space=smem, size = 0x200, scoped, tag = 'input window, operand 0, single buffered']
    #allocation9 [shape = 's32[1]{0}', space=sflag, size = 0x4, scoped, tag = 'scoped memory for hamida_forward.1']
    %11 = vsyncpa [#allocation9], 0
    // Predicated region
    $region2: #{hamida_forward.1} parent=1 // pred_check
      _
    $region3: #{hamida_forward.1} parent=1 // pred_check_branch
      %13 = sbr.rel (0) target = $region5
    $region4: #{hamida_forward.1} parent=1 // pred_region
      %s15 = ssub.s32 16, 16
      %16 = vsyncadd [#allocation9], %s15
      %s18 = sshll.u32 %s0, 4
      %s19 = int_to_ptr.vmem [resolvable:$true] %s18
      %21 = dma.vmem_to_smem %s19, 16, [#allocation8], [#allocation9]
    $region5: #{hamida_forward.1} parent=1 // pred_fallthru
      _
    // Predicated region
    $region6: #{hamida_forward.1} parent=1 // pred_check
      _
    $region7: #{hamida_forward.1} parent=1 // pred_check_branch
      %23 = sbr.rel (0) target = $region9
    $region8: #{hamida_forward.1} parent=1 // pred_region
      _
    $region9: #{hamida_forward.1} parent=1 // pred_fallthru
      _
    // Predicated region
    $region10: #{hamida_forward.1} parent=1 // pred_check
      _
    $region11: #{hamida_forward.1} parent=1 // pred_check_branch
      %25 = sbr.rel (0) target = $region13
    $region12: #{hamida_forward.1} parent=1 // pred_region
      _
    $region13: #{hamida_forward.1} parent=1 // pred_fallthru
      _
    // Predicated region
    $region14: #{hamida_forward.1} parent=1 // pred_check
      _
    $region15: #{hamida_forward.1} parent=1 // pred_check_branch
      %27 = sbr.rel (0) target = $region17
    $region16: #{hamida_forward.1} parent=1 // pred_region
      _
    $region17: #{hamida_forward.1} parent=1 // pred_fallthru
      _
    // Predicated region
    $region18: #{hamida_forward.1} parent=1 // pred_check
      _
    $region19: #{hamida_forward.1} parent=1 // pred_check_branch
      %29 = sbr.rel (0) target = $region21
    $region20: #{hamida_forward.1} parent=1 // pred_region
      _
    $region21: #{hamida_forward.1} parent=1 // pred_fallthru
      _
    // Predicated region
    $region22: #{hamida_forward.1} parent=1 // pred_check
      _
    $region23: #{hamida_forward.1} parent=1 // pred_check_branch
      %31 = sbr.rel (0) target = $region25
    $region24: #{hamida_forward.1} parent=1 // pred_region
      _
    $region25: #{hamida_forward.1} parent=1 // pred_fallthru
      _
    // Predicated region
    $region26: #{hamida_forward.1} parent=1 // pred_check
      _
    $region27: #{hamida_forward.1} parent=1 // pred_check_branch
      %33 = sbr.rel (0) target = $region29
    $region28: #{hamida_forward.1} parent=1 // pred_region
      %34 = dma.done [#allocation9], 16
    $region29: #{hamida_forward.1} parent=1 // pred_fallthru
      _
    %35 = sfence
    %vm36 = vcmask 146432
    %37 = vst.msk [vmem:[#allocation2] sm:$0xff] %vm36, 0.0
    %38 = vst.msk [vmem:[#allocation2 + $0x8] sm:$0xff] %vm36, 0.0
    %39 = vst.msk [vmem:[#allocation2 + $0x10] sm:$0xff] %vm36, 0.0
    %40 = vst.msk [vmem:[#allocation2 + $0x18] sm:$0xff] %vm36, 0.0
    %41 = vst.msk [vmem:[#allocation3] sm:$0xff] %vm36, 0.0
    %42 = vst.msk [vmem:[#allocation3 + $0x8] sm:$0xff] %vm36, 0.0
    %vm43 = vcmask 140288
    %44 = vst.msk [vmem:[#allocation3 + $0x10] sm:$0x3] %vm43, 0.0
    %vm45 = vcmask 15360
    %46 = vst.msk [vmem:[#allocation4] sm:$0xff] %vm45, 0.0
    %47 = vst.msk [vmem:[#allocation4 + $0x8] sm:$0xff] %vm45, 0.0
    %vm48 = vcmask 9216
    %49 = vst.msk [vmem:[#allocation4 + $0x10] sm:$0x3] %vm48, 0.0
    %50 = vst.msk [vmem:[#allocation5] sm:$0xff] %vm45, 0.0
    %vm51 = vcmask 11264
    %52 = vst.msk [vmem:[#allocation5 + $0x8] sm:$0xf] %vm51, 0.0
    %53 = vst.msk [vmem:[#allocation6] sm:$0xff] %vm45, 0.0
    %54 = vst.msk [vmem:[#allocation6 + $0x8] sm:$0xf] %vm51, 0.0
    %v55 = vld [vmem:[%s1] sm:$0xff]
    %v56 = vld [vmem:[%s1 + $0x8] sm:$0xff]
    %v57 = vld [vmem:[%s1 + $0x10] sm:$0x3f]
    %v58 = vld [vmem:[%s1 + $0x18] sm:$0x3f]
    %v59 = vld [vmem:[%s2] sm:$0xff]
    %v60 = vld [vmem:[%s2 + $0x8] sm:$0xff]
    %v61 = vld [vmem:[%s2 + $0x10] sm:$0xff]
    %v62 = vld [vmem:[%s2 + $0x18] sm:$0xff]
    %v63 = vld [vmem:[%s2 + $0x20] sm:$0xff]
    %v64 = vld [vmem:[%s2 + $0x28] sm:$0xff]
    %v65 = vld [vmem:[%s2 + $0x30] sm:$0xff]
    %v66 = vld [vmem:[%s2 + $0x38] sm:$0xff]
    %v67 = vld [vmem:[%s2 + $0x40] sm:$0xff]
    %v68 = vld [vmem:[%s2 + $0x48] sm:$0xff]
    %v69 = vld [vmem:[%s2 + $0x50] sm:$0xff]
    %v70 = vld [vmem:[%s2 + $0x58] sm:$0xff]
    %v71 = vld [vmem:[%s2 + $0x60] sm:$0xff]
    %v72 = vld [vmem:[%s2 + $0x68] sm:$0xff]
    %v73 = vld [vmem:[%s2 + $0x70] sm:$0xff]
    %v74 = vld [vmem:[%s2 + $0x78] sm:$0xff]
    %v75 = vld [vmem:[%s2 + $0x80] sm:$0xff]
    %v76 = vld [vmem:[%s2 + $0x88] sm:$0xff]
    %v77 = vld [vmem:[%s2 + $0x90] sm:$0xff]
    %v78 = vld [vmem:[%s2 + $0x98] sm:$0xff]
    %v79 = vld [vmem:[%s2 + $0xa0] sm:$0x3]
    %v80 = vld [vmem:[%s1] sm:$0xfe]
    %v81 = vld [vmem:[%s1 + $0x8] sm:$0xfe]
    %v82 = vld [vmem:[%s1 + $0x10] sm:$0x7f]
    %v83 = vld [vmem:[%s1 + $0x18] sm:$0x7f]
    %s84 = scalar_lea.vmem %s2, 168
    %v85 = vld [vmem:[%s84] sm:$0xff]
    %v86 = vld [vmem:[%s84 + $0x8] sm:$0xff]
    %v87 = vld [vmem:[%s84 + $0x10] sm:$0xff]
    %v88 = vld [vmem:[%s84 + $0x18] sm:$0xff]
    %v89 = vld [vmem:[%s84 + $0x20] sm:$0xff]
    %v90 = vld [vmem:[%s84 + $0x28] sm:$0xff]
    %v91 = vld [vmem:[%s84 + $0x30] sm:$0xff]
    %v92 = vld [vmem:[%s84 + $0x38] sm:$0xff]
    %v93 = vld [vmem:[%s84 + $0x40] sm:$0xff]
    %v94 = vld [vmem:[%s84 + $0x48] sm:$0xff]
    %v95 = vld [vmem:[%s84 + $0x50] sm:$0xff]
    %v96 = vld [vmem:[%s84 + $0x58] sm:$0xff]
    %v97 = vld [vmem:[%s84 + $0x60] sm:$0xff]
    %v98 = vld [vmem:[%s84 + $0x68] sm:$0xff]
    %v99 = vld [vmem:[%s84 + $0x70] sm:$0xff]
    %v100 = vld [vmem:[%s84 + $0x78] sm:$0xff]
    %v101 = vld [vmem:[%s84 + $0x80] sm:$0xff]
    %v102 = vld [vmem:[%s84 + $0x88] sm:$0xff]
    %v103 = vld [vmem:[%s84 + $0x90] sm:$0xff]
    %v104 = vld [vmem:[%s84 + $0x98] sm:$0xff]
    %v105 = vld [vmem:[%s84 + $0xa0] sm:$0x3]
    %vm110 = vcmask 1046528
    %v111 = vrot.slane %v80, 1
    %v112 = vrot.slane %v82, 1
    %v113 = vsel %vm110, %v111, %v112
    %v114 = vrot.slane %v81, 1
    %v115 = vrot.slane %v83, 1
    %v116 = vsel %vm110, %v114, %v115
    %vm119 = vcmask 277504
    %v120 = vsel %vm119, %v116, 0
    %v122 = vsel %vm119, %v115, 0
    %vm124 = vcmask 1041408
    %v126 = vsel %vm124, %v105, 0
    %128 = vmatprep.subr.mxu0 0.0
    %129 = vmatpush1.msra.mxu0 %v100
    %130 = vmatprep.subr.mxu0 0.0
    %131 = vmatpush1.msra.mxu0 %v99
    %132 = vmatprep.subr.mxu0 0.0
    %133 = vmatpush1.msra.mxu0 %v98
    %134 = vmatprep.subr.mxu0 0.0
    %135 = vmatpush1.msra.mxu0 %v97
    %136 = vmatprep.subr.mxu0 0.0
    %137 = vmatpush1.msra.mxu0 %v96
    %138 = vmatprep.subr.mxu0 0.0
    %139 = vmatpush1.msra.mxu0 %v95
    %140 = vmatprep.subr.mxu0 0.0
    %141 = vmatpush1.msra.mxu0 %v94
    %142 = vmatprep.subr.mxu0 0.0
    %143 = vmatpush1.msra.mxu0 %v93
    %144 = vmatprep.subr.mxu0 0.0
    %145 = vmatpush1.msra.mxu0 %v92
    %146 = vmatprep.subr.mxu0 0.0
    %147 = vmatpush1.msra.mxu0 %v91
    %148 = vmatprep.subr.mxu0 0.0
    %149 = vmatpush1.msra.mxu0 %v90
    %150 = vmatprep.subr.mxu0 0.0
    %151 = vmatpush1.msra.mxu0 %v89
    %152 = vmatprep.subr.mxu0 0.0
    %153 = vmatpush1.msra.mxu0 %v88
    %154 = vmatprep.subr.mxu0 0.0
    %155 = vmatpush1.msra.mxu0 %v87
    %156 = vmatprep.subr.mxu0 0.0
    %157 = vmatpush1.msra.mxu0 %v86
    %158 = vmatprep.subr.mxu0 0.0
    %159 = vmatpush1.msra.mxu0 %v85
    %160 = vmatprep.subr.mxu0 0.0
    %161 = vmatpush2.msra.mxu0 0.0
    %162 = vmatprep.subr.mxu0 0.0
    %163 = vmatpush2.msra.mxu0 0.0
    %164 = vmatprep.subr.mxu0 0.0
    %165 = vmatpush2.msra.mxu0 0.0
    %166 = vmatprep.subr.mxu0 0.0
    %167 = vmatpush2.msra.mxu0 0.0
    %168 = vmatprep.subr.mxu0 0.0
    %169 = vmatpush2.msra.mxu0 0.0
    %170 = vmatprep.subr.mxu0 0.0
    %171 = vmatpush2.msra.mxu0 0.0
    %172 = vmatprep.subr.mxu0 0.0
    %173 = vmatpush2.msra.mxu0 0.0
    %174 = vmatprep.subr.mxu0 0.0
    %175 = vmatpush2.msra.mxu0 0.0
    %176 = vmatprep.subr.mxu0 0.0
    %177 = vmatpush2.msra.mxu0 0.0
    %178 = vmatprep.subr.mxu0 0.0
    %179 = vmatpush2.msra.mxu0 0.0
    %180 = vmatprep.subr.mxu0 0.0
    %181 = vmatpush2.msra.mxu0 0.0
    %182 = vmatprep.subr.mxu0 0.0
    %183 = vmatpush2.msra.mxu0 %v126
    %184 = vmatprep.subr.mxu0 0.0
    %185 = vmatpush2.msra.mxu0 %v104
    %186 = vmatprep.subr.mxu0 0.0
    %187 = vmatpush2.msra.mxu0 %v103
    %188 = vmatprep.subr.mxu0 0.0
    %189 = vmatpush2.msra.mxu0 %v102
    %190 = vmatprep.subr.mxu0 0.0
    %191 = vmatpush2.msra.mxu0 %v101
    %192 = vmatprep.mubr.f32.mxu0 %v120
    %193 = vmatmul.mubr.f32.gmra.mxu0 %v113
    %v194 = vpop.f32.mrf.mxu0
    %v195 = vadd.f32 0.0, %v194
    %v196 = vpop.f32.mrf.mxu0
    %197 = vmatprep.mubr.f32.mxu0 %v122
    %198 = vmatmul.mubr.f32.gmra.mxu0 %v112
    %v199 = vpop.f32.mrf.mxu0
    %v200 = vadd.f32 0.0, %v199
    %v201 = vpop.f32.mrf.mxu0
    %202 = vdwg.mxu0
    %v204 = vsel %vm119, %v56, 0
    %v207 = vsel %vm119, %v58, 0
    %v210 = vsel %vm124, %v79, 0
    %212 = vmatprep.subr.mxu0 0.0
    %213 = vmatpush1.msra.mxu0 %v74
    %214 = vmatprep.subr.mxu0 0.0
    %215 = vmatpush1.msra.mxu0 %v73
    %216 = vmatprep.subr.mxu0 0.0
    %217 = vmatpush1.msra.mxu0 %v72
    %218 = vmatprep.subr.mxu0 0.0
    %219 = vmatpush1.msra.mxu0 %v71
    %220 = vmatprep.subr.mxu0 0.0
    %221 = vmatpush1.msra.mxu0 %v70
    %222 = vmatprep.subr.mxu0 0.0
    %223 = vmatpush1.msra.mxu0 %v69
    %224 = vmatprep.subr.mxu0 0.0
    %225 = vmatpush1.msra.mxu0 %v68
    %226 = vmatprep.subr.mxu0 0.0
    %227 = vmatpush1.msra.mxu0 %v67
    %228 = vmatprep.subr.mxu0 0.0
    %229 = vmatpush1.msra.mxu0 %v66
    %230 = vmatprep.subr.mxu0 0.0
    %231 = vmatpush1.msra.mxu0 %v65
    %232 = vmatprep.subr.mxu0 0.0
    %233 = vmatpush1.msra.mxu0 %v64
    %234 = vmatprep.subr.mxu0 0.0
    %235 = vmatpush1.msra.mxu0 %v63
    %236 = vmatprep.subr.mxu0 0.0
    %237 = vmatpush1.msra.mxu0 %v62
    %238 = vmatprep.subr.mxu0 0.0
    %239 = vmatpush1.msra.mxu0 %v61
    %240 = vmatprep.subr.mxu0 0.0
    %241 = vmatpush1.msra.mxu0 %v60
    %242 = vmatprep.subr.mxu0 0.0
    %243 = vmatpush1.msra.mxu0 %v59
    %244 = vmatprep.subr.mxu0 0.0
    %245 = vmatpush2.msra.mxu0 0.0
    %246 = vmatprep.subr.mxu0 0.0
    %247 = vmatpush2.msra.mxu0 0.0
    %248 = vmatprep.subr.mxu0 0.0
    %249 = vmatpush2.msra.mxu0 0.0
    %250 = vmatprep.subr.mxu0 0.0
    %251 = vmatpush2.msra.mxu0 0.0
    %252 = vmatprep.subr.mxu0 0.0
    %253 = vmatpush2.msra.mxu0 0.0
    %254 = vmatprep.subr.mxu0 0.0
    %255 = vmatpush2.msra.mxu0 0.0
    %256 = vmatprep.subr.mxu0 0.0
    %257 = vmatpush2.msra.mxu0 0.0
    %258 = vmatprep.subr.mxu0 0.0
    %259 = vmatpush2.msra.mxu0 0.0
    %260 = vmatprep.subr.mxu0 0.0
    %261 = vmatpush2.msra.mxu0 0.0
    %262 = vmatprep.subr.mxu0 0.0
    %263 = vmatpush2.msra.mxu0 0.0
    %264 = vmatprep.subr.mxu0 0.0
    %265 = vmatpush2.msra.mxu0 0.0
    %266 = vmatprep.subr.mxu0 0.0
    %267 = vmatpush2.msra.mxu0 %v210
    %268 = vmatprep.subr.mxu0 0.0
    %269 = vmatpush2.msra.mxu0 %v78
    %270 = vmatprep.subr.mxu0 0.0
    %271 = vmatpush2.msra.mxu0 %v77
    %272 = vmatprep.subr.mxu0 0.0
    %273 = vmatpush2.msra.mxu0 %v76
    %274 = vmatprep.subr.mxu0 0.0
    %275 = vmatpush2.msra.mxu0 %v75
    %276 = vmatprep.mubr.f32.mxu0 %v204
    %277 = vmatmul.mubr.f32.gmra.mxu0 %v55
    %v278 = vpop.f32.mrf.mxu0
    %v279 = vadd.f32 %v195, %v278
    %v280 = vpop.f32.mrf.mxu0
    %281 = vmatprep.mubr.f32.mxu0 %v207
    %282 = vmatmul.mubr.f32.gmra.mxu0 %v57
    %v283 = vpop.f32.mrf.mxu0
    %v284 = vadd.f32 %v200, %v283
    %v285 = vpop.f32.mrf.mxu0
    %286 = vdwg.mxu0
    %v287 = vld [vmem:[%s1] sm:$0xfc]
    %v288 = vld [vmem:[%s1 + $0x8] sm:$0xfc]
    %v289 = vld [vmem:[%s1 + $0x10] sm:$0xff]
    %v290 = vld [vmem:[%s1 + $0x18] sm:$0xff]
    %s291 = scalar_lea.vmem %s2, 336
    %v292 = vld [vmem:[%s291] sm:$0xff]
    %v293 = vld [vmem:[%s291 + $0x8] sm:$0xff]
    %v294 = vld [vmem:[%s291 + $0x10] sm:$0xff]
    %v295 = vld [vmem:[%s291 + $0x18] sm:$0xff]
    %v296 = vld [vmem:[%s291 + $0x20] sm:$0xff]
    %v297 = vld [vmem:[%s291 + $0x28] sm:$0xff]
    %v298 = vld [vmem:[%s291 + $0x30] sm:$0xff]
    %v299 = vld [vmem:[%s291 + $0x38] sm:$0xff]
    %v300 = vld [vmem:[%s291 + $0x40] sm:$0xff]
    %v301 = vld [vmem:[%s291 + $0x48] sm:$0xff]
    %v302 = vld [vmem:[%s291 + $0x50] sm:$0xff]
    %v303 = vld [vmem:[%s291 + $0x58] sm:$0xff]
    %v304 = vld [vmem:[%s291 + $0x60] sm:$0xff]
    %v305 = vld [vmem:[%s291 + $0x68] sm:$0xff]
    %v306 = vld [vmem:[%s291 + $0x70] sm:$0xff]
    %v307 = vld [vmem:[%s291 + $0x78] sm:$0xff]
    %v308 = vld [vmem:[%s291 + $0x80] sm:$0xff]
    %v309 = vld [vmem:[%s291 + $0x88] sm:$0xff]
    %v310 = vld [vmem:[%s291 + $0x90] sm:$0xff]
    %v311 = vld [vmem:[%s291 + $0x98] sm:$0xff]
    %v312 = vld [vmem:[%s291 + $0xa0] sm:$0x3]
    %vm317 = vcmask 1045504
    %v318 = vrot.slane %v287, 2
    %v319 = vrot.slane %v289, 2
    %v320 = vsel %vm317, %v318, %v319
    %v321 = vrot.slane %v288, 2
    %v322 = vrot.slane %v290, 2
    %v323 = vsel %vm317, %v321, %v322
    %v326 = vsel %vm119, %v323, 0
    %v328 = vsel %vm119, %v322, 0
    %v331 = vsel %vm124, %v312, 0
    %333 = vmatprep.subr.mxu0 0.0
    %334 = vmatpush1.msra.mxu0 %v307
    %335 = vmatprep.subr.mxu0 0.0
    %336 = vmatpush1.msra.mxu0 %v306
    %337 = vmatprep.subr.mxu0 0.0
    %338 = vmatpush1.msra.mxu0 %v305
    %339 = vmatprep.subr.mxu0 0.0
    %340 = vmatpush1.msra.mxu0 %v304
    %341 = vmatprep.subr.mxu0 0.0
    %342 = vmatpush1.msra.mxu0 %v303
    %343 = vmatprep.subr.mxu0 0.0
    %344 = vmatpush1.msra.mxu0 %v302
    %345 = vmatprep.subr.mxu0 0.0
    %346 = vmatpush1.msra.mxu0 %v301
    %347 = vmatprep.subr.mxu0 0.0
    %348 = vmatpush1.msra.mxu0 %v300
    %349 = vmatprep.subr.mxu0 0.0
    %350 = vmatpush1.msra.mxu0 %v299
    %351 = vmatprep.subr.mxu0 0.0
    %352 = vmatpush1.msra.mxu0 %v298
    %353 = vmatprep.subr.mxu0 0.0
    %354 = vmatpush1.msra.mxu0 %v297
    %355 = vmatprep.subr.mxu0 0.0
    %356 = vmatpush1.msra.mxu0 %v296
    %357 = vmatprep.subr.mxu0 0.0
    %358 = vmatpush1.msra.mxu0 %v295
    %359 = vmatprep.subr.mxu0 0.0
    %360 = vmatpush1.msra.mxu0 %v294
    %361 = vmatprep.subr.mxu0 0.0
    %362 = vmatpush1.msra.mxu0 %v293
    %363 = vmatprep.subr.mxu0 0.0
    %364 = vmatpush1.msra.mxu0 %v292
    %365 = vmatprep.subr.mxu0 0.0
    %366 = vmatpush2.msra.mxu0 0.0
    %367 = vmatprep.subr.mxu0 0.0
    %368 = vmatpush2.msra.mxu0 0.0
    %369 = vmatprep.subr.mxu0 0.0
    %370 = vmatpush2.msra.mxu0 0.0
    %371 = vmatprep.subr.mxu0 0.0
    %372 = vmatpush2.msra.mxu0 0.0
    %373 = vmatprep.subr.mxu0 0.0
    %374 = vmatpush2.msra.mxu0 0.0
    %375 = vmatprep.subr.mxu0 0.0
    %376 = vmatpush2.msra.mxu0 0.0
    %377 = vmatprep.subr.mxu0 0.0
    %378 = vmatpush2.msra.mxu0 0.0
    %379 = vmatprep.subr.mxu0 0.0
    %380 = vmatpush2.msra.mxu0 0.0
    %381 = vmatprep.subr.mxu0 0.0
    %382 = vmatpush2.msra.mxu0 0.0
    %383 = vmatprep.subr.mxu0 0.0
    %384 = vmatpush2.msra.mxu0 0.0
    %385 = vmatprep.subr.mxu0 0.0
    %386 = vmatpush2.msra.mxu0 0.0
    %387 = vmatprep.subr.mxu0 0.0
    %388 = vmatpush2.msra.mxu0 %v331
    %389 = vmatprep.subr.mxu0 0.0
    %390 = vmatpush2.msra.mxu0 %v311
    %391 = vmatprep.subr.mxu0 0.0
    %392 = vmatpush2.msra.mxu0 %v310
    %393 = vmatprep.subr.mxu0 0.0
    %394 = vmatpush2.msra.mxu0 %v309
    %395 = vmatprep.subr.mxu0 0.0
    %396 = vmatpush2.msra.mxu0 %v308
    %397 = vmatprep.mubr.f32.mxu0 %v326
    %398 = vmatmul.mubr.f32.gmra.mxu0 %v320
    %v399 = vpop.f32.mrf.mxu0
    %v400 = vadd.f32 0.0, %v399
    %v401 = vpop.f32.mrf.mxu0
    %402 = vmatprep.mubr.f32.mxu0 %v328
    %403 = vmatmul.mubr.f32.gmra.mxu0 %v319
    %v404 = vpop.f32.mrf.mxu0
    %v405 = vadd.f32 0.0, %v404
    %v406 = vpop.f32.mrf.mxu0
    %407 = vdwg.mxu0
    %v408 = vadd.f32 %v279, %v400
    %v409 = vadd.f32 %v284, %v405
    %s410 = sld [smem:[#allocation8]]
    %v411 = vstv %s410
    %v412 = vadd.f32 %v408, %v411
    %v413 = vadd.f32 %v409, %v411
    %v414 = vmax.f32 %v412, 0.0
    %v415 = vmax.f32 %v413, 0.0
    %416 = vst.msk [vmem:[#allocation2 + $0x1] sm:$0xff] %vm36, %v414
    %vm417 = vcmask 144384
    %418 = vst.msk [vmem:[#allocation2 + $0x9] sm:$0x3f] %vm417, %v415
    %v419 = vld [vmem:[%s1] sm:$0xff]
    %v420 = vld [vmem:[%s1 + $0x8] sm:$0xff]
    %v421 = vld [vmem:[%s1 + $0x10] sm:$0x3f]
    %v422 = vld [vmem:[%s1 + $0x18] sm:$0x3f]
    %s423 = scalar_lea.vmem %s2, 504
    %v424 = vld [vmem:[%s423] sm:$0xff]
    %v425 = vld [vmem:[%s423 + $0x8] sm:$0xff]
    %v426 = vld [vmem:[%s423 + $0x10] sm:$0xff]
    %v427 = vld [vmem:[%s423 + $0x18] sm:$0xff]
    %v428 = vld [vmem:[%s423 + $0x20] sm:$0xff]
    %v429 = vld [vmem:[%s423 + $0x28] sm:$0xff]
    %v430 = vld [vmem:[%s423 + $0x30] sm:$0xff]
    %v431 = vld [vmem:[%s423 + $0x38] sm:$0xff]
    %v432 = vld [vmem:[%s423 + $0x40] sm:$0xff]
    %v433 = vld [vmem:[%s423 + $0x48] sm:$0xff]
    %v434 = vld [vmem:[%s423 + $0x50] sm:$0xff]
    %v435 = vld [vmem:[%s423 + $0x58] sm:$0xff]
    %v436 = vld [vmem:[%s423 + $0x60] sm:$0xff]
    %v437 = vld [vmem:[%s423 + $0x68] sm:$0xff]
    %v438 = vld [vmem:[%s423 + $0x70] sm:$0xff]
    %v439 = vld [vmem:[%s423 + $0x78] sm:$0xff]
    %v440 = vld [vmem:[%s423 + $0x80] sm:$0xff]
    %v441 = vld [vmem:[%s423 + $0x88] sm:$0xff]
    %v442 = vld [vmem:[%s423 + $0x90] sm:$0xff]
    %v443 = vld [vmem:[%s423 + $0x98] sm:$0xff]
    %v444 = vld [vmem:[%s423 + $0xa0] sm:$0x3]
    %v445 = vld [vmem:[%s1] sm:$0xfe]
    %v446 = vld [vmem:[%s1 + $0x8] sm:$0xfe]
    %v447 = vld [vmem:[%s1 + $0x10] sm:$0x7f]
    %v448 = vld [vmem:[%s1 + $0x18] sm:$0x7f]
    %s449 = scalar_lea.vmem %s2, 672
    %v450 = vld [vmem:[%s449] sm:$0xff]
    %v451 = vld [vmem:[%s449 + $0x8] sm:$0xff]
    %v452 = vld [vmem:[%s449 + $0x10] sm:$0xff]
    %v453 = vld [vmem:[%s449 + $0x18] sm:$0xff]
    %v454 = vld [vmem:[%s449 + $0x20] sm:$0xff]
    %v455 = vld [vmem:[%s449 + $0x28] sm:$0xff]
    %v456 = vld [vmem:[%s449 + $0x30] sm:$0xff]
    %v457 = vld [vmem:[%s449 + $0x38] sm:$0xff]
    %v458 = vld [vmem:[%s449 + $0x40] sm:$0xff]
    %v459 = vld [vmem:[%s449 + $0x48] sm:$0xff]
    %v460 = vld [vmem:[%s449 + $0x50] sm:$0xff]
    %v461 = vld [vmem:[%s449 + $0x58] sm:$0xff]
    %v462 = vld [vmem:[%s449 + $0x60] sm:$0xff]
    %v463 = vld [vmem:[%s449 + $0x68] sm:$0xff]
    %v464 = vld [vmem:[%s449 + $0x70] sm:$0xff]
    %v465 = vld [vmem:[%s449 + $0x78] sm:$0xff]
    %v466 = vld [vmem:[%s449 + $0x80] sm:$0xff]
    %v467 = vld [vmem:[%s449 + $0x88] sm:$0xff]
    %v468 = vld [vmem:[%s449 + $0x90] sm:$0xff]
    %v469 = vld [vmem:[%s449 + $0x98] sm:$0xff]
    %v470 = vld [vmem:[%s449 + $0xa0] sm:$0x3]
    %v475 = vrot.slane %v445, 1
    %v476 = vrot.slane %v447, 1
    %v477 = vsel %vm110, %v475, %v476
    %v478 = vrot.slane %v446, 1
    %v479 = vrot.slane %v448, 1
    %v480 = vsel %vm110, %v478, %v479
    %v483 = vsel %vm119, %v480, 0
    %v485 = vsel %vm119, %v479, 0
    %v488 = vsel %vm124, %v470, 0
    %490 = vmatprep.subr.mxu0 0.0
    %491 = vmatpush1.msra.mxu0 %v465
    %492 = vmatprep.subr.mxu0 0.0
    %493 = vmatpush1.msra.mxu0 %v464
    %494 = vmatprep.subr.mxu0 0.0
    %495 = vmatpush1.msra.mxu0 %v463
    %496 = vmatprep.subr.mxu0 0.0
    %497 = vmatpush1.msra.mxu0 %v462
    %498 = vmatprep.subr.mxu0 0.0
    %499 = vmatpush1.msra.mxu0 %v461
    %500 = vmatprep.subr.mxu0 0.0
    %501 = vmatpush1.msra.mxu0 %v460
    %502 = vmatprep.subr.mxu0 0.0
    %503 = vmatpush1.msra.mxu0 %v459
    %504 = vmatprep.subr.mxu0 0.0
    %505 = vmatpush1.msra.mxu0 %v458
    %506 = vmatprep.subr.mxu0 0.0
    %507 = vmatpush1.msra.mxu0 %v457
    %508 = vmatprep.subr.mxu0 0.0
    %509 = vmatpush1.msra.mxu0 %v456
    %510 = vmatprep.subr.mxu0 0.0
    %511 = vmatpush1.msra.mxu0 %v455
    %512 = vmatprep.subr.mxu0 0.0
    %513 = vmatpush1.msra.mxu0 %v454
    %514 = vmatprep.subr.mxu0 0.0
    %515 = vmatpush1.msra.mxu0 %v453
    %516 = vmatprep.subr.mxu0 0.0
    %517 = vmatpush1.msra.mxu0 %v452
    %518 = vmatprep.subr.mxu0 0.0
    %519 = vmatpush1.msra.mxu0 %v451
    %520 = vmatprep.subr.mxu0 0.0
    %521 = vmatpush1.msra.mxu0 %v450
    %522 = vmatprep.subr.mxu0 0.0
    %523 = vmatpush2.msra.mxu0 0.0
    %524 = vmatprep.subr.mxu0 0.0
    %525 = vmatpush2.msra.mxu0 0.0
    %526 = vmatprep.subr.mxu0 0.0
    %527 = vmatpush2.msra.mxu0 0.0
    %528 = vmatprep.subr.mxu0 0.0
    %529 = vmatpush2.msra.mxu0 0.0
    %530 = vmatprep.subr.mxu0 0.0
    %531 = vmatpush2.msra.mxu0 0.0
    %532 = vmatprep.subr.mxu0 0.0
    %533 = vmatpush2.msra.mxu0 0.0
    %534 = vmatprep.subr.mxu0 0.0
    %535 = vmatpush2.msra.mxu0 0.0
    %536 = vmatprep.subr.mxu0 0.0
    %537 = vmatpush2.msra.mxu0 0.0
    %538 = vmatprep.subr.mxu0 0.0
    %539 = vmatpush2.msra.mxu0 0.0
    %540 = vmatprep.subr.mxu0 0.0
    %541 = vmatpush2.msra.mxu0 0.0
    %542 = vmatprep.subr.mxu0 0.0
    %543 = vmatpush2.msra.mxu0 0.0
    %544 = vmatprep.subr.mxu0 0.0
    %545 = vmatpush2.msra.mxu0 %v488
    %546 = vmatprep.subr.mxu0 0.0
    %547 = vmatpush2.msra.mxu0 %v469
    %548 = vmatprep.subr.mxu0 0.0
    %549 = vmatpush2.msra.mxu0 %v468
    %550 = vmatprep.subr.mxu0 0.0
    %551 = vmatpush2.msra.mxu0 %v467
    %552 = vmatprep.subr.mxu0 0.0
    %553 = vmatpush2.msra.mxu0 %v466
    %554 = vmatprep.mubr.f32.mxu0 %v483
    %555 = vmatmul.mubr.f32.gmra.mxu0 %v477
    %v556 = vpop.f32.mrf.mxu0
    %v557 = vadd.f32 0.0, %v556
    %v558 = vpop.f32.mrf.mxu0
    %559 = vmatprep.mubr.f32.mxu0 %v485
    %560 = vmatmul.mubr.f32.gmra.mxu0 %v476
    %v561 = vpop.f32.mrf.mxu0
    %v562 = vadd.f32 0.0, %v561
    %v563 = vpop.f32.mrf.mxu0
    %564 = vdwg.mxu0
    %v566 = vsel %vm119, %v420, 0
    %v569 = vsel %vm119, %v422, 0
    %v572 = vsel %vm124, %v444, 0
    %574 = vmatprep.subr.mxu0 0.0
    %575 = vmatpush1.msra.mxu0 %v439
    %576 = vmatprep.subr.mxu0 0.0
    %577 = vmatpush1.msra.mxu0 %v438
    %578 = vmatprep.subr.mxu0 0.0
    %579 = vmatpush1.msra.mxu0 %v437
    %580 = vmatprep.subr.mxu0 0.0
    %581 = vmatpush1.msra.mxu0 %v436
    %582 = vmatprep.subr.mxu0 0.0
    %583 = vmatpush1.msra.mxu0 %v435
    %584 = vmatprep.subr.mxu0 0.0
    %585 = vmatpush1.msra.mxu0 %v434
    %586 = vmatprep.subr.mxu0 0.0
    %587 = vmatpush1.msra.mxu0 %v433
    %588 = vmatprep.subr.mxu0 0.0
    %589 = vmatpush1.msra.mxu0 %v432
    %590 = vmatprep.subr.mxu0 0.0
    %591 = vmatpush1.msra.mxu0 %v431
    %592 = vmatprep.subr.mxu0 0.0
    %593 = vmatpush1.msra.mxu0 %v430
    %594 = vmatprep.subr.mxu0 0.0
    %595 = vmatpush1.msra.mxu0 %v429
    %596 = vmatprep.subr.mxu0 0.0
    %597 = vmatpush1.msra.mxu0 %v428
    %598 = vmatprep.subr.mxu0 0.0
    %599 = vmatpush1.msra.mxu0 %v427
    %600 = vmatprep.subr.mxu0 0.0
    %601 = vmatpush1.msra.mxu0 %v426
    %602 = vmatprep.subr.mxu0 0.0
    %603 = vmatpush1.msra.mxu0 %v425
    %604 = vmatprep.subr.mxu0 0.0
    %605 = vmatpush1.msra.mxu0 %v424
    %606 = vmatprep.subr.mxu0 0.0
    %607 = vmatpush2.msra.mxu0 0.0
    %608 = vmatprep.subr.mxu0 0.0
    %609 = vmatpush2.msra.mxu0 0.0
    %610 = vmatprep.subr.mxu0 0.0
    %611 = vmatpush2.msra.mxu0 0.0
    %612 = vmatprep.subr.mxu0 0.0
    %613 = vmatpush2.msra.mxu0 0.0
    %614 = vmatprep.subr.mxu0 0.0
    %615 = vmatpush2.msra.mxu0 0.0
    %616 = vmatprep.subr.mxu0 0.0
    %617 = vmatpush2.msra.mxu0 0.0
    %618 = vmatprep.subr.mxu0 0.0
    %619 = vmatpush2.msra.mxu0 0.0
    %620 = vmatprep.subr.mxu0 0.0
    %621 = vmatpush2.msra.mxu0 0.0
    %622 = vmatprep.subr.mxu0 0.0
    %623 = vmatpush2.msra.mxu0 0.0
    %624 = vmatprep.subr.mxu0 0.0
    %625 = vmatpush2.msra.mxu0 0.0
    %626 = vmatprep.subr.mxu0 0.0
    %627 = vmatpush2.msra.mxu0 0.0
    %628 = vmatprep.subr.mxu0 0.0
    %629 = vmatpush2.msra.mxu0 %v572
    %630 = vmatprep.subr.mxu0 0.0
    %631 = vmatpush2.msra.mxu0 %v443
    %632 = vmatprep.subr.mxu0 0.0
    %633 = vmatpush2.msra.mxu0 %v442
    %634 = vmatprep.subr.mxu0 0.0
    %635 = vmatpush2.msra.mxu0 %v441
    %636 = vmatprep.subr.mxu0 0.0
    %637 = vmatpush2.msra.mxu0 %v440
    %638 = vmatprep.mubr.f32.mxu0 %v566
    %639 = vmatmul.mubr.f32.gmra.mxu0 %v419
    %v640 = vpop.f32.mrf.mxu0
    %v641 = vadd.f32 %v557, %v640
    %v642 = vpop.f32.mrf.mxu0
    %643 = vmatprep.mubr.f32.mxu0 %v569
    %644 = vmatmul.mubr.f32.gmra.mxu0 %v421
    %v645 = vpop.f32.mrf.mxu0
    %v646 = vadd.f32 %v562, %v645
    %v647 = vpop.f32.mrf.mxu0
    %648 = vdwg.mxu0
    %v649 = vld [vmem:[%s1] sm:$0xfc]
    %v650 = vld [vmem:[%s1 + $0x8] sm:$0xfc]
    %v651 = vld [vmem:[%s1 + $0x10] sm:$0xff]
    %v652 = vld [vmem:[%s1 + $0x18] sm:$0xff]
    %s653 = scalar_lea.vmem %s2, 840
    %v654 = vld [vmem:[%s653] sm:$0xff]
    %v655 = vld [vmem:[%s653 + $0x8] sm:$0xff]
    %v656 = vld [vmem:[%s653 + $0x10] sm:$0xff]
    %v657 = vld [vmem:[%s653 + $0x18] sm:$0xff]
    %v658 = vld [vmem:[%s653 + $0x20] sm:$0xff]
    %v659 = vld [vmem:[%s653 + $0x28] sm:$0xff]
    %v660 = vld [vmem:[%s653 + $0x30] sm:$0xff]
    %v661 = vld [vmem:[%s653 + $0x38] sm:$0xff]
    %v662 = vld [vmem:[%s653 + $0x40] sm:$0xff]
    %v663 = vld [vmem:[%s653 + $0x48] sm:$0xff]
    %v664 = vld [vmem:[%s653 + $0x50] sm:$0xff]
    %v665 = vld [vmem:[%s653 + $0x58] sm:$0xff]
    %v666 = vld [vmem:[%s653 + $0x60] sm:$0xff]
    %v667 = vld [vmem:[%s653 + $0x68] sm:$0xff]
    %v668 = vld [vmem:[%s653 + $0x70] sm:$0xff]
    %v669 = vld [vmem:[%s653 + $0x78] sm:$0xff]
    %v670 = vld [vmem:[%s653 + $0x80] sm:$0xff]
    %v671 = vld [vmem:[%s653 + $0x88] sm:$0xff]
    %v672 = vld [vmem:[%s653 + $0x90] sm:$0xff]
    %v673 = vld [vmem:[%s653 + $0x98] sm:$0xff]
    %v674 = vld [vmem:[%s653 + $0xa0] sm:$0x3]
    %v679 = vrot.slane %v649, 2
    %v680 = vrot.slane %v651, 2
    %v681 = vsel %vm317, %v679, %v680
    %v682 = vrot.slane %v650, 2
    %v683 = vrot.slane %v652, 2
    %v684 = vsel %vm317, %v682, %v683
    %v687 = vsel %vm119, %v684, 0
    %v689 = vsel %vm119, %v683, 0
    %v692 = vsel %vm124, %v674, 0
    %694 = vmatprep.subr.mxu0 0.0
    %695 = vmatpush1.msra.mxu0 %v669
    %696 = vmatprep.subr.mxu0 0.0
    %697 = vmatpush1.msra.mxu0 %v668
    %698 = vmatprep.subr.mxu0 0.0
    %699 = vmatpush1.msra.mxu0 %v667
    %700 = vmatprep.subr.mxu0 0.0
    %701 = vmatpush1.msra.mxu0 %v666
    %702 = vmatprep.subr.mxu0 0.0
    %703 = vmatpush1.msra.mxu0 %v665
    %704 = vmatprep.subr.mxu0 0.0
    %705 = vmatpush1.msra.mxu0 %v664
    %706 = vmatprep.subr.mxu0 0.0
    %707 = vmatpush1.msra.mxu0 %v663
    %708 = vmatprep.subr.mxu0 0.0
    %709 = vmatpush1.msra.mxu0 %v662
    %710 = vmatprep.subr.mxu0 0.0
    %711 = vmatpush1.msra.mxu0 %v661
    %712 = vmatprep.subr.mxu0 0.0
    %713 = vmatpush1.msra.mxu0 %v660
    %714 = vmatprep.subr.mxu0 0.0
    %715 = vmatpush1.msra.mxu0 %v659
    %716 = vmatprep.subr.mxu0 0.0
    %717 = vmatpush1.msra.mxu0 %v658
    %718 = vmatprep.subr.mxu0 0.0
    %719 = vmatpush1.msra.mxu0 %v657
    %720 = vmatprep.subr.mxu0 0.0
    %721 = vmatpush1.msra.mxu0 %v656
    %722 = vmatprep.subr.mxu0 0.0
    %723 = vmatpush1.msra.mxu0 %v655
    %724 = vmatprep.subr.mxu0 0.0
    %725 = vmatpush1.msra.mxu0 %v654
    %726 = vmatprep.subr.mxu0 0.0
    %727 = vmatpush2.msra.mxu0 0.0
    %728 = vmatprep.subr.mxu0 0.0
    %729 = vmatpush2.msra.mxu0 0.0
    %730 = vmatprep.subr.mxu0 0.0
    %731 = vmatpush2.msra.mxu0 0.0
    %732 = vmatprep.subr.mxu0 0.0
    %733 = vmatpush2.msra.mxu0 0.0
    %734 = vmatprep.subr.mxu0 0.0
    %735 = vmatpush2.msra.mxu0 0.0
    %736 = vmatprep.subr.mxu0 0.0
    %737 = vmatpush2.msra.mxu0 0.0
    %738 = vmatprep.subr.mxu0 0.0
    %739 = vmatpush2.msra.mxu0 0.0
    %740 = vmatprep.subr.mxu0 0.0
    %741 = vmatpush2.msra.mxu0 0.0
    %742 = vmatprep.subr.mxu0 0.0
    %743 = vmatpush2.msra.mxu0 0.0
    %744 = vmatprep.subr.mxu0 0.0
    %745 = vmatpush2.msra.mxu0 0.0
    %746 = vmatprep.subr.mxu0 0.0
    %747 = vmatpush2.msra.mxu0 0.0
    %748 = vmatprep.subr.mxu0 0.0
    %749 = vmatpush2.msra.mxu0 %v692
    %750 = vmatprep.subr.mxu0 0.0
    %751 = vmatpush2.msra.mxu0 %v673
    %752 = vmatprep.subr.mxu0 0.0
    %753 = vmatpush2.msra.mxu0 %v672
    %754 = vmatprep.subr.mxu0 0.0
    %755 = vmatpush2.msra.mxu0 %v671
    %756 = vmatprep.subr.mxu0 0.0
    %757 = vmatpush2.msra.mxu0 %v670
    %758 = vmatprep.mubr.f32.mxu0 %v687
    %759 = vmatmul.mubr.f32.gmra.mxu0 %v681
    %v760 = vpop.f32.mrf.mxu0
    %v761 = vadd.f32 0.0, %v760
    %v762 = vpop.f32.mrf.mxu0
    %763 = vmatprep.mubr.f32.mxu0 %v689
    %764 = vmatmul.mubr.f32.gmra.mxu0 %v680
    %v765 = vpop.f32.mrf.mxu0
    %v766 = vadd.f32 0.0, %v765
    %v767 = vpop.f32.mrf.mxu0
    %768 = vdwg.mxu0
    %v769 = vadd.f32 %v641, %v761
    %v770 = vadd.f32 %v646, %v766
    %s771 = sld [smem:[#allocation8 + $0x1]]
    %v772 = vstv %s771
    %v773 = vadd.f32 %v769, %v772
    %v774 = vadd.f32 %v770, %v772
    %v775 = vmax.f32 %v773, 0.0
    %v776 = vmax.f32 %v774, 0.0
    %777 = vst.msk [vmem:[#allocation2 + $0x11] sm:$0xff] %vm36, %v775
    %778 = vst.msk [vmem:[#allocation2 + $0x19] sm:$0x3f] %vm417, %v776
    %s779 = sld [smem:[#allocation8 + $0x2]]
    %v780 = vld [vmem:[#allocation2] ss:$2 sm:$0x7f]
    %v781 = vstv %s779
    %v782 = vmul.f32 %v781, %v780
    %s783 = sld [smem:[#allocation8 + $0x3]]
    %s784 = scalar_lea.vmem [#allocation2], 1
    %v785 = vld [vmem:[%s784] ss:$2 sm:$0x7f]
    %v786 = vstv %s783
    %v787 = vmul.f32 %v786, %v785
    %v788 = vadd.f32 %v782, %v787
    %s789 = sld [smem:[#allocation8 + $0x4]]
    %s790 = scalar_lea.vmem [#allocation2], 2
    %v791 = vld [vmem:[%s790] ss:$2 sm:$0x7f]
    %v792 = vstv %s789
    %v793 = vmul.f32 %v792, %v791
    %v794 = vadd.f32 %v788, %v793
    %s795 = sld [smem:[#allocation8 + $0x5]]
    %s796 = scalar_lea.vmem [#allocation2], 16
    %v797 = vld [vmem:[%s796] ss:$2 sm:$0x7f]
    %v798 = vstv %s795
    %v799 = vmul.f32 %v798, %v797
    %v800 = vadd.f32 %v794, %v799
    %s801 = sld [smem:[#allocation8 + $0x6]]
    %s802 = scalar_lea.vmem [#allocation2], 17
    %v803 = vld [vmem:[%s802] ss:$2 sm:$0x7f]
    %v804 = vstv %s801
    %v805 = vmul.f32 %v804, %v803
    %v806 = vadd.f32 %v800, %v805
    %s807 = sld [smem:[#allocation8 + $0x7]]
    %s808 = scalar_lea.vmem [#allocation2], 18
    %v809 = vld [vmem:[%s808] ss:$2 sm:$0x7f]
    %v810 = vstv %s807
    %v811 = vmul.f32 %v810, %v809
    %v812 = vadd.f32 %v806, %v811
    %s813 = sld [smem:[#allocation8 + $0xe]]
    %v814 = vstv %s813
    %v815 = vadd.f32 %v812, %v814
    %vm816 = vcmask 145408
    %817 = vst.msk [vmem:[#allocation3 + $0x1] sm:$0x7f] %vm816, %v815
    %s818 = sld [smem:[#allocation8 + $0x8]]
    %v819 = vld [vmem:[#allocation2] ss:$2 sm:$0x7f]
    %v820 = vstv %s818
    %v821 = vmul.f32 %v820, %v819
    %s822 = sld [smem:[#allocation8 + $0x9]]
    %v823 = vld [vmem:[%s784] ss:$2 sm:$0x7f]
    %v824 = vstv %s822
    %v825 = vmul.f32 %v824, %v823
    %v826 = vadd.f32 %v821, %v825
    %s827 = sld [smem:[#allocation8 + $0xa]]
    %v828 = vld [vmem:[%s790] ss:$2 sm:$0x7f]
    %v829 = vstv %s827
    %v830 = vmul.f32 %v829, %v828
    %v831 = vadd.f32 %v826, %v830
    %s832 = sld [smem:[#allocation8 + $0xb]]
    %v833 = vld [vmem:[%s796] ss:$2 sm:$0x7f]
    %v834 = vstv %s832
    %v835 = vmul.f32 %v834, %v833
    %v836 = vadd.f32 %v831, %v835
    %s837 = sld [smem:[#allocation8 + $0xc]]
    %v838 = vld [vmem:[%s802] ss:$2 sm:$0x7f]
    %v839 = vstv %s837
    %v840 = vmul.f32 %v839, %v838
    %v841 = vadd.f32 %v836, %v840
    %s842 = sld [smem:[#allocation8 + $0xd]]
    %v843 = vld [vmem:[%s808] ss:$2 sm:$0x7f]
    %v844 = vstv %s842
    %v845 = vmul.f32 %v844, %v843
    %v846 = vadd.f32 %v841, %v845
    %s847 = sld [smem:[#allocation8 + $0xf]]
    %v848 = vstv %s847
    %v849 = vadd.f32 %v846, %v848
    %850 = vst.msk [vmem:[#allocation3 + $0xa] sm:$0x7f] %vm816, %v849
    %v851 = vld [vmem:[#allocation3] sm:$0x7f]
    %v852 = vld [vmem:[%s3] sm:$0xff]
    %v853 = vld [vmem:[%s3 + $0x8] sm:$0xff]
    %v854 = vld [vmem:[%s3 + $0x10] sm:$0x3]
    %v855 = vld [vmem:[#allocation3 + $0x1] sm:$0x7f]
    %s856 = scalar_lea.vmem %s3, 24
    %v857 = vld [vmem:[%s856] sm:$0xff]
    %v858 = vld [vmem:[%s856 + $0x8] sm:$0xff]
    %v859 = vld [vmem:[%s856 + $0x10] sm:$0x3]
    %v861 = vsel %vm36, %v855, 0
    %v864 = vsel %vm124, %v859, 0
    %866 = vmatprep.subr.mxu0 0.0
    %867 = vmatpush1.msra.mxu0 0.0
    %868 = vmatprep.subr.mxu0 0.0
    %869 = vmatpush1.msra.mxu0 0.0
    %870 = vmatprep.subr.mxu0 0.0
    %871 = vmatpush1.msra.mxu0 0.0
    %872 = vmatprep.subr.mxu0 0.0
    %873 = vmatpush1.msra.mxu0 0.0
    %874 = vmatprep.subr.mxu0 0.0
    %875 = vmatpush1.msra.mxu0 0.0
    %876 = vmatprep.subr.mxu0 0.0
    %877 = vmatpush1.msra.mxu0 0.0
    %878 = vmatprep.subr.mxu0 0.0
    %879 = vmatpush1.msra.mxu0 0.0
    %880 = vmatprep.subr.mxu0 0.0
    %881 = vmatpush1.msra.mxu0 0.0
    %882 = vmatprep.subr.mxu0 0.0
    %883 = vmatpush1.msra.mxu0 0.0
    %884 = vmatprep.subr.mxu0 0.0
    %885 = vmatpush1.msra.mxu0 0.0
    %886 = vmatprep.subr.mxu0 0.0
    %887 = vmatpush1.msra.mxu0 0.0
    %888 = vmatprep.subr.mxu0 0.0
    %889 = vmatpush1.msra.mxu0 0.0
    %890 = vmatprep.subr.mxu0 0.0
    %891 = vmatpush1.msra.mxu0 0.0
    %892 = vmatprep.subr.mxu0 0.0
    %893 = vmatpush1.msra.mxu0 %v864
    %894 = vmatprep.subr.mxu0 0.0
    %895 = vmatpush1.msra.mxu0 %v858
    %896 = vmatprep.subr.mxu0 0.0
    %897 = vmatpush1.msra.mxu0 %v857
    %898 = vmatprep.subr.mxu0 0.0
    %899 = vmatpush2.msra.mxu0 0.0
    %900 = vmatprep.subr.mxu0 0.0
    %901 = vmatpush2.msra.mxu0 0.0
    %902 = vmatprep.subr.mxu0 0.0
    %903 = vmatpush2.msra.mxu0 0.0
    %904 = vmatprep.subr.mxu0 0.0
    %905 = vmatpush2.msra.mxu0 0.0
    %906 = vmatprep.subr.mxu0 0.0
    %907 = vmatpush2.msra.mxu0 0.0
    %908 = vmatprep.subr.mxu0 0.0
    %909 = vmatpush2.msra.mxu0 0.0
    %910 = vmatprep.subr.mxu0 0.0
    %911 = vmatpush2.msra.mxu0 0.0
    %912 = vmatprep.subr.mxu0 0.0
    %913 = vmatpush2.msra.mxu0 0.0
    %914 = vmatprep.subr.mxu0 0.0
    %915 = vmatpush2.msra.mxu0 0.0
    %916 = vmatprep.subr.mxu0 0.0
    %917 = vmatpush2.msra.mxu0 0.0
    %918 = vmatprep.subr.mxu0 0.0
    %919 = vmatpush2.msra.mxu0 0.0
    %920 = vmatprep.subr.mxu0 0.0
    %921 = vmatpush2.msra.mxu0 0.0
    %922 = vmatprep.subr.mxu0 0.0
    %923 = vmatpush2.msra.mxu0 0.0
    %924 = vmatprep.subr.mxu0 0.0
    %925 = vmatpush2.msra.mxu0 0.0
    %926 = vmatprep.subr.mxu0 0.0
    %927 = vmatpush2.msra.mxu0 0.0
    %928 = vmatprep.subr.mxu0 0.0
    %929 = vmatpush2.msra.mxu0 0.0
    %930 = vmatprep.mubr.f32.mxu0 0.0
    %931 = vmatmul.mubr.f32.gmra.mxu0 %v861
    %v932 = vpop.f32.mrf.mxu0
    %v933 = vadd.f32 0.0, %v932
    %v934 = vpop.f32.mrf.mxu0
    %935 = vdwg.mxu0
    %v937 = vsel %vm36, %v851, 0
    %v940 = vsel %vm124, %v854, 0
    %942 = vmatprep.subr.mxu0 0.0
    %943 = vmatpush1.msra.mxu0 0.0
    %944 = vmatprep.subr.mxu0 0.0
    %945 = vmatpush1.msra.mxu0 0.0
    %946 = vmatprep.subr.mxu0 0.0
    %947 = vmatpush1.msra.mxu0 0.0
    %948 = vmatprep.subr.mxu0 0.0
    %949 = vmatpush1.msra.mxu0 0.0
    %950 = vmatprep.subr.mxu0 0.0
    %951 = vmatpush1.msra.mxu0 0.0
    %952 = vmatprep.subr.mxu0 0.0
    %953 = vmatpush1.msra.mxu0 0.0
    %954 = vmatprep.subr.mxu0 0.0
    %955 = vmatpush1.msra.mxu0 0.0
    %956 = vmatprep.subr.mxu0 0.0
    %957 = vmatpush1.msra.mxu0 0.0
    %958 = vmatprep.subr.mxu0 0.0
    %959 = vmatpush1.msra.mxu0 0.0
    %960 = vmatprep.subr.mxu0 0.0
    %961 = vmatpush1.msra.mxu0 0.0
    %962 = vmatprep.subr.mxu0 0.0
    %963 = vmatpush1.msra.mxu0 0.0
    %964 = vmatprep.subr.mxu0 0.0
    %965 = vmatpush1.msra.mxu0 0.0
    %966 = vmatprep.subr.mxu0 0.0
    %967 = vmatpush1.msra.mxu0 0.0
    %968 = vmatprep.subr.mxu0 0.0
    %969 = vmatpush1.msra.mxu0 %v940
    %970 = vmatprep.subr.mxu0 0.0
    %971 = vmatpush1.msra.mxu0 %v853
    %972 = vmatprep.subr.mxu0 0.0
    %973 = vmatpush1.msra.mxu0 %v852
    %974 = vmatprep.subr.mxu0 0.0
    %975 = vmatpush2.msra.mxu0 0.0
    %976 = vmatprep.subr.mxu0 0.0
    %977 = vmatpush2.msra.mxu0 0.0
    %978 = vmatprep.subr.mxu0 0.0
    %979 = vmatpush2.msra.mxu0 0.0
    %980 = vmatprep.subr.mxu0 0.0
    %981 = vmatpush2.msra.mxu0 0.0
    %982 = vmatprep.subr.mxu0 0.0
    %983 = vmatpush2.msra.mxu0 0.0
    %984 = vmatprep.subr.mxu0 0.0
    %985 = vmatpush2.msra.mxu0 0.0
    %986 = vmatprep.subr.mxu0 0.0
    %987 = vmatpush2.msra.mxu0 0.0
    %988 = vmatprep.subr.mxu0 0.0
    %989 = vmatpush2.msra.mxu0 0.0
    %990 = vmatprep.subr.mxu0 0.0
    %991 = vmatpush2.msra.mxu0 0.0
    %992 = vmatprep.subr.mxu0 0.0
    %993 = vmatpush2.msra.mxu0 0.0
    %994 = vmatprep.subr.mxu0 0.0
    %995 = vmatpush2.msra.mxu0 0.0
    %996 = vmatprep.subr.mxu0 0.0
    %997 = vmatpush2.msra.mxu0 0.0
    %998 = vmatprep.subr.mxu0 0.0
    %999 = vmatpush2.msra.mxu0 0.0
    %1000 = vmatprep.subr.mxu0 0.0
    %1001 = vmatpush2.msra.mxu0 0.0
    %1002 = vmatprep.subr.mxu0 0.0
    %1003 = vmatpush2.msra.mxu0 0.0
    %1004 = vmatprep.subr.mxu0 0.0
    %1005 = vmatpush2.msra.mxu0 0.0
    %1006 = vmatprep.mubr.f32.mxu0 0.0
    %1007 = vmatmul.mubr.f32.gmra.mxu0 %v937
    %v1008 = vpop.f32.mrf.mxu0
    %v1009 = vadd.f32 %v933, %v1008
    %v1010 = vpop.f32.mrf.mxu0
    %1011 = vdwg.mxu0
    %v1012 = vld [vmem:[#allocation3 + $0x2] sm:$0x7f]
    %s1013 = scalar_lea.vmem %s3, 48
    %v1014 = vld [vmem:[%s1013] sm:$0xff]
    %v1015 = vld [vmem:[%s1013 + $0x8] sm:$0xff]
    %v1016 = vld [vmem:[%s1013 + $0x10] sm:$0x3]
    %v1018 = vsel %vm36, %v1012, 0
    %v1021 = vsel %vm124, %v1016, 0
    %1023 = vmatprep.subr.mxu0 0.0
    %1024 = vmatpush1.msra.mxu0 0.0
    %1025 = vmatprep.subr.mxu0 0.0
    %1026 = vmatpush1.msra.mxu0 0.0
    %1027 = vmatprep.subr.mxu0 0.0
    %1028 = vmatpush1.msra.mxu0 0.0
    %1029 = vmatprep.subr.mxu0 0.0
    %1030 = vmatpush1.msra.mxu0 0.0
    %1031 = vmatprep.subr.mxu0 0.0
    %1032 = vmatpush1.msra.mxu0 0.0
    %1033 = vmatprep.subr.mxu0 0.0
    %1034 = vmatpush1.msra.mxu0 0.0
    %1035 = vmatprep.subr.mxu0 0.0
    %1036 = vmatpush1.msra.mxu0 0.0
    %1037 = vmatprep.subr.mxu0 0.0
    %1038 = vmatpush1.msra.mxu0 0.0
    %1039 = vmatprep.subr.mxu0 0.0
    %1040 = vmatpush1.msra.mxu0 0.0
    %1041 = vmatprep.subr.mxu0 0.0
    %1042 = vmatpush1.msra.mxu0 0.0
    %1043 = vmatprep.subr.mxu0 0.0
    %1044 = vmatpush1.msra.mxu0 0.0
    %1045 = vmatprep.subr.mxu0 0.0
    %1046 = vmatpush1.msra.mxu0 0.0
    %1047 = vmatprep.subr.mxu0 0.0
    %1048 = vmatpush1.msra.mxu0 0.0
    %1049 = vmatprep.subr.mxu0 0.0
    %1050 = vmatpush1.msra.mxu0 %v1021
    %1051 = vmatprep.subr.mxu0 0.0
    %1052 = vmatpush1.msra.mxu0 %v1015
    %1053 = vmatprep.subr.mxu0 0.0
    %1054 = vmatpush1.msra.mxu0 %v1014
    %1055 = vmatprep.subr.mxu0 0.0
    %1056 = vmatpush2.msra.mxu0 0.0
    %1057 = vmatprep.subr.mxu0 0.0
    %1058 = vmatpush2.msra.mxu0 0.0
    %1059 = vmatprep.subr.mxu0 0.0
    %1060 = vmatpush2.msra.mxu0 0.0
    %1061 = vmatprep.subr.mxu0 0.0
    %1062 = vmatpush2.msra.mxu0 0.0
    %1063 = vmatprep.subr.mxu0 0.0
    %1064 = vmatpush2.msra.mxu0 0.0
    %1065 = vmatprep.subr.mxu0 0.0
    %1066 = vmatpush2.msra.mxu0 0.0
    %1067 = vmatprep.subr.mxu0 0.0
    %1068 = vmatpush2.msra.mxu0 0.0
    %1069 = vmatprep.subr.mxu0 0.0
    %1070 = vmatpush2.msra.mxu0 0.0
    %1071 = vmatprep.subr.mxu0 0.0
    %1072 = vmatpush2.msra.mxu0 0.0
    %1073 = vmatprep.subr.mxu0 0.0
    %1074 = vmatpush2.msra.mxu0 0.0
    %1075 = vmatprep.subr.mxu0 0.0
    %1076 = vmatpush2.msra.mxu0 0.0
    %1077 = vmatprep.subr.mxu0 0.0
    %1078 = vmatpush2.msra.mxu0 0.0
    %1079 = vmatprep.subr.mxu0 0.0
    %1080 = vmatpush2.msra.mxu0 0.0
    %1081 = vmatprep.subr.mxu0 0.0
    %1082 = vmatpush2.msra.mxu0 0.0
    %1083 = vmatprep.subr.mxu0 0.0
    %1084 = vmatpush2.msra.mxu0 0.0
    %1085 = vmatprep.subr.mxu0 0.0
    %1086 = vmatpush2.msra.mxu0 0.0
    %1087 = vmatprep.mubr.f32.mxu0 0.0
    %1088 = vmatmul.mubr.f32.gmra.mxu0 %v1018
    %v1089 = vpop.f32.mrf.mxu0
    %v1090 = vadd.f32 0.0, %v1089
    %v1091 = vpop.f32.mrf.mxu0
    %1092 = vdwg.mxu0
    %v1093 = vadd.f32 %v1009, %v1090
    %v1094 = vld [vmem:[#allocation3 + $0x9] sm:$0x7f]
    %s1095 = scalar_lea.vmem %s3, 72
    %v1096 = vld [vmem:[%s1095] sm:$0xff]
    %v1097 = vld [vmem:[%s1095 + $0x8] sm:$0xff]
    %v1098 = vld [vmem:[%s1095 + $0x10] sm:$0x3]
    %v1100 = vsel %vm36, %v1094, 0
    %v1103 = vsel %vm124, %v1098, 0
    %1105 = vmatprep.subr.mxu0 0.0
    %1106 = vmatpush1.msra.mxu0 0.0
    %1107 = vmatprep.subr.mxu0 0.0
    %1108 = vmatpush1.msra.mxu0 0.0
    %1109 = vmatprep.subr.mxu0 0.0
    %1110 = vmatpush1.msra.mxu0 0.0
    %1111 = vmatprep.subr.mxu0 0.0
    %1112 = vmatpush1.msra.mxu0 0.0
    %1113 = vmatprep.subr.mxu0 0.0
    %1114 = vmatpush1.msra.mxu0 0.0
    %1115 = vmatprep.subr.mxu0 0.0
    %1116 = vmatpush1.msra.mxu0 0.0
    %1117 = vmatprep.subr.mxu0 0.0
    %1118 = vmatpush1.msra.mxu0 0.0
    %1119 = vmatprep.subr.mxu0 0.0
    %1120 = vmatpush1.msra.mxu0 0.0
    %1121 = vmatprep.subr.mxu0 0.0
    %1122 = vmatpush1.msra.mxu0 0.0
    %1123 = vmatprep.subr.mxu0 0.0
    %1124 = vmatpush1.msra.mxu0 0.0
    %1125 = vmatprep.subr.mxu0 0.0
    %1126 = vmatpush1.msra.mxu0 0.0
    %1127 = vmatprep.subr.mxu0 0.0
    %1128 = vmatpush1.msra.mxu0 0.0
    %1129 = vmatprep.subr.mxu0 0.0
    %1130 = vmatpush1.msra.mxu0 0.0
    %1131 = vmatprep.subr.mxu0 0.0
    %1132 = vmatpush1.msra.mxu0 %v1103
    %1133 = vmatprep.subr.mxu0 0.0
    %1134 = vmatpush1.msra.mxu0 %v1097
    %1135 = vmatprep.subr.mxu0 0.0
    %1136 = vmatpush1.msra.mxu0 %v1096
    %1137 = vmatprep.subr.mxu0 0.0
    %1138 = vmatpush2.msra.mxu0 0.0
    %1139 = vmatprep.subr.mxu0 0.0
    %1140 = vmatpush2.msra.mxu0 0.0
    %1141 = vmatprep.subr.mxu0 0.0
    %1142 = vmatpush2.msra.mxu0 0.0
    %1143 = vmatprep.subr.mxu0 0.0
    %1144 = vmatpush2.msra.mxu0 0.0
    %1145 = vmatprep.subr.mxu0 0.0
    %1146 = vmatpush2.msra.mxu0 0.0
    %1147 = vmatprep.subr.mxu0 0.0
    %1148 = vmatpush2.msra.mxu0 0.0
    %1149 = vmatprep.subr.mxu0 0.0
    %1150 = vmatpush2.msra.mxu0 0.0
    %1151 = vmatprep.subr.mxu0 0.0
    %1152 = vmatpush2.msra.mxu0 0.0
    %1153 = vmatprep.subr.mxu0 0.0
    %1154 = vmatpush2.msra.mxu0 0.0
    %1155 = vmatprep.subr.mxu0 0.0
    %1156 = vmatpush2.msra.mxu0 0.0
    %1157 = vmatprep.subr.mxu0 0.0
    %1158 = vmatpush2.msra.mxu0 0.0
    %1159 = vmatprep.subr.mxu0 0.0
    %1160 = vmatpush2.msra.mxu0 0.0
    %1161 = vmatprep.subr.mxu0 0.0
    %1162 = vmatpush2.msra.mxu0 0.0
    %1163 = vmatprep.subr.mxu0 0.0
    %1164 = vmatpush2.msra.mxu0 0.0
    %1165 = vmatprep.subr.mxu0 0.0
    %1166 = vmatpush2.msra.mxu0 0.0
    %1167 = vmatprep.subr.mxu0 0.0
    %1168 = vmatpush2.msra.mxu0 0.0
    %1169 = vmatprep.mubr.f32.mxu0 0.0
    %1170 = vmatmul.mubr.f32.gmra.mxu0 %v1100
    %v1171 = vpop.f32.mrf.mxu0
    %v1172 = vadd.f32 0.0, %v1171
    %v1173 = vpop.f32.mrf.mxu0
    %1174 = vdwg.mxu0
    %v1175 = vadd.f32 %v1093, %v1172
    %v1176 = vld [vmem:[#allocation3 + $0xa] sm:$0x7f]
    %s1177 = scalar_lea.vmem %s3, 96
    %v1178 = vld [vmem:[%s1177] sm:$0xff]
    %v1179 = vld [vmem:[%s1177 + $0x8] sm:$0xff]
    %v1180 = vld [vmem:[%s1177 + $0x10] sm:$0x3]
    %v1182 = vsel %vm36, %v1176, 0
    %v1185 = vsel %vm124, %v1180, 0
    %1187 = vmatprep.subr.mxu0 0.0
    %1188 = vmatpush1.msra.mxu0 0.0
    %1189 = vmatprep.subr.mxu0 0.0
    %1190 = vmatpush1.msra.mxu0 0.0
    %1191 = vmatprep.subr.mxu0 0.0
    %1192 = vmatpush1.msra.mxu0 0.0
    %1193 = vmatprep.subr.mxu0 0.0
    %1194 = vmatpush1.msra.mxu0 0.0
    %1195 = vmatprep.subr.mxu0 0.0
    %1196 = vmatpush1.msra.mxu0 0.0
    %1197 = vmatprep.subr.mxu0 0.0
    %1198 = vmatpush1.msra.mxu0 0.0
    %1199 = vmatprep.subr.mxu0 0.0
    %1200 = vmatpush1.msra.mxu0 0.0
    %1201 = vmatprep.subr.mxu0 0.0
    %1202 = vmatpush1.msra.mxu0 0.0
    %1203 = vmatprep.subr.mxu0 0.0
    %1204 = vmatpush1.msra.mxu0 0.0
    %1205 = vmatprep.subr.mxu0 0.0
    %1206 = vmatpush1.msra.mxu0 0.0
    %1207 = vmatprep.subr.mxu0 0.0
    %1208 = vmatpush1.msra.mxu0 0.0
    %1209 = vmatprep.subr.mxu0 0.0
    %1210 = vmatpush1.msra.mxu0 0.0
    %1211 = vmatprep.subr.mxu0 0.0
    %1212 = vmatpush1.msra.mxu0 0.0
    %1213 = vmatprep.subr.mxu0 0.0
    %1214 = vmatpush1.msra.mxu0 %v1185
    %1215 = vmatprep.subr.mxu0 0.0
    %1216 = vmatpush1.msra.mxu0 %v1179
    %1217 = vmatprep.subr.mxu0 0.0
    %1218 = vmatpush1.msra.mxu0 %v1178
    %1219 = vmatprep.subr.mxu0 0.0
    %1220 = vmatpush2.msra.mxu0 0.0
    %1221 = vmatprep.subr.mxu0 0.0
    %1222 = vmatpush2.msra.mxu0 0.0
    %1223 = vmatprep.subr.mxu0 0.0
    %1224 = vmatpush2.msra.mxu0 0.0
    %1225 = vmatprep.subr.mxu0 0.0
    %1226 = vmatpush2.msra.mxu0 0.0
    %1227 = vmatprep.subr.mxu0 0.0
    %1228 = vmatpush2.msra.mxu0 0.0
    %1229 = vmatprep.subr.mxu0 0.0
    %1230 = vmatpush2.msra.mxu0 0.0
    %1231 = vmatprep.subr.mxu0 0.0
    %1232 = vmatpush2.msra.mxu0 0.0
    %1233 = vmatprep.subr.mxu0 0.0
    %1234 = vmatpush2.msra.mxu0 0.0
    %1235 = vmatprep.subr.mxu0 0.0
    %1236 = vmatpush2.msra.mxu0 0.0
    %1237 = vmatprep.subr.mxu0 0.0
    %1238 = vmatpush2.msra.mxu0 0.0
    %1239 = vmatprep.subr.mxu0 0.0
    %1240 = vmatpush2.msra.mxu0 0.0
    %1241 = vmatprep.subr.mxu0 0.0
    %1242 = vmatpush2.msra.mxu0 0.0
    %1243 = vmatprep.subr.mxu0 0.0
    %1244 = vmatpush2.msra.mxu0 0.0
    %1245 = vmatprep.subr.mxu0 0.0
    %1246 = vmatpush2.msra.mxu0 0.0
    %1247 = vmatprep.subr.mxu0 0.0
    %1248 = vmatpush2.msra.mxu0 0.0
    %1249 = vmatprep.subr.mxu0 0.0
    %1250 = vmatpush2.msra.mxu0 0.0
    %1251 = vmatprep.mubr.f32.mxu0 0.0
    %1252 = vmatmul.mubr.f32.gmra.mxu0 %v1182
    %v1253 = vpop.f32.mrf.mxu0
    %v1254 = vadd.f32 0.0, %v1253
    %v1255 = vpop.f32.mrf.mxu0
    %1256 = vdwg.mxu0
    %v1257 = vadd.f32 %v1175, %v1254
    %v1258 = vld [vmem:[#allocation3 + $0xb] sm:$0x7f]
    %s1259 = scalar_lea.vmem %s3, 120
    %v1260 = vld [vmem:[%s1259] sm:$0xff]
    %v1261 = vld [vmem:[%s1259 + $0x8] sm:$0xff]
    %v1262 = vld [vmem:[%s1259 + $0x10] sm:$0x3]
    %v1264 = vsel %vm36, %v1258, 0
    %v1267 = vsel %vm124, %v1262, 0
    %1269 = vmatprep.subr.mxu0 0.0
    %1270 = vmatpush1.msra.mxu0 0.0
    %1271 = vmatprep.subr.mxu0 0.0
    %1272 = vmatpush1.msra.mxu0 0.0
    %1273 = vmatprep.subr.mxu0 0.0
    %1274 = vmatpush1.msra.mxu0 0.0
    %1275 = vmatprep.subr.mxu0 0.0
    %1276 = vmatpush1.msra.mxu0 0.0
    %1277 = vmatprep.subr.mxu0 0.0
    %1278 = vmatpush1.msra.mxu0 0.0
    %1279 = vmatprep.subr.mxu0 0.0
    %1280 = vmatpush1.msra.mxu0 0.0
    %1281 = vmatprep.subr.mxu0 0.0
    %1282 = vmatpush1.msra.mxu0 0.0
    %1283 = vmatprep.subr.mxu0 0.0
    %1284 = vmatpush1.msra.mxu0 0.0
    %1285 = vmatprep.subr.mxu0 0.0
    %1286 = vmatpush1.msra.mxu0 0.0
    %1287 = vmatprep.subr.mxu0 0.0
    %1288 = vmatpush1.msra.mxu0 0.0
    %1289 = vmatprep.subr.mxu0 0.0
    %1290 = vmatpush1.msra.mxu0 0.0
    %1291 = vmatprep.subr.mxu0 0.0
    %1292 = vmatpush1.msra.mxu0 0.0
    %1293 = vmatprep.subr.mxu0 0.0
    %1294 = vmatpush1.msra.mxu0 0.0
    %1295 = vmatprep.subr.mxu0 0.0
    %1296 = vmatpush1.msra.mxu0 %v1267
    %1297 = vmatprep.subr.mxu0 0.0
    %1298 = vmatpush1.msra.mxu0 %v1261
    %1299 = vmatprep.subr.mxu0 0.0
    %1300 = vmatpush1.msra.mxu0 %v1260
    %1301 = vmatprep.subr.mxu0 0.0
    %1302 = vmatpush2.msra.mxu0 0.0
    %1303 = vmatprep.subr.mxu0 0.0
    %1304 = vmatpush2.msra.mxu0 0.0
    %1305 = vmatprep.subr.mxu0 0.0
    %1306 = vmatpush2.msra.mxu0 0.0
    %1307 = vmatprep.subr.mxu0 0.0
    %1308 = vmatpush2.msra.mxu0 0.0
    %1309 = vmatprep.subr.mxu0 0.0
    %1310 = vmatpush2.msra.mxu0 0.0
    %1311 = vmatprep.subr.mxu0 0.0
    %1312 = vmatpush2.msra.mxu0 0.0
    %1313 = vmatprep.subr.mxu0 0.0
    %1314 = vmatpush2.msra.mxu0 0.0
    %1315 = vmatprep.subr.mxu0 0.0
    %1316 = vmatpush2.msra.mxu0 0.0
    %1317 = vmatprep.subr.mxu0 0.0
    %1318 = vmatpush2.msra.mxu0 0.0
    %1319 = vmatprep.subr.mxu0 0.0
    %1320 = vmatpush2.msra.mxu0 0.0
    %1321 = vmatprep.subr.mxu0 0.0
    %1322 = vmatpush2.msra.mxu0 0.0
    %1323 = vmatprep.subr.mxu0 0.0
    %1324 = vmatpush2.msra.mxu0 0.0
    %1325 = vmatprep.subr.mxu0 0.0
    %1326 = vmatpush2.msra.mxu0 0.0
    %1327 = vmatprep.subr.mxu0 0.0
    %1328 = vmatpush2.msra.mxu0 0.0
    %1329 = vmatprep.subr.mxu0 0.0
    %1330 = vmatpush2.msra.mxu0 0.0
    %1331 = vmatprep.subr.mxu0 0.0
    %1332 = vmatpush2.msra.mxu0 0.0
    %1333 = vmatprep.mubr.f32.mxu0 0.0
    %1334 = vmatmul.mubr.f32.gmra.mxu0 %v1264
    %v1335 = vpop.f32.mrf.mxu0
    %v1336 = vadd.f32 0.0, %v1335
    %v1337 = vpop.f32.mrf.mxu0
    %1338 = vdwg.mxu0
    %v1339 = vadd.f32 %v1257, %v1336
    %s1340 = sld [smem:[#allocation8 + $0x10]]
    %v1341 = vstv %s1340
    %v1342 = vadd.f32 %v1339, %v1341
    %v1343 = vmax.f32 %v1342, 0.0
    %vm1344 = vcmask 14336
    %1345 = vst.msk [vmem:[#allocation4 + $0x1] sm:$0x7f] %vm1344, %v1343
    %v1346 = vld [vmem:[#allocation3] sm:$0x7f]
    %s1347 = scalar_lea.vmem %s3, 144
    %v1348 = vld [vmem:[%s1347] sm:$0xff]
    %v1349 = vld [vmem:[%s1347 + $0x8] sm:$0xff]
    %v1350 = vld [vmem:[%s1347 + $0x10] sm:$0x3]
    %v1351 = vld [vmem:[#allocation3 + $0x1] sm:$0x7f]
    %s1352 = scalar_lea.vmem %s3, 168
    %v1353 = vld [vmem:[%s1352] sm:$0xff]
    %v1354 = vld [vmem:[%s1352 + $0x8] sm:$0xff]
    %v1355 = vld [vmem:[%s1352 + $0x10] sm:$0x3]
    %v1357 = vsel %vm36, %v1351, 0
    %v1360 = vsel %vm124, %v1355, 0
    %1362 = vmatprep.subr.mxu0 0.0
    %1363 = vmatpush1.msra.mxu0 0.0
    %1364 = vmatprep.subr.mxu0 0.0
    %1365 = vmatpush1.msra.mxu0 0.0
    %1366 = vmatprep.subr.mxu0 0.0
    %1367 = vmatpush1.msra.mxu0 0.0
    %1368 = vmatprep.subr.mxu0 0.0
    %1369 = vmatpush1.msra.mxu0 0.0
    %1370 = vmatprep.subr.mxu0 0.0
    %1371 = vmatpush1.msra.mxu0 0.0
    %1372 = vmatprep.subr.mxu0 0.0
    %1373 = vmatpush1.msra.mxu0 0.0
    %1374 = vmatprep.subr.mxu0 0.0
    %1375 = vmatpush1.msra.mxu0 0.0
    %1376 = vmatprep.subr.mxu0 0.0
    %1377 = vmatpush1.msra.mxu0 0.0
    %1378 = vmatprep.subr.mxu0 0.0
    %1379 = vmatpush1.msra.mxu0 0.0
    %1380 = vmatprep.subr.mxu0 0.0
    %1381 = vmatpush1.msra.mxu0 0.0
    %1382 = vmatprep.subr.mxu0 0.0
    %1383 = vmatpush1.msra.mxu0 0.0
    %1384 = vmatprep.subr.mxu0 0.0
    %1385 = vmatpush1.msra.mxu0 0.0
    %1386 = vmatprep.subr.mxu0 0.0
    %1387 = vmatpush1.msra.mxu0 0.0
    %1388 = vmatprep.subr.mxu0 0.0
    %1389 = vmatpush1.msra.mxu0 %v1360
    %1390 = vmatprep.subr.mxu0 0.0
    %1391 = vmatpush1.msra.mxu0 %v1354
    %1392 = vmatprep.subr.mxu0 0.0
    %1393 = vmatpush1.msra.mxu0 %v1353
    %1394 = vmatprep.subr.mxu0 0.0
    %1395 = vmatpush2.msra.mxu0 0.0
    %1396 = vmatprep.subr.mxu0 0.0
    %1397 = vmatpush2.msra.mxu0 0.0
    %1398 = vmatprep.subr.mxu0 0.0
    %1399 = vmatpush2.msra.mxu0 0.0
    %1400 = vmatprep.subr.mxu0 0.0
    %1401 = vmatpush2.msra.mxu0 0.0
    %1402 = vmatprep.subr.mxu0 0.0
    %1403 = vmatpush2.msra.mxu0 0.0
    %1404 = vmatprep.subr.mxu0 0.0
    %1405 = vmatpush2.msra.mxu0 0.0
    %1406 = vmatprep.subr.mxu0 0.0
    %1407 = vmatpush2.msra.mxu0 0.0
    %1408 = vmatprep.subr.mxu0 0.0
    %1409 = vmatpush2.msra.mxu0 0.0
    %1410 = vmatprep.subr.mxu0 0.0
    %1411 = vmatpush2.msra.mxu0 0.0
    %1412 = vmatprep.subr.mxu0 0.0
    %1413 = vmatpush2.msra.mxu0 0.0
    %1414 = vmatprep.subr.mxu0 0.0
    %1415 = vmatpush2.msra.mxu0 0.0
    %1416 = vmatprep.subr.mxu0 0.0
    %1417 = vmatpush2.msra.mxu0 0.0
    %1418 = vmatprep.subr.mxu0 0.0
    %1419 = vmatpush2.msra.mxu0 0.0
    %1420 = vmatprep.subr.mxu0 0.0
    %1421 = vmatpush2.msra.mxu0 0.0
    %1422 = vmatprep.subr.mxu0 0.0
    %1423 = vmatpush2.msra.mxu0 0.0
    %1424 = vmatprep.subr.mxu0 0.0
    %1425 = vmatpush2.msra.mxu0 0.0
    %1426 = vmatprep.mubr.f32.mxu0 0.0
    %1427 = vmatmul.mubr.f32.gmra.mxu0 %v1357
    %v1428 = vpop.f32.mrf.mxu0
    %v1429 = vadd.f32 0.0, %v1428
    %v1430 = vpop.f32.mrf.mxu0
    %1431 = vdwg.mxu0
    %v1433 = vsel %vm36, %v1346, 0
    %v1436 = vsel %vm124, %v1350, 0
    %1438 = vmatprep.subr.mxu0 0.0
    %1439 = vmatpush1.msra.mxu0 0.0
    %1440 = vmatprep.subr.mxu0 0.0
    %1441 = vmatpush1.msra.mxu0 0.0
    %1442 = vmatprep.subr.mxu0 0.0
    %1443 = vmatpush1.msra.mxu0 0.0
    %1444 = vmatprep.subr.mxu0 0.0
    %1445 = vmatpush1.msra.mxu0 0.0
    %1446 = vmatprep.subr.mxu0 0.0
    %1447 = vmatpush1.msra.mxu0 0.0
    %1448 = vmatprep.subr.mxu0 0.0
    %1449 = vmatpush1.msra.mxu0 0.0
    %1450 = vmatprep.subr.mxu0 0.0
    %1451 = vmatpush1.msra.mxu0 0.0
    %1452 = vmatprep.subr.mxu0 0.0
    %1453 = vmatpush1.msra.mxu0 0.0
    %1454 = vmatprep.subr.mxu0 0.0
    %1455 = vmatpush1.msra.mxu0 0.0
    %1456 = vmatprep.subr.mxu0 0.0
    %1457 = vmatpush1.msra.mxu0 0.0
    %1458 = vmatprep.subr.mxu0 0.0
    %1459 = vmatpush1.msra.mxu0 0.0
    %1460 = vmatprep.subr.mxu0 0.0
    %1461 = vmatpush1.msra.mxu0 0.0
    %1462 = vmatprep.subr.mxu0 0.0
    %1463 = vmatpush1.msra.mxu0 0.0
    %1464 = vmatprep.subr.mxu0 0.0
    %1465 = vmatpush1.msra.mxu0 %v1436
    %1466 = vmatprep.subr.mxu0 0.0
    %1467 = vmatpush1.msra.mxu0 %v1349
    %1468 = vmatprep.subr.mxu0 0.0
    %1469 = vmatpush1.msra.mxu0 %v1348
    %1470 = vmatprep.subr.mxu0 0.0
    %1471 = vmatpush2.msra.mxu0 0.0
    %1472 = vmatprep.subr.mxu0 0.0
    %1473 = vmatpush2.msra.mxu0 0.0
    %1474 = vmatprep.subr.mxu0 0.0
    %1475 = vmatpush2.msra.mxu0 0.0
    %1476 = vmatprep.subr.mxu0 0.0
    %1477 = vmatpush2.msra.mxu0 0.0
    %1478 = vmatprep.subr.mxu0 0.0
    %1479 = vmatpush2.msra.mxu0 0.0
    %1480 = vmatprep.subr.mxu0 0.0
    %1481 = vmatpush2.msra.mxu0 0.0
    %1482 = vmatprep.subr.mxu0 0.0
    %1483 = vmatpush2.msra.mxu0 0.0
    %1484 = vmatprep.subr.mxu0 0.0
    %1485 = vmatpush2.msra.mxu0 0.0
    %1486 = vmatprep.subr.mxu0 0.0
    %1487 = vmatpush2.msra.mxu0 0.0
    %1488 = vmatprep.subr.mxu0 0.0
    %1489 = vmatpush2.msra.mxu0 0.0
    %1490 = vmatprep.subr.mxu0 0.0
    %1491 = vmatpush2.msra.mxu0 0.0
    %1492 = vmatprep.subr.mxu0 0.0
    %1493 = vmatpush2.msra.mxu0 0.0
    %1494 = vmatprep.subr.mxu0 0.0
    %1495 = vmatpush2.msra.mxu0 0.0
    %1496 = vmatprep.subr.mxu0 0.0
    %1497 = vmatpush2.msra.mxu0 0.0
    %1498 = vmatprep.subr.mxu0 0.0
    %1499 = vmatpush2.msra.mxu0 0.0
    %1500 = vmatprep.subr.mxu0 0.0
    %1501 = vmatpush2.msra.mxu0 0.0
    %1502 = vmatprep.mubr.f32.mxu0 0.0
    %1503 = vmatmul.mubr.f32.gmra.mxu0 %v1433
    %v1504 = vpop.f32.mrf.mxu0
    %v1505 = vadd.f32 %v1429, %v1504
    %v1506 = vpop.f32.mrf.mxu0
    %1507 = vdwg.mxu0
    %v1508 = vld [vmem:[#allocation3 + $0x2] sm:$0x7f]
    %s1509 = scalar_lea.vmem %s3, 192
    %v1510 = vld [vmem:[%s1509] sm:$0xff]
    %v1511 = vld [vmem:[%s1509 + $0x8] sm:$0xff]
    %v1512 = vld [vmem:[%s1509 + $0x10] sm:$0x3]
    %v1514 = vsel %vm36, %v1508, 0
    %v1517 = vsel %vm124, %v1512, 0
    %1519 = vmatprep.subr.mxu0 0.0
    %1520 = vmatpush1.msra.mxu0 0.0
    %1521 = vmatprep.subr.mxu0 0.0
    %1522 = vmatpush1.msra.mxu0 0.0
    %1523 = vmatprep.subr.mxu0 0.0
    %1524 = vmatpush1.msra.mxu0 0.0
    %1525 = vmatprep.subr.mxu0 0.0
    %1526 = vmatpush1.msra.mxu0 0.0
    %1527 = vmatprep.subr.mxu0 0.0
    %1528 = vmatpush1.msra.mxu0 0.0
    %1529 = vmatprep.subr.mxu0 0.0
    %1530 = vmatpush1.msra.mxu0 0.0
    %1531 = vmatprep.subr.mxu0 0.0
    %1532 = vmatpush1.msra.mxu0 0.0
    %1533 = vmatprep.subr.mxu0 0.0
    %1534 = vmatpush1.msra.mxu0 0.0
    %1535 = vmatprep.subr.mxu0 0.0
    %1536 = vmatpush1.msra.mxu0 0.0
    %1537 = vmatprep.subr.mxu0 0.0
    %1538 = vmatpush1.msra.mxu0 0.0
    %1539 = vmatprep.subr.mxu0 0.0
    %1540 = vmatpush1.msra.mxu0 0.0
    %1541 = vmatprep.subr.mxu0 0.0
    %1542 = vmatpush1.msra.mxu0 0.0
    %1543 = vmatprep.subr.mxu0 0.0
    %1544 = vmatpush1.msra.mxu0 0.0
    %1545 = vmatprep.subr.mxu0 0.0
    %1546 = vmatpush1.msra.mxu0 %v1517
    %1547 = vmatprep.subr.mxu0 0.0
    %1548 = vmatpush1.msra.mxu0 %v1511
    %1549 = vmatprep.subr.mxu0 0.0
    %1550 = vmatpush1.msra.mxu0 %v1510
    %1551 = vmatprep.subr.mxu0 0.0
    %1552 = vmatpush2.msra.mxu0 0.0
    %1553 = vmatprep.subr.mxu0 0.0
    %1554 = vmatpush2.msra.mxu0 0.0
    %1555 = vmatprep.subr.mxu0 0.0
    %1556 = vmatpush2.msra.mxu0 0.0
    %1557 = vmatprep.subr.mxu0 0.0
    %1558 = vmatpush2.msra.mxu0 0.0
    %1559 = vmatprep.subr.mxu0 0.0
    %1560 = vmatpush2.msra.mxu0 0.0
    %1561 = vmatprep.subr.mxu0 0.0
    %1562 = vmatpush2.msra.mxu0 0.0
    %1563 = vmatprep.subr.mxu0 0.0
    %1564 = vmatpush2.msra.mxu0 0.0
    %1565 = vmatprep.subr.mxu0 0.0
    %1566 = vmatpush2.msra.mxu0 0.0
    %1567 = vmatprep.subr.mxu0 0.0
    %1568 = vmatpush2.msra.mxu0 0.0
    %1569 = vmatprep.subr.mxu0 0.0
    %1570 = vmatpush2.msra.mxu0 0.0
    %1571 = vmatprep.subr.mxu0 0.0
    %1572 = vmatpush2.msra.mxu0 0.0
    %1573 = vmatprep.subr.mxu0 0.0
    %1574 = vmatpush2.msra.mxu0 0.0
    %1575 = vmatprep.subr.mxu0 0.0
    %1576 = vmatpush2.msra.mxu0 0.0
    %1577 = vmatprep.subr.mxu0 0.0
    %1578 = vmatpush2.msra.mxu0 0.0
    %1579 = vmatprep.subr.mxu0 0.0
    %1580 = vmatpush2.msra.mxu0 0.0
    %1581 = vmatprep.subr.mxu0 0.0
    %1582 = vmatpush2.msra.mxu0 0.0
    %1583 = vmatprep.mubr.f32.mxu0 0.0
    %1584 = vmatmul.mubr.f32.gmra.mxu0 %v1514
    %v1585 = vpop.f32.mrf.mxu0
    %v1586 = vadd.f32 0.0, %v1585
    %v1587 = vpop.f32.mrf.mxu0
    %1588 = vdwg.mxu0
    %v1589 = vadd.f32 %v1505, %v1586
    %v1590 = vld [vmem:[#allocation3 + $0x9] sm:$0x7f]
    %s1591 = scalar_lea.vmem %s3, 216
    %v1592 = vld [vmem:[%s1591] sm:$0xff]
    %v1593 = vld [vmem:[%s1591 + $0x8] sm:$0xff]
    %v1594 = vld [vmem:[%s1591 + $0x10] sm:$0x3]
    %v1596 = vsel %vm36, %v1590, 0
    %v1599 = vsel %vm124, %v1594, 0
    %1601 = vmatprep.subr.mxu0 0.0
    %1602 = vmatpush1.msra.mxu0 0.0
    %1603 = vmatprep.subr.mxu0 0.0
    %1604 = vmatpush1.msra.mxu0 0.0
    %1605 = vmatprep.subr.mxu0 0.0
    %1606 = vmatpush1.msra.mxu0 0.0
    %1607 = vmatprep.subr.mxu0 0.0
    %1608 = vmatpush1.msra.mxu0 0.0
    %1609 = vmatprep.subr.mxu0 0.0
    %1610 = vmatpush1.msra.mxu0 0.0
    %1611 = vmatprep.subr.mxu0 0.0
    %1612 = vmatpush1.msra.mxu0 0.0
    %1613 = vmatprep.subr.mxu0 0.0
    %1614 = vmatpush1.msra.mxu0 0.0
    %1615 = vmatprep.subr.mxu0 0.0
    %1616 = vmatpush1.msra.mxu0 0.0
    %1617 = vmatprep.subr.mxu0 0.0
    %1618 = vmatpush1.msra.mxu0 0.0
    %1619 = vmatprep.subr.mxu0 0.0
    %1620 = vmatpush1.msra.mxu0 0.0
    %1621 = vmatprep.subr.mxu0 0.0
    %1622 = vmatpush1.msra.mxu0 0.0
    %1623 = vmatprep.subr.mxu0 0.0
    %1624 = vmatpush1.msra.mxu0 0.0
    %1625 = vmatprep.subr.mxu0 0.0
    %1626 = vmatpush1.msra.mxu0 0.0
    %1627 = vmatprep.subr.mxu0 0.0
    %1628 = vmatpush1.msra.mxu0 %v1599
    %1629 = vmatprep.subr.mxu0 0.0
    %1630 = vmatpush1.msra.mxu0 %v1593
    %1631 = vmatprep.subr.mxu0 0.0
    %1632 = vmatpush1.msra.mxu0 %v1592
    %1633 = vmatprep.subr.mxu0 0.0
    %1634 = vmatpush2.msra.mxu0 0.0
    %1635 = vmatprep.subr.mxu0 0.0
    %1636 = vmatpush2.msra.mxu0 0.0
    %1637 = vmatprep.subr.mxu0 0.0
    %1638 = vmatpush2.msra.mxu0 0.0
    %1639 = vmatprep.subr.mxu0 0.0
    %1640 = vmatpush2.msra.mxu0 0.0
    %1641 = vmatprep.subr.mxu0 0.0
    %1642 = vmatpush2.msra.mxu0 0.0
    %1643 = vmatprep.subr.mxu0 0.0
    %1644 = vmatpush2.msra.mxu0 0.0
    %1645 = vmatprep.subr.mxu0 0.0
    %1646 = vmatpush2.msra.mxu0 0.0
    %1647 = vmatprep.subr.mxu0 0.0
    %1648 = vmatpush2.msra.mxu0 0.0
    %1649 = vmatprep.subr.mxu0 0.0
    %1650 = vmatpush2.msra.mxu0 0.0
    %1651 = vmatprep.subr.mxu0 0.0
    %1652 = vmatpush2.msra.mxu0 0.0
    %1653 = vmatprep.subr.mxu0 0.0
    %1654 = vmatpush2.msra.mxu0 0.0
    %1655 = vmatprep.subr.mxu0 0.0
    %1656 = vmatpush2.msra.mxu0 0.0
    %1657 = vmatprep.subr.mxu0 0.0
    %1658 = vmatpush2.msra.mxu0 0.0
    %1659 = vmatprep.subr.mxu0 0.0
    %1660 = vmatpush2.msra.mxu0 0.0
    %1661 = vmatprep.subr.mxu0 0.0
    %1662 = vmatpush2.msra.mxu0 0.0
    %1663 = vmatprep.subr.mxu0 0.0
    %1664 = vmatpush2.msra.mxu0 0.0
    %1665 = vmatprep.mubr.f32.mxu0 0.0
    %1666 = vmatmul.mubr.f32.gmra.mxu0 %v1596
    %v1667 = vpop.f32.mrf.mxu0
    %v1668 = vadd.f32 0.0, %v1667
    %v1669 = vpop.f32.mrf.mxu0
    %1670 = vdwg.mxu0
    %v1671 = vadd.f32 %v1589, %v1668
    %v1672 = vld [vmem:[#allocation3 + $0xa] sm:$0x7f]
    %s1673 = scalar_lea.vmem %s3, 240
    %v1674 = vld [vmem:[%s1673] sm:$0xff]
    %v1675 = vld [vmem:[%s1673 + $0x8] sm:$0xff]
    %v1676 = vld [vmem:[%s1673 + $0x10] sm:$0x3]
    %v1678 = vsel %vm36, %v1672, 0
    %v1681 = vsel %vm124, %v1676, 0
    %1683 = vmatprep.subr.mxu0 0.0
    %1684 = vmatpush1.msra.mxu0 0.0
    %1685 = vmatprep.subr.mxu0 0.0
    %1686 = vmatpush1.msra.mxu0 0.0
    %1687 = vmatprep.subr.mxu0 0.0
    %1688 = vmatpush1.msra.mxu0 0.0
    %1689 = vmatprep.subr.mxu0 0.0
    %1690 = vmatpush1.msra.mxu0 0.0
    %1691 = vmatprep.subr.mxu0 0.0
    %1692 = vmatpush1.msra.mxu0 0.0
    %1693 = vmatprep.subr.mxu0 0.0
    %1694 = vmatpush1.msra.mxu0 0.0
    %1695 = vmatprep.subr.mxu0 0.0
    %1696 = vmatpush1.msra.mxu0 0.0
    %1697 = vmatprep.subr.mxu0 0.0
    %1698 = vmatpush1.msra.mxu0 0.0
    %1699 = vmatprep.subr.mxu0 0.0
    %1700 = vmatpush1.msra.mxu0 0.0
    %1701 = vmatprep.subr.mxu0 0.0
    %1702 = vmatpush1.msra.mxu0 0.0
    %1703 = vmatprep.subr.mxu0 0.0
    %1704 = vmatpush1.msra.mxu0 0.0
    %1705 = vmatprep.subr.mxu0 0.0
    %1706 = vmatpush1.msra.mxu0 0.0
    %1707 = vmatprep.subr.mxu0 0.0
    %1708 = vmatpush1.msra.mxu0 0.0
    %1709 = vmatprep.subr.mxu0 0.0
    %1710 = vmatpush1.msra.mxu0 %v1681
    %1711 = vmatprep.subr.mxu0 0.0
    %1712 = vmatpush1.msra.mxu0 %v1675
    %1713 = vmatprep.subr.mxu0 0.0
    %1714 = vmatpush1.msra.mxu0 %v1674
    %1715 = vmatprep.subr.mxu0 0.0
    %1716 = vmatpush2.msra.mxu0 0.0
    %1717 = vmatprep.subr.mxu0 0.0
    %1718 = vmatpush2.msra.mxu0 0.0
    %1719 = vmatprep.subr.mxu0 0.0
    %1720 = vmatpush2.msra.mxu0 0.0
    %1721 = vmatprep.subr.mxu0 0.0
    %1722 = vmatpush2.msra.mxu0 0.0
    %1723 = vmatprep.subr.mxu0 0.0
    %1724 = vmatpush2.msra.mxu0 0.0
    %1725 = vmatprep.subr.mxu0 0.0
    %1726 = vmatpush2.msra.mxu0 0.0
    %1727 = vmatprep.subr.mxu0 0.0
    %1728 = vmatpush2.msra.mxu0 0.0
    %1729 = vmatprep.subr.mxu0 0.0
    %1730 = vmatpush2.msra.mxu0 0.0
    %1731 = vmatprep.subr.mxu0 0.0
    %1732 = vmatpush2.msra.mxu0 0.0
    %1733 = vmatprep.subr.mxu0 0.0
    %1734 = vmatpush2.msra.mxu0 0.0
    %1735 = vmatprep.subr.mxu0 0.0
    %1736 = vmatpush2.msra.mxu0 0.0
    %1737 = vmatprep.subr.mxu0 0.0
    %1738 = vmatpush2.msra.mxu0 0.0
    %1739 = vmatprep.subr.mxu0 0.0
    %1740 = vmatpush2.msra.mxu0 0.0
    %1741 = vmatprep.subr.mxu0 0.0
    %1742 = vmatpush2.msra.mxu0 0.0
    %1743 = vmatprep.subr.mxu0 0.0
    %1744 = vmatpush2.msra.mxu0 0.0
    %1745 = vmatprep.subr.mxu0 0.0
    %1746 = vmatpush2.msra.mxu0 0.0
    %1747 = vmatprep.mubr.f32.mxu0 0.0
    %1748 = vmatmul.mubr.f32.gmra.mxu0 %v1678
    %v1749 = vpop.f32.mrf.mxu0
    %v1750 = vadd.f32 0.0, %v1749
    %v1751 = vpop.f32.mrf.mxu0
    %1752 = vdwg.mxu0
    %v1753 = vadd.f32 %v1671, %v1750
    %v1754 = vld [vmem:[#allocation3 + $0xb] sm:$0x7f]
    %s1755 = scalar_lea.vmem %s3, 264
    %v1756 = vld [vmem:[%s1755] sm:$0xff]
    %v1757 = vld [vmem:[%s1755 + $0x8] sm:$0xff]
    %v1758 = vld [vmem:[%s1755 + $0x10] sm:$0x3]
    %v1760 = vsel %vm36, %v1754, 0
    %v1763 = vsel %vm124, %v1758, 0
    %1765 = vmatprep.subr.mxu0 0.0
    %1766 = vmatpush1.msra.mxu0 0.0
    %1767 = vmatprep.subr.mxu0 0.0
    %1768 = vmatpush1.msra.mxu0 0.0
    %1769 = vmatprep.subr.mxu0 0.0
    %1770 = vmatpush1.msra.mxu0 0.0
    %1771 = vmatprep.subr.mxu0 0.0
    %1772 = vmatpush1.msra.mxu0 0.0
    %1773 = vmatprep.subr.mxu0 0.0
    %1774 = vmatpush1.msra.mxu0 0.0
    %1775 = vmatprep.subr.mxu0 0.0
    %1776 = vmatpush1.msra.mxu0 0.0
    %1777 = vmatprep.subr.mxu0 0.0
    %1778 = vmatpush1.msra.mxu0 0.0
    %1779 = vmatprep.subr.mxu0 0.0
    %1780 = vmatpush1.msra.mxu0 0.0
    %1781 = vmatprep.subr.mxu0 0.0
    %1782 = vmatpush1.msra.mxu0 0.0
    %1783 = vmatprep.subr.mxu0 0.0
    %1784 = vmatpush1.msra.mxu0 0.0
    %1785 = vmatprep.subr.mxu0 0.0
    %1786 = vmatpush1.msra.mxu0 0.0
    %1787 = vmatprep.subr.mxu0 0.0
    %1788 = vmatpush1.msra.mxu0 0.0
    %1789 = vmatprep.subr.mxu0 0.0
    %1790 = vmatpush1.msra.mxu0 0.0
    %1791 = vmatprep.subr.mxu0 0.0
    %1792 = vmatpush1.msra.mxu0 %v1763
    %1793 = vmatprep.subr.mxu0 0.0
    %1794 = vmatpush1.msra.mxu0 %v1757
    %1795 = vmatprep.subr.mxu0 0.0
    %1796 = vmatpush1.msra.mxu0 %v1756
    %1797 = vmatprep.subr.mxu0 0.0
    %1798 = vmatpush2.msra.mxu0 0.0
    %1799 = vmatprep.subr.mxu0 0.0
    %1800 = vmatpush2.msra.mxu0 0.0
    %1801 = vmatprep.subr.mxu0 0.0
    %1802 = vmatpush2.msra.mxu0 0.0
    %1803 = vmatprep.subr.mxu0 0.0
    %1804 = vmatpush2.msra.mxu0 0.0
    %1805 = vmatprep.subr.mxu0 0.0
    %1806 = vmatpush2.msra.mxu0 0.0
    %1807 = vmatprep.subr.mxu0 0.0
    %1808 = vmatpush2.msra.mxu0 0.0
    %1809 = vmatprep.subr.mxu0 0.0
    %1810 = vmatpush2.msra.mxu0 0.0
    %1811 = vmatprep.subr.mxu0 0.0
    %1812 = vmatpush2.msra.mxu0 0.0
    %1813 = vmatprep.subr.mxu0 0.0
    %1814 = vmatpush2.msra.mxu0 0.0
    %1815 = vmatprep.subr.mxu0 0.0
    %1816 = vmatpush2.msra.mxu0 0.0
    %1817 = vmatprep.subr.mxu0 0.0
    %1818 = vmatpush2.msra.mxu0 0.0
    %1819 = vmatprep.subr.mxu0 0.0
    %1820 = vmatpush2.msra.mxu0 0.0
    %1821 = vmatprep.subr.mxu0 0.0
    %1822 = vmatpush2.msra.mxu0 0.0
    %1823 = vmatprep.subr.mxu0 0.0
    %1824 = vmatpush2.msra.mxu0 0.0
    %1825 = vmatprep.subr.mxu0 0.0
    %1826 = vmatpush2.msra.mxu0 0.0
    %1827 = vmatprep.subr.mxu0 0.0
    %1828 = vmatpush2.msra.mxu0 0.0
    %1829 = vmatprep.mubr.f32.mxu0 0.0
    %1830 = vmatmul.mubr.f32.gmra.mxu0 %v1760
    %v1831 = vpop.f32.mrf.mxu0
    %v1832 = vadd.f32 0.0, %v1831
    %v1833 = vpop.f32.mrf.mxu0
    %1834 = vdwg.mxu0
    %v1835 = vadd.f32 %v1753, %v1832
    %s1836 = sld [smem:[#allocation8 + $0x11]]
    %v1837 = vstv %s1836
    %v1838 = vadd.f32 %v1835, %v1837
    %v1839 = vmax.f32 %v1838, 0.0
    %1840 = vst.msk [vmem:[#allocation4 + $0xa] sm:$0x7f] %vm1344, %v1839
    %s1841 = sld [smem:[#allocation8 + $0x12]]
    %v1842 = vld [vmem:[#allocation4] ss:$2 sm:$0xf]
    %v1843 = vstv %s1841
    %v1844 = vmul.f32 %v1843, %v1842
    %s1845 = sld [smem:[#allocation8 + $0x13]]
    %s1846 = scalar_lea.vmem [#allocation4], 1
    %v1847 = vld [vmem:[%s1846] ss:$2 sm:$0xf]
    %v1848 = vstv %s1845
    %v1849 = vmul.f32 %v1848, %v1847
    %v1850 = vadd.f32 %v1844, %v1849
    %s1851 = sld [smem:[#allocation8 + $0x14]]
    %s1852 = scalar_lea.vmem [#allocation4], 2
    %v1853 = vld [vmem:[%s1852] ss:$2 sm:$0xf]
    %v1854 = vstv %s1851
    %v1855 = vmul.f32 %v1854, %v1853
    %v1856 = vadd.f32 %v1850, %v1855
    %s1857 = sld [smem:[#allocation8 + $0x15]]
    %s1858 = scalar_lea.vmem [#allocation4], 9
    %v1859 = vld [vmem:[%s1858] ss:$2 sm:$0xf]
    %v1860 = vstv %s1857
    %v1861 = vmul.f32 %v1860, %v1859
    %v1862 = vadd.f32 %v1856, %v1861
    %s1863 = sld [smem:[#allocation8 + $0x16]]
    %s1864 = scalar_lea.vmem [#allocation4], 10
    %v1865 = vld [vmem:[%s1864] ss:$2 sm:$0xf]
    %v1866 = vstv %s1863
    %v1867 = vmul.f32 %v1866, %v1865
    %v1868 = vadd.f32 %v1862, %v1867
    %s1869 = sld [smem:[#allocation8 + $0x17]]
    %s1870 = scalar_lea.vmem [#allocation4], 11
    %v1871 = vld [vmem:[%s1870] ss:$2 sm:$0xf]
    %v1872 = vstv %s1869
    %v1873 = vmul.f32 %v1872, %v1871
    %v1874 = vadd.f32 %v1868, %v1873
    %s1875 = sld [smem:[#allocation8 + $0x1e]]
    %v1876 = vstv %s1875
    %v1877 = vadd.f32 %v1874, %v1876
    %1878 = vst.msk [vmem:[#allocation5 + $0x1] sm:$0xf] %vm51, %v1877
    %s1879 = sld [smem:[#allocation8 + $0x18]]
    %v1880 = vld [vmem:[#allocation4] ss:$2 sm:$0xf]
    %v1881 = vstv %s1879
    %v1882 = vmul.f32 %v1881, %v1880
    %s1883 = sld [smem:[#allocation8 + $0x19]]
    %v1884 = vld [vmem:[%s1846] ss:$2 sm:$0xf]
    %v1885 = vstv %s1883
    %v1886 = vmul.f32 %v1885, %v1884
    %v1887 = vadd.f32 %v1882, %v1886
    %s1888 = sld [smem:[#allocation8 + $0x1a]]
    %v1889 = vld [vmem:[%s1852] ss:$2 sm:$0xf]
    %v1890 = vstv %s1888
    %v1891 = vmul.f32 %v1890, %v1889
    %v1892 = vadd.f32 %v1887, %v1891
    %s1893 = sld [smem:[#allocation8 + $0x1b]]
    %v1894 = vld [vmem:[%s1858] ss:$2 sm:$0xf]
    %v1895 = vstv %s1893
    %v1896 = vmul.f32 %v1895, %v1894
    %v1897 = vadd.f32 %v1892, %v1896
    %s1898 = sld [smem:[#allocation8 + $0x1c]]
    %v1899 = vld [vmem:[%s1864] ss:$2 sm:$0xf]
    %v1900 = vstv %s1898
    %v1901 = vmul.f32 %v1900, %v1899
    %v1902 = vadd.f32 %v1897, %v1901
    %s1903 = sld [smem:[#allocation8 + $0x1d]]
    %v1904 = vld [vmem:[%s1870] ss:$2 sm:$0xf]
    %v1905 = vstv %s1903
    %v1906 = vmul.f32 %v1905, %v1904
    %v1907 = vadd.f32 %v1902, %v1906
    %s1908 = sld [smem:[#allocation8 + $0x1f]]
    %v1909 = vstv %s1908
    %v1910 = vadd.f32 %v1907, %v1909
    %1911 = vst.msk [vmem:[#allocation5 + $0x7] sm:$0xf] %vm51, %v1910
    %s1912 = sld [smem:[#allocation8 + $0x20]]
    %v1913 = vld [vmem:[#allocation5] sm:$0xf]
    %v1914 = vstv %s1912
    %v1915 = vmul.f32 %v1914, %v1913
    %s1916 = sld [smem:[#allocation8 + $0x21]]
    %v1917 = vld [vmem:[#allocation5 + $0x1] sm:$0xf]
    %v1918 = vstv %s1916
    %v1919 = vmul.f32 %v1918, %v1917
    %v1920 = vadd.f32 %v1915, %v1919
    %s1921 = sld [smem:[#allocation8 + $0x22]]
    %v1922 = vld [vmem:[#allocation5 + $0x2] sm:$0xf]
    %v1923 = vstv %s1921
    %v1924 = vmul.f32 %v1923, %v1922
    %v1925 = vadd.f32 %v1920, %v1924
    %s1926 = sld [smem:[#allocation8 + $0x23]]
    %v1927 = vld [vmem:[#allocation5 + $0x6] sm:$0xf]
    %v1928 = vstv %s1926
    %v1929 = vmul.f32 %v1928, %v1927
    %v1930 = vadd.f32 %v1925, %v1929
    %s1931 = sld [smem:[#allocation8 + $0x24]]
    %v1932 = vld [vmem:[#allocation5 + $0x7] sm:$0xf]
    %v1933 = vstv %s1931
    %v1934 = vmul.f32 %v1933, %v1932
    %v1935 = vadd.f32 %v1930, %v1934
    %s1936 = sld [smem:[#allocation8 + $0x25]]
    %v1937 = vld [vmem:[#allocation5 + $0x8] sm:$0xf]
    %v1938 = vstv %s1936
    %v1939 = vmul.f32 %v1938, %v1937
    %v1940 = vadd.f32 %v1935, %v1939
    %s1941 = sld [smem:[#allocation8 + $0x2c]]
    %v1942 = vstv %s1941
    %v1943 = vadd.f32 %v1940, %v1942
    %v1944 = vmax.f32 %v1943, 0.0
    %1945 = vst.msk [vmem:[#allocation6 + $0x1] sm:$0xf] %vm51, %v1944
    %s1946 = sld [smem:[#allocation8 + $0x26]]
    %v1947 = vld [vmem:[#allocation5] sm:$0xf]
    %v1948 = vstv %s1946
    %v1949 = vmul.f32 %v1948, %v1947
    %s1950 = sld [smem:[#allocation8 + $0x27]]
    %v1951 = vld [vmem:[#allocation5 + $0x1] sm:$0xf]
    %v1952 = vstv %s1950
    %v1953 = vmul.f32 %v1952, %v1951
    %v1954 = vadd.f32 %v1949, %v1953
    %s1955 = sld [smem:[#allocation8 + $0x28]]
    %v1956 = vld [vmem:[#allocation5 + $0x2] sm:$0xf]
    %v1957 = vstv %s1955
    %v1958 = vmul.f32 %v1957, %v1956
    %v1959 = vadd.f32 %v1954, %v1958
    %s1960 = sld [smem:[#allocation8 + $0x29]]
    %v1961 = vld [vmem:[#allocation5 + $0x6] sm:$0xf]
    %v1962 = vstv %s1960
    %v1963 = vmul.f32 %v1962, %v1961
    %v1964 = vadd.f32 %v1959, %v1963
    %s1965 = sld [smem:[#allocation8 + $0x2a]]
    %v1966 = vld [vmem:[#allocation5 + $0x7] sm:$0xf]
    %v1967 = vstv %s1965
    %v1968 = vmul.f32 %v1967, %v1966
    %v1969 = vadd.f32 %v1964, %v1968
    %s1970 = sld [smem:[#allocation8 + $0x2b]]
    %v1971 = vld [vmem:[#allocation5 + $0x8] sm:$0xf]
    %v1972 = vstv %s1970
    %v1973 = vmul.f32 %v1972, %v1971
    %v1974 = vadd.f32 %v1969, %v1973
    %s1975 = sld [smem:[#allocation8 + $0x2d]]
    %v1976 = vstv %s1975
    %v1977 = vadd.f32 %v1974, %v1976
    %v1978 = vmax.f32 %v1977, 0.0
    %1979 = vst.msk [vmem:[#allocation6 + $0x7] sm:$0xf] %vm51, %v1978
    %s1980 = sld [smem:[#allocation8 + $0x2e]]
    %v1981 = vld [vmem:[#allocation6] ss:$2 sm:$0x7]
    %v1982 = vstv %s1980
    %v1983 = vmul.f32 %v1982, %v1981
    %s1984 = sld [smem:[#allocation8 + $0x2f]]
    %s1985 = scalar_lea.vmem [#allocation6], 1
    %v1986 = vld [vmem:[%s1985] ss:$2 sm:$0x7]
    %v1987 = vstv %s1984
    %v1988 = vmul.f32 %v1987, %v1986
    %v1989 = vadd.f32 %v1983, %v1988
    %s1990 = sld [smem:[#allocation8 + $0x30]]
    %s1991 = scalar_lea.vmem [#allocation6], 6
    %v1992 = vld [vmem:[%s1991] ss:$2 sm:$0x7]
    %v1993 = vstv %s1990
    %v1994 = vmul.f32 %v1993, %v1992
    %v1995 = vadd.f32 %v1989, %v1994
    %s1996 = sld [smem:[#allocation8 + $0x31]]
    %s1997 = scalar_lea.vmem [#allocation6], 7
    %v1998 = vld [vmem:[%s1997] ss:$2 sm:$0x7]
    %v1999 = vstv %s1996
    %v2000 = vmul.f32 %v1999, %v1998
    %v2001 = vadd.f32 %v1995, %v2000
    %s2002 = sld [smem:[#allocation8 + $0x36]]
    %v2003 = vstv %s2002
    %v2004 = vadd.f32 %v2001, %v2003
    %v2005 = vmax.f32 %v2004, 0.0
    %vm2006 = vcmask 10240
    %2007 = vst.msk [vmem:[#allocation7] sm:$0x7] %vm2006, %v2005
    %s2008 = sld [smem:[#allocation8 + $0x32]]
    %v2009 = vld [vmem:[#allocation6] ss:$2 sm:$0x7]
    %v2010 = vstv %s2008
    %v2011 = vmul.f32 %v2010, %v2009
    %s2012 = sld [smem:[#allocation8 + $0x33]]
    %v2013 = vld [vmem:[%s1985] ss:$2 sm:$0x7]
    %v2014 = vstv %s2012
    %v2015 = vmul.f32 %v2014, %v2013
    %v2016 = vadd.f32 %v2011, %v2015
    %s2017 = sld [smem:[#allocation8 + $0x34]]
    %v2018 = vld [vmem:[%s1991] ss:$2 sm:$0x7]
    %v2019 = vstv %s2017
    %v2020 = vmul.f32 %v2019, %v2018
    %v2021 = vadd.f32 %v2016, %v2020
    %s2022 = sld [smem:[#allocation8 + $0x35]]
    %v2023 = vld [vmem:[%s1997] ss:$2 sm:$0x7]
    %v2024 = vstv %s2022
    %v2025 = vmul.f32 %v2024, %v2023
    %v2026 = vadd.f32 %v2021, %v2025
    %s2027 = sld [smem:[#allocation8 + $0x37]]
    %v2028 = vstv %s2027
    %v2029 = vadd.f32 %v2026, %v2028
    %v2030 = vmax.f32 %v2029, 0.0
    %2031 = vst.msk [vmem:[#allocation7 + $0x3] sm:$0x7] %vm2006, %v2030
    %v2032 = vld [vmem:[%s4] sm:$0xff]
    %v2033 = vld [vmem:[%s4 + $0x8] sm:$0x3]
    %v2034 = vld [vmem:[#allocation7] sm:$0x3f]
    %v2035 = vld [vmem:[%s5] sm:$0xff]
    %v2036 = vld [vmem:[%s5 + $0x8] sm:$0x3]
    %2038 = vset.pattern.permute.xlu0 0
    %2039 = vperm.xlu0 %2038, %v2035
    %v2040 = vpop.permute.xlu0 %2039
    %2043 = vset.pattern.permute.xlu0 0
    %2044 = vperm.xlu0 %2043, %v2036
    %v2045 = vpop.permute.xlu0 %2044
    %vm2047 = vcmask 48128
    %v2049 = vsel %vm2047, %v2032, 0
    %v2052 = vsel %vm2047, %v2033, 0
    %v2055 = vsel %vm317, %v2034, 0
    %2057 = vmatprep.subr.mxu0 0.0
    %2058 = vmatpush1.msra.mxu0 0.0
    %2059 = vmatprep.subr.mxu0 0.0
    %2060 = vmatpush1.msra.mxu0 0.0
    %2061 = vmatprep.subr.mxu0 0.0
    %2062 = vmatpush1.msra.mxu0 0.0
    %2063 = vmatprep.subr.mxu0 0.0
    %2064 = vmatpush1.msra.mxu0 0.0
    %2065 = vmatprep.subr.mxu0 0.0
    %2066 = vmatpush1.msra.mxu0 0.0
    %2067 = vmatprep.subr.mxu0 0.0
    %2068 = vmatpush1.msra.mxu0 0.0
    %2069 = vmatprep.subr.mxu0 0.0
    %2070 = vmatpush1.msra.mxu0 0.0
    %2071 = vmatprep.subr.mxu0 0.0
    %2072 = vmatpush1.msra.mxu0 0.0
    %2073 = vmatprep.subr.mxu0 0.0
    %2074 = vmatpush1.msra.mxu0 0.0
    %2075 = vmatprep.subr.mxu0 0.0
    %2076 = vmatpush1.msra.mxu0 0.0
    %2077 = vmatprep.subr.mxu0 0.0
    %2078 = vmatpush1.msra.mxu0 0.0
    %2079 = vmatprep.subr.mxu0 0.0
    %2080 = vmatpush1.msra.mxu0 0.0
    %2081 = vmatprep.subr.mxu0 0.0
    %2082 = vmatpush1.msra.mxu0 0.0
    %2083 = vmatprep.subr.mxu0 0.0
    %2084 = vmatpush1.msra.mxu0 0.0
    %2085 = vmatprep.subr.mxu0 0.0
    %2086 = vmatpush1.msra.mxu0 0.0
    %2087 = vmatprep.subr.mxu0 0.0
    %2088 = vmatpush1.msra.mxu0 %v2055
    %2089 = vmatprep.subr.mxu0 0.0
    %2090 = vmatpush2.msra.mxu0 0.0
    %2091 = vmatprep.subr.mxu0 0.0
    %2092 = vmatpush2.msra.mxu0 0.0
    %2093 = vmatprep.subr.mxu0 0.0
    %2094 = vmatpush2.msra.mxu0 0.0
    %2095 = vmatprep.subr.mxu0 0.0
    %2096 = vmatpush2.msra.mxu0 0.0
    %2097 = vmatprep.subr.mxu0 0.0
    %2098 = vmatpush2.msra.mxu0 0.0
    %2099 = vmatprep.subr.mxu0 0.0
    %2100 = vmatpush2.msra.mxu0 0.0
    %2101 = vmatprep.subr.mxu0 0.0
    %2102 = vmatpush2.msra.mxu0 0.0
    %2103 = vmatprep.subr.mxu0 0.0
    %2104 = vmatpush2.msra.mxu0 0.0
    %2105 = vmatprep.subr.mxu0 0.0
    %2106 = vmatpush2.msra.mxu0 0.0
    %2107 = vmatprep.subr.mxu0 0.0
    %2108 = vmatpush2.msra.mxu0 0.0
    %2109 = vmatprep.subr.mxu0 0.0
    %2110 = vmatpush2.msra.mxu0 0.0
    %2111 = vmatprep.subr.mxu0 0.0
    %2112 = vmatpush2.msra.mxu0 0.0
    %2113 = vmatprep.subr.mxu0 0.0
    %2114 = vmatpush2.msra.mxu0 0.0
    %2115 = vmatprep.subr.mxu0 0.0
    %2116 = vmatpush2.msra.mxu0 0.0
    %2117 = vmatprep.subr.mxu0 0.0
    %2118 = vmatpush2.msra.mxu0 0.0
    %2119 = vmatprep.subr.mxu0 0.0
    %2120 = vmatpush2.msra.mxu0 0.0
    %2121 = vmatprep.mubr.f32.mxu0 0.0
    %2122 = vmatmul.mubr.f32.gmra.mxu0 %v2049
    %v2123 = vpop.f32.mrf.mxu0
    %v2124 = vadd.f32 %v2040, %v2123
    %v2125 = vpop.f32.mrf.mxu0
    %2126 = vmatprep.mubr.f32.mxu0 0.0
    %2127 = vmatmul.mubr.f32.gmra.mxu0 %v2052
    %v2128 = vpop.f32.mrf.mxu0
    %v2129 = vadd.f32 %v2045, %v2128
    %v2130 = vpop.f32.mrf.mxu0
    %2131 = vdwg.mxu0
    %2132 = vst.msk [vmem:[%s6] sm:$0xff] %vm45, %v2124
    %2133 = vst.msk [vmem:[%s6 + $0x8] sm:$0x3] %vm48, %v2129
    // Predicated region
    $region30: #{hamida_forward.1} parent=1 // pred_check
      _
    $region31: #{hamida_forward.1} parent=1 // pred_check_branch
      %2135 = sbr.rel (0) target = $region33
    $region32: #{hamida_forward.1} parent=1 // pred_region
      _
    $region33: #{hamida_forward.1} parent=1 // pred_fallthru
      _
    // Predicated region
    $region34: #{hamida_forward.1} parent=1 // pred_check
      _
    $region35: #{hamida_forward.1} parent=1 // pred_check_branch
      %2137 = sbr.rel (0) target = $region37
    $region36: #{hamida_forward.1} parent=1 // pred_region
      _
    $region37: #{hamida_forward.1} parent=1 // pred_fallthru
      _
    %2138 = vsyncpa [#allocation9], 1

</llo_original>
